<compile_context>
chip_gen: v7x
topology: tpu7x:2x2x1
jax: 0.10.0
libtpu: 0.0.40
codegen_flags: <defaults>
</compile_context>

<pallas_src>
import functools

import jax
import jax.numpy as jnp
from jax.experimental import pallas as pl
from jax.experimental.pallas import tpu as pltpu

# ----------------------------- model config ---------------------------------
VOCAB = 64          # small synthetic vocab
HIDDEN = 32
N_LAYERS = 2
N_HEADS = 2
HEAD_DIM = HIDDEN // N_HEADS
INTER = 64
MAX_POS = 40
TYPE_VOCAB = 1
PAD_ID = 1          # RoBERTa padding_idx
EPS = 1e-5
NEG_INF = -1e9


# ----------------------------- Pallas kernels -------------------------------
def _layernorm_kernel(x_ref, g_ref, b_ref, o_ref):
    x = x_ref[...].astype(jnp.float32)
    mean = jnp.mean(x, axis=-1, keepdims=True)
    var = jnp.mean((x - mean) ** 2, axis=-1, keepdims=True)
    o_ref[...] = ((x - mean) * jax.lax.rsqrt(var + EPS) * g_ref[...]
                  + b_ref[...]).astype(o_ref.dtype)


def layernorm(x, g, b, rows_per_block):
    """x: (M, H); g/b: (1, H). Grid over row blocks (parallel)."""
    M, H = x.shape
    return pl.pallas_call(
        _layernorm_kernel,
        out_shape=jax.ShapeDtypeStruct((M, H), x.dtype),
        grid=(M // rows_per_block,),
        in_specs=[
            pl.BlockSpec((rows_per_block, H), lambda i: (i, 0)),
            pl.BlockSpec((1, H), lambda i: (0, 0)),
            pl.BlockSpec((1, H), lambda i: (0, 0)),
        ],
        out_specs=pl.BlockSpec((rows_per_block, H), lambda i: (i, 0)),
        compiler_params=pltpu.CompilerParams(
            dimension_semantics=("parallel",)),
    )(x, g, b)


def _layer_kernel(x_ref, mask_ref, wqkv_ref, bqkv_ref, wo_ref, bo_ref,
                  ln1g_ref, ln1b_ref, wi_ref, bi_ref, w2_ref, b2_ref,
                  ln2g_ref, ln2b_ref, o_ref, *, n_heads, head_dim, scale):
    """One full transformer encoder layer for a single batch's sequence.

    x_ref: (S, H) rows of this batch; mask_ref: (1, 1, S) additive key mask.
    Weights are bf16 MXU operands; all accumulation / epilogues are f32.
    """

    def layer_norm(y, g, b):
        mean = jnp.mean(y, axis=-1, keepdims=True)
        var = jnp.mean((y - mean) ** 2, axis=-1, keepdims=True)
        return (y - mean) * jax.lax.rsqrt(var + EPS) * g + b

    x = x_ref[...].astype(jnp.float32)                       # (S, H)
    hidden = x.shape[-1]

    # ---- fused QKV projection: one MXU pass, lane-dense (3H) output ----
    qkv = jnp.dot(x.astype(jnp.bfloat16), wqkv_ref[...],
                  preferred_element_type=jnp.float32) + bqkv_ref[...]  # (S,3H)
    mask = mask_ref[0]                                       # (1, S) additive

    # ---- multi-head attention + output projection, fully VMEM-resident ----
    attn = None
    for h in range(n_heads):
        lo = h * head_dim
        qh = qkv[:, lo:lo + head_dim]                               # (S, Dh)
        kh = qkv[:, hidden + lo:hidden + lo + head_dim]             # (S, Dh)
        vh = qkv[:, 2 * hidden + lo:2 * hidden + lo + head_dim]     # (S, Dh)
        # contract last dims directly -> no explicit transpose of k
        s = jax.lax.dot_general(qh, kh, (((1,), (1,)), ((), ())),
                                preferred_element_type=jnp.float32) * scale
        s = s + mask                                         # mask keys (cols)
        p = jnp.exp(s - jnp.max(s, axis=-1, keepdims=True))
        p = p * pl.reciprocal(jnp.sum(p, axis=-1, keepdims=True), approx=True)
        ctx_h = jnp.dot(p, vh, preferred_element_type=jnp.float32)  # (S, Dh)
        # per-head slice of the output projection: ctx_h @ wo[h*Dh:(h+1)*Dh, :]
        part = jnp.dot(ctx_h.astype(jnp.bfloat16),
                       wo_ref[lo:lo + head_dim, :],
                       preferred_element_type=jnp.float32)          # (S, H)
        attn = part if attn is None else attn + part
    attn = attn + bo_ref[...]

    # ---- residual + LayerNorm (fused epilogue) ----
    x1 = layer_norm(attn + x, ln1g_ref[...], ln1b_ref[...])

    # ---- FFN: linear + GELU + linear + residual + LayerNorm ----
    inter = jnp.dot(x1.astype(jnp.bfloat16), wi_ref[...],
                    preferred_element_type=jnp.float32) + bi_ref[...]
    # TODO(synk): HF RoBERTa default is erf-GELU; tanh approximation
    # ("gelu_new") used for guaranteed EUP lowering on TPU.
    c = jnp.float32(0.7978845608028654)  # sqrt(2/pi)
    inter = 0.5 * inter * (1.0 + jnp.tanh(c * (inter
                                               + 0.044715 * inter * inter * inter)))
    ffn = jnp.dot(inter.astype(jnp.bfloat16), w2_ref[...],
                  preferred_element_type=jnp.float32) + b2_ref[...]

    o_ref[...] = layer_norm(ffn + x1, ln2g_ref[...],
                            ln2b_ref[...]).astype(o_ref.dtype)


def encoder_layer(x, mask_add, p):
    """x: (B*S, H) float32; mask_add: (B, 1, S) float32 additive mask."""
    M, H = x.shape
    B = mask_add.shape[0]
    S = M // B

    rowspec = pl.BlockSpec((S, H), lambda b: (b, 0))
    const2d = lambda arr: pl.BlockSpec(arr.shape, lambda b: (0, 0))

    return pl.pallas_call(
        functools.partial(_layer_kernel, n_heads=N_HEADS, head_dim=HEAD_DIM,
                          scale=1.0 / (HEAD_DIM ** 0.5)),
        out_shape=jax.ShapeDtypeStruct((M, H), x.dtype),
        grid=(B,),
        in_specs=[
            rowspec,                                        # x rows of batch b
            pl.BlockSpec((1, 1, S), lambda b: (b, 0, 0)),   # additive mask
            const2d(p["wqkv"]), const2d(p["bqkv"]),
            const2d(p["wo"]), const2d(p["bo"]),
            const2d(p["ln1_g"]), const2d(p["ln1_b"]),
            const2d(p["wi"]), const2d(p["bi"]),
            const2d(p["w2"]), const2d(p["b2"]),
            const2d(p["ln2_g"]), const2d(p["ln2_b"]),
        ],
        out_specs=rowspec,
        compiler_params=pltpu.CompilerParams(
            dimension_semantics=("parallel",)),
    )(x, mask_add, p["wqkv"], p["bqkv"], p["wo"], p["bo"],
      p["ln1_g"], p["ln1_b"], p["wi"], p["bi"], p["w2"], p["b2"],
      p["ln2_g"], p["ln2_b"])


# ----------------------------- parameter init -------------------------------
def init_params(key):
    std = 0.02

    def dense(k, fan_in, fan_out):
        kw, kb = jax.random.split(k)
        return (jax.random.normal(kw, (fan_in, fan_out), jnp.float32) * std,
                jax.random.normal(kb, (fan_out,), jnp.float32) * std)

    keys = jax.random.split(key, 4 + N_LAYERS)
    params = {
        "word_emb": jax.random.normal(keys[0], (VOCAB, HIDDEN), jnp.float32) * std,
        "pos_emb": jax.random.normal(keys[1], (MAX_POS, HIDDEN), jnp.float32) * std,
        "type_emb": jax.random.normal(keys[2], (TYPE_VOCAB, HIDDEN), jnp.float32) * std,
        "emb_ln_g": jnp.ones((1, HIDDEN), jnp.float32),
        "emb_ln_b": jnp.zeros((1, HIDDEN), jnp.float32),
        "layers": [],
    }
    for li in range(N_LAYERS):
        lk = jax.random.split(keys[4 + li], 6)
        wq, bq = dense(lk[0], HIDDEN, HIDDEN)
        wk, bk = dense(lk[1], HIDDEN, HIDDEN)
        wv, bv = dense(lk[2], HIDDEN, HIDDEN)
        wo, bo = dense(lk[3], HIDDEN, HIDDEN)
        wi, bi = dense(lk[4], HIDDEN, INTER)
        w2, b2 = dense(lk[5], INTER, HIDDEN)
        params["layers"].append({
            # fused QKV weight/bias; heavy weights stored as bf16 MXU operands
            "wqkv": jnp.concatenate([wq, wk, wv], axis=1).astype(jnp.bfloat16),
            "bqkv": jnp.concatenate([bq, bk, bv]).reshape(1, 3 * HIDDEN),
            "wo": wo.astype(jnp.bfloat16), "bo": bo.reshape(1, HIDDEN),
            "ln1_g": jnp.ones((1, HIDDEN), jnp.float32),
            "ln1_b": jnp.zeros((1, HIDDEN), jnp.float32),
            "wi": wi.astype(jnp.bfloat16), "bi": bi.reshape(1, INTER),
            "w2": w2.astype(jnp.bfloat16), "b2": b2.reshape(1, HIDDEN),
            "ln2_g": jnp.ones((1, HIDDEN), jnp.float32),
            "ln2_b": jnp.zeros((1, HIDDEN), jnp.float32),
        })
    return params


# ----------------------------- forward pass ----------------------------------
def roberta_forward(params, input_ids, attention_mask):
    """Returns last_hidden_state of shape (B, S, HIDDEN)."""
    B, S = input_ids.shape

    # --- embeddings (gather / cumsum are XLA glue; LayerNorm runs in Pallas) ---
    pad_mask = (input_ids != PAD_ID).astype(jnp.int32)
    position_ids = jnp.cumsum(pad_mask, axis=1) * pad_mask + PAD_ID
    token_type_ids = jnp.zeros_like(input_ids)
    emb = (params["word_emb"][input_ids]
           + params["pos_emb"][position_ids]
           + params["type_emb"][token_type_ids])                 # (B, S, H)
    x = emb.reshape(B * S, HIDDEN)
    x = layernorm(x, params["emb_ln_g"], params["emb_ln_b"], rows_per_block=S)

    # additive attention mask: 0 where attended, -1e9 where padded
    mask_add = ((1.0 - attention_mask.astype(jnp.float32)) * NEG_INF
                ).reshape(B, 1, S)

    # --- N fused transformer-layer kernels (one pallas_call each) ---
    for layer in params["layers"]:
        x = encoder_layer(x, mask_add, layer)

    return x.reshape(B, S, HIDDEN)


# ----------------------------- main ------------------------------------------
if __name__ == "__main__":
    key = jax.random.PRNGKey(0)
    pkey, ikey = jax.random.split(key)
    params = init_params(pkey)

    B, S = 2, 8
    # deterministic token ids in [2, VOCAB); second sequence padded at the end
    input_ids = jax.random.randint(ikey, (B, S), 2, VOCAB, dtype=jnp.int32)
    attention_mask = jnp.ones((B, S), dtype=jnp.int32)
    attention_mask = attention_mask.at[1, 6:].set(0)
    input_ids = jnp.where(attention_mask == 1, input_ids, PAD_ID)

    fwd = jax.jit(roberta_forward)
    text_features = fwd(params, input_ids, attention_mask)
    jax.block_until_ready(text_features)

    assert text_features.shape == (B, S, HIDDEN)
    assert bool(jnp.all(jnp.isfinite(text_features)))
    print("KERNEL_OK")
</pallas_src>

<mosaic_0001>
module attributes {stable_mosaic.version = 11 : i64} {
  func.func @_layernorm_kernel(%arg0: i32, %arg1: memref<8x32xf32, #tpu.memory_space<vmem>>, %arg2: memref<1x32xf32, #tpu.memory_space<vmem>>, %arg3: memref<1x32xf32, #tpu.memory_space<vmem>>, %arg4: memref<8x32xf32, #tpu.memory_space<vmem>>) attributes {dimension_semantics = [#tpu.dimension_semantics<parallel>], iteration_bounds = array<i64: 2>, scalar_prefetch = 0 : i64, scratch_operands = 0 : i64, tpu.core_type = #tpu.core_type<tc>, window_params = [{transform_indices = @transform_0, window_bounds = array<i64: 8, 32>}, {pipeline_mode = #tpu.pipeline_mode<synchronous>, transform_indices = @transform_1, window_bounds = array<i64: 1, 32>}, {pipeline_mode = #tpu.pipeline_mode<synchronous>, transform_indices = @transform_2, window_bounds = array<i64: 1, 32>}, {transform_indices = @transform_3, window_bounds = array<i64: 8, 32>}]} {
    %c0 = arith.constant 0 : index
    %c0_0 = arith.constant 0 : index
    %0 = vector.load %arg1[%c0, %c0_0] : memref<8x32xf32, #tpu.memory_space<vmem>>, vector<8x32xf32>
    %cst = arith.constant dense<0.000000e+00> : vector<8xf32>
    %1 = vector.multi_reduction <add>, %0, %cst [1] : vector<8x32xf32> to vector<8xf32>
    %2 = vector.shape_cast %1 : vector<8xf32> to vector<8x1xf32>
    %cst_1 = arith.constant 3.200000e+01 : f32
    %3 = vector.broadcast %cst_1 : f32 to vector<8x1xf32>
    %4 = arith.divf %2, %3 : vector<8x1xf32>
    %5 = vector.broadcast %4 : vector<8x1xf32> to vector<8x32xf32>
    %6 = arith.subf %0, %5 : vector<8x32xf32>
    %7 = arith.mulf %6, %6 : vector<8x32xf32>
    %cst_2 = arith.constant dense<0.000000e+00> : vector<8xf32>
    %8 = vector.multi_reduction <add>, %7, %cst_2 [1] : vector<8x32xf32> to vector<8xf32>
    %9 = vector.shape_cast %8 : vector<8xf32> to vector<8x1xf32>
    %cst_3 = arith.constant 3.200000e+01 : f32
    %10 = vector.broadcast %cst_3 : f32 to vector<8x1xf32>
    %11 = arith.divf %9, %10 : vector<8x1xf32>
    %12 = vector.broadcast %4 : vector<8x1xf32> to vector<8x32xf32>
    %13 = arith.subf %0, %12 : vector<8x32xf32>
    %cst_4 = arith.constant 9.99999974E-6 : f32
    %14 = vector.broadcast %cst_4 : f32 to vector<8x1xf32>
    %15 = arith.addf %11, %14 : vector<8x1xf32>
    %16 = math.rsqrt %15 : vector<8x1xf32>
    %17 = vector.broadcast %16 : vector<8x1xf32> to vector<8x32xf32>
    %18 = arith.mulf %13, %17 : vector<8x32xf32>
    %c0_5 = arith.constant 0 : index
    %c0_6 = arith.constant 0 : index
    %19 = vector.load %arg2[%c0_5, %c0_6] : memref<1x32xf32, #tpu.memory_space<vmem>>, vector<1x32xf32>
    %20 = vector.broadcast %19 : vector<1x32xf32> to vector<8x32xf32>
    %21 = arith.mulf %18, %20 : vector<8x32xf32>
    %c0_7 = arith.constant 0 : index
    %c0_8 = arith.constant 0 : index
    %22 = vector.load %arg3[%c0_7, %c0_8] : memref<1x32xf32, #tpu.memory_space<vmem>>, vector<1x32xf32>
    %23 = vector.broadcast %22 : vector<1x32xf32> to vector<8x32xf32>
    %24 = arith.addf %21, %23 : vector<8x32xf32>
    %c0_9 = arith.constant 0 : index
    %c0_10 = arith.constant 0 : index
    %25 = vector.load %arg4[%c0_9, %c0_10] : memref<8x32xf32, #tpu.memory_space<vmem>>, vector<8x32xf32>
    tpu.vector_store %arg4[%c0_9, %c0_10], %24 {strides = array<i32>} : memref<8x32xf32, #tpu.memory_space<vmem>>, vector<8x32xf32>,
    return
  }
  func.func @transform_0(%arg0: i32) -> (i32, i32) {
    %c0_i32 = arith.constant 0 : i32
    %c0_i32_0 = arith.constant 0 : i32
    return %arg0, %c0_i32 : i32, i32
  }
  func.func @transform_1(%arg0: i32) -> (i32, i32) {
    %c0_i32 = arith.constant 0 : i32
    %c0_i32_0 = arith.constant 0 : i32
    %c0_i32_1 = arith.constant 0 : i32
    return %c0_i32, %c0_i32_0 : i32, i32
  }
  func.func @transform_2(%arg0: i32) -> (i32, i32) {
    %c0_i32 = arith.constant 0 : i32
    %c0_i32_0 = arith.constant 0 : i32
    %c0_i32_1 = arith.constant 0 : i32
    return %c0_i32, %c0_i32_0 : i32, i32
  }
  func.func @transform_3(%arg0: i32) -> (i32, i32) {
    %c0_i32 = arith.constant 0 : i32
    %c0_i32_0 = arith.constant 0 : i32
    return %arg0, %c0_i32 : i32, i32
  }
}

module attributes {stable_mosaic.version = 11 : i64} {
  func.func @_layer_kernel(%arg0: i32, %arg1: memref<8x32xf32, #tpu.memory_space<vmem>>, %arg2: memref<1x1x8xf32, #tpu.memory_space<vmem>>, %arg3: memref<32x96xbf16, #tpu.memory_space<vmem>>, %arg4: memref<1x96xf32, #tpu.memory_space<vmem>>, %arg5: memref<32x32xbf16, #tpu.memory_space<vmem>>, %arg6: memref<1x32xf32, #tpu.memory_space<vmem>>, %arg7: memref<1x32xf32, #tpu.memory_space<vmem>>, %arg8: memref<1x32xf32, #tpu.memory_space<vmem>>, %arg9: memref<32x64xbf16, #tpu.memory_space<vmem>>, %arg10: memref<1x64xf32, #tpu.memory_space<vmem>>, %arg11: memref<64x32xbf16, #tpu.memory_space<vmem>>, %arg12: memref<1x32xf32, #tpu.memory_space<vmem>>, %arg13: memref<1x32xf32, #tpu.memory_space<vmem>>, %arg14: memref<1x32xf32, #tpu.memory_space<vmem>>, %arg15: memref<8x32xf32, #tpu.memory_space<vmem>>) attributes {dimension_semantics = [#tpu.dimension_semantics<parallel>], iteration_bounds = array<i64: 2>, scalar_prefetch = 0 : i64, scratch_operands = 0 : i64, tpu.core_type = #tpu.core_type<tc>, window_params = [{transform_indices = @transform_0, window_bounds = array<i64: 8, 32>}, {transform_indices = @transform_1, window_bounds = array<i64: 1, 1, 8>}, {pipeline_mode = #tpu.pipeline_mode<synchronous>, transform_indices = @transform_2, window_bounds = array<i64: 32, 96>}, {pipeline_mode = #tpu.pipeline_mode<synchronous>, transform_indices = @transform_3, window_bounds = array<i64: 1, 96>}, {pipeline_mode = #tpu.pipeline_mode<synchronous>, transform_indices = @transform_4, window_bounds = array<i64: 32, 32>}, {pipeline_mode = #tpu.pipeline_mode<synchronous>, transform_indices = @transform_5, window_bounds = array<i64: 1, 32>}, {pipeline_mode = #tpu.pipeline_mode<synchronous>, transform_indices = @transform_6, window_bounds = array<i64: 1, 32>}, {pipeline_mode = #tpu.pipeline_mode<synchronous>, transform_indices = @transform_7, window_bounds = array<i64: 1, 32>}, {pipeline_mode = #tpu.pipeline_mode<synchronous>, transform_indices = @transform_8, window_bounds = array<i64: 32, 64>}, {pipeline_mode = #tpu.pipeline_mode<synchronous>, transform_indices = @transform_9, window_bounds = array<i64: 1, 64>}, {pipeline_mode = #tpu.pipeline_mode<synchronous>, transform_indices = @transform_10, window_bounds = array<i64: 64, 32>}, {pipeline_mode = #tpu.pipeline_mode<synchronous>, transform_indices = @transform_11, window_bounds = array<i64: 1, 32>}, {pipeline_mode = #tpu.pipeline_mode<synchronous>, transform_indices = @transform_12, window_bounds = array<i64: 1, 32>}, {pipeline_mode = #tpu.pipeline_mode<synchronous>, transform_indices = @transform_13, window_bounds = array<i64: 1, 32>}, {transform_indices = @transform_14, window_bounds = array<i64: 8, 32>}]} {
    %c0 = arith.constant 0 : index
    %c0_0 = arith.constant 0 : index
    %0 = vector.load %arg1[%c0, %c0_0] : memref<8x32xf32, #tpu.memory_space<vmem>>, vector<8x32xf32>
    %1 = arith.truncf %0 : vector<8x32xf32> to vector<8x32xbf16>
    %c0_1 = arith.constant 0 : index
    %c0_2 = arith.constant 0 : index
    %2 = vector.load %arg3[%c0_1, %c0_2] : memref<32x96xbf16, #tpu.memory_space<vmem>>, vector<32x96xbf16>
    %cst = arith.constant dense<0.000000e+00> : vector<8x96xf32>
    %3 = tpu.matmul %1, %2, %cst {dimension_numbers = #tpu.dot_dimension_numbers<[1], [0], [0], [1], [0, 0, 1, 1], [], []>} : vector<8x32xbf16>, vector<32x96xbf16>, vector<8x96xf32> -> vector<8x96xf32>
    %c0_3 = arith.constant 0 : index
    %c0_4 = arith.constant 0 : index
    %4 = vector.load %arg4[%c0_3, %c0_4] : memref<1x96xf32, #tpu.memory_space<vmem>>, vector<1x96xf32>
    %5 = vector.broadcast %4 : vector<1x96xf32> to vector<8x96xf32>
    %6 = arith.addf %3, %5 : vector<8x96xf32>
    %c0_5 = arith.constant 0 : index
    %c0_6 = arith.constant 0 : index
    %c0_7 = arith.constant 0 : index
    %7 = vector.load %arg2[%c0_5, %c0_6, %c0_7] : memref<1x1x8xf32, #tpu.memory_space<vmem>>, vector<1x1x8xf32>
    %8 = vector.shape_cast %7 : vector<1x1x8xf32> to vector<1x8xf32>
    %9 = vector.extract_strided_slice %6 {offsets = [0, 0], sizes = [8, 16], strides = [1, 1]} : vector<8x96xf32> to vector<8x16xf32>
    %10 = vector.extract_strided_slice %6 {offsets = [0, 32], sizes = [8, 16], strides = [1, 1]} : vector<8x96xf32> to vector<8x16xf32>
    %11 = vector.extract_strided_slice %6 {offsets = [0, 64], sizes = [8, 16], strides = [1, 1]} : vector<8x96xf32> to vector<8x16xf32>
    %cst_8 = arith.constant dense<0.000000e+00> : vector<8x8xf32>
    %12 = tpu.matmul %9, %10, %cst_8 {dimension_numbers = #tpu.dot_dimension_numbers<[1], [1], [0], [0], [0, 0, 1, 0], [], []>} : vector<8x16xf32>, vector<8x16xf32>, vector<8x8xf32> -> vector<8x8xf32>
    %cst_9 = arith.constant 2.500000e-01 : f32
    %13 = vector.broadcast %cst_9 : f32 to vector<8x8xf32>
    %14 = arith.mulf %12, %13 : vector<8x8xf32>
    %15 = vector.broadcast %8 : vector<1x8xf32> to vector<8x8xf32>
    %16 = arith.addf %14, %15 : vector<8x8xf32>
    %cst_10 = arith.constant dense<0xFF800000> : vector<8xf32>
    %17 = vector.multi_reduction <maximumf>, %16, %cst_10 [1] : vector<8x8xf32> to vector<8xf32>
    %18 = vector.shape_cast %17 : vector<8xf32> to vector<8x1xf32>
    %19 = vector.broadcast %18 : vector<8x1xf32> to vector<8x8xf32>
    %20 = arith.subf %16, %19 : vector<8x8xf32>
    %21 = math.exp %20 : vector<8x8xf32>
    %cst_11 = arith.constant dense<0.000000e+00> : vector<8xf32>
    %22 = vector.multi_reduction <add>, %21, %cst_11 [1] : vector<8x8xf32> to vector<8xf32>
    %23 = vector.shape_cast %22 : vector<8xf32> to vector<8x1xf32>
    %24 = tpu.reciprocal %23 {approx = true} : vector<8x1xf32> -> vector<8x1xf32>
    %25 = vector.broadcast %24 : vector<8x1xf32> to vector<8x8xf32>
    %26 = arith.mulf %21, %25 : vector<8x8xf32>
    %cst_12 = arith.constant dense<0.000000e+00> : vector<8x16xf32>
    %27 = tpu.matmul %26, %11, %cst_12 {dimension_numbers = #tpu.dot_dimension_numbers<[1], [0], [0], [1], [0, 0, 1, 1], [], []>} : vector<8x8xf32>, vector<8x16xf32>, vector<8x16xf32> -> vector<8x16xf32>
    %28 = arith.truncf %27 : vector<8x16xf32> to vector<8x16xbf16>
    %c0_13 = arith.constant 0 : index
    %c0_14 = arith.constant 0 : index
    %29 = vector.load %arg5[%c0_13, %c0_14] : memref<32x32xbf16, #tpu.memory_space<vmem>>, vector<16x32xbf16>
    %cst_15 = arith.constant dense<0.000000e+00> : vector<8x32xf32>
    %30 = tpu.matmul %28, %29, %cst_15 {dimension_numbers = #tpu.dot_dimension_numbers<[1], [0], [0], [1], [0, 0, 1, 1], [], []>} : vector<8x16xbf16>, vector<16x32xbf16>, vector<8x32xf32> -> vector<8x32xf32>
    %31 = vector.extract_strided_slice %6 {offsets = [0, 16], sizes = [8, 16], strides = [1, 1]} : vector<8x96xf32> to vector<8x16xf32>
    %32 = vector.extract_strided_slice %6 {offsets = [0, 48], sizes = [8, 16], strides = [1, 1]} : vector<8x96xf32> to vector<8x16xf32>
    %33 = vector.extract_strided_slice %6 {offsets = [0, 80], sizes = [8, 16], strides = [1, 1]} : vector<8x96xf32> to vector<8x16xf32>
    %cst_16 = arith.constant dense<0.000000e+00> : vector<8x8xf32>
    %34 = tpu.matmul %31, %32, %cst_16 {dimension_numbers = #tpu.dot_dimension_numbers<[1], [1], [0], [0], [0, 0, 1, 0], [], []>} : vector<8x16xf32>, vector<8x16xf32>, vector<8x8xf32> -> vector<8x8xf32>
    %cst_17 = arith.constant 2.500000e-01 : f32
    %35 = vector.broadcast %cst_17 : f32 to vector<8x8xf32>
    %36 = arith.mulf %34, %35 : vector<8x8xf32>
    %37 = vector.broadcast %8 : vector<1x8xf32> to vector<8x8xf32>
    %38 = arith.addf %36, %37 : vector<8x8xf32>
    %cst_18 = arith.constant dense<0xFF800000> : vector<8xf32>
    %39 = vector.multi_reduction <maximumf>, %38, %cst_18 [1] : vector<8x8xf32> to vector<8xf32>
    %40 = vector.shape_cast %39 : vector<8xf32> to vector<8x1xf32>
    %41 = vector.broadcast %40 : vector<8x1xf32> to vector<8x8xf32>
    %42 = arith.subf %38, %41 : vector<8x8xf32>
    %43 = math.exp %42 : vector<8x8xf32>
    %cst_19 = arith.constant dense<0.000000e+00> : vector<8xf32>
    %44 = vector.multi_reduction <add>, %43, %cst_19 [1] : vector<8x8xf32> to vector<8xf32>
    %45 = vector.shape_cast %44 : vector<8xf32> to vector<8x1xf32>
    %46 = tpu.reciprocal %45 {approx = true} : vector<8x1xf32> -> vector<8x1xf32>
    %47 = vector.broadcast %46 : vector<8x1xf32> to vector<8x8xf32>
    %48 = arith.mulf %43, %47 : vector<8x8xf32>
    %cst_20 = arith.constant dense<0.000000e+00> : vector<8x16xf32>
    %49 = tpu.matmul %48, %33, %cst_20 {dimension_numbers = #tpu.dot_dimension_numbers<[1], [0], [0], [1], [0, 0, 1, 1], [], []>} : vector<8x8xf32>, vector<8x16xf32>, vector<8x16xf32> -> vector<8x16xf32>
    %50 = arith.truncf %49 : vector<8x16xf32> to vector<8x16xbf16>
    %c16 = arith.constant 16 : index
    %c0_21 = arith.constant 0 : index
    %51 = vector.load %arg5[%c16, %c0_21] : memref<32x32xbf16, #tpu.memory_space<vmem>>, vector<16x32xbf16>
    %cst_22 = arith.constant dense<0.000000e+00> : vector<8x32xf32>
    %52 = tpu.matmul %50, %51, %cst_22 {dimension_numbers = #tpu.dot_dimension_numbers<[1], [0], [0], [1], [0, 0, 1, 1], [], []>} : vector<8x16xbf16>, vector<16x32xbf16>, vector<8x32xf32> -> vector<8x32xf32>
    %53 = arith.addf %30, %52 : vector<8x32xf32>
    %c0_23 = arith.constant 0 : index
    %c0_24 = arith.constant 0 : index
    %54 = vector.load %arg6[%c0_23, %c0_24] : memref<1x32xf32, #tpu.memory_space<vmem>>, vector<1x32xf32>
    %55 = vector.broadcast %54 : vector<1x32xf32> to vector<8x32xf32>
    %56 = arith.addf %53, %55 : vector<8x32xf32>
    %57 = arith.addf %56, %0 : vector<8x32xf32>
    %c0_25 = arith.constant 0 : index
    %c0_26 = arith.constant 0 : index
    %58 = vector.load %arg7[%c0_25, %c0_26] : memref<1x32xf32, #tpu.memory_space<vmem>>, vector<1x32xf32>
    %c0_27 = arith.constant 0 : index
    %c0_28 = arith.constant 0 : index
    %59 = vector.load %arg8[%c0_27, %c0_28] : memref<1x32xf32, #tpu.memory_space<vmem>>, vector<1x32xf32>
    %cst_29 = arith.constant dense<0.000000e+00> : vector<8xf32>
    %60 = vector.multi_reduction <add>, %57, %cst_29 [1] : vector<8x32xf32> to vector<8xf32>
    %61 = vector.shape_cast %60 : vector<8xf32> to vector<8x1xf32>
    %cst_30 = arith.constant 3.200000e+01 : f32
    %62 = vector.broadcast %cst_30 : f32 to vector<8x1xf32>
    %63 = arith.divf %61, %62 : vector<8x1xf32>
    %64 = vector.broadcast %63 : vector<8x1xf32> to vector<8x32xf32>
    %65 = arith.subf %57, %64 : vector<8x32xf32>
    %66 = arith.mulf %65, %65 : vector<8x32xf32>
    %cst_31 = arith.constant dense<0.000000e+00> : vector<8xf32>
    %67 = vector.multi_reduction <add>, %66, %cst_31 [1] : vector<8x32xf32> to vector<8xf32>
    %68 = vector.shape_cast %67 : vector<8xf32> to vector<8x1xf32>
    %cst_32 = arith.constant 3.200000e+01 : f32
    %69 = vector.broadcast %cst_32 : f32 to vector<8x1xf32>
    %70 = arith.divf %68, %69 : vector<8x1xf32>
    %71 = vector.broadcast %63 : vector<8x1xf32> to vector<8x32xf32>
    %72 = arith.subf %57, %71 : vector<8x32xf32>
    %cst_33 = arith.constant 9.99999974E-6 : f32
    %73 = vector.broadcast %cst_33 : f32 to vector<8x1xf32>
    %74 = arith.addf %70, %73 : vector<8x1xf32>
    %75 = math.rsqrt %74 : vector<8x1xf32>
    %76 = vector.broadcast %75 : vector<8x1xf32> to vector<8x32xf32>
    %77 = arith.mulf %72, %76 : vector<8x32xf32>
    %78 = vector.broadcast %58 : vector<1x32xf32> to vector<8x32xf32>
    %79 = arith.mulf %77, %78 : vector<8x32xf32>
    %80 = vector.broadcast %59 : vector<1x32xf32> to vector<8x32xf32>
    %81 = arith.addf %79, %80 : vector<8x32xf32>
    %82 = arith.truncf %81 : vector<8x32xf32> to vector<8x32xbf16>
    %c0_34 = arith.constant 0 : index
    %c0_35 = arith.constant 0 : index
    %83 = vector.load %arg9[%c0_34, %c0_35] : memref<32x64xbf16, #tpu.memory_space<vmem>>, vector<32x64xbf16>
    %cst_36 = arith.constant dense<0.000000e+00> : vector<8x64xf32>
    %84 = tpu.matmul %82, %83, %cst_36 {dimension_numbers = #tpu.dot_dimension_numbers<[1], [0], [0], [1], [0, 0, 1, 1], [], []>} : vector<8x32xbf16>, vector<32x64xbf16>, vector<8x64xf32> -> vector<8x64xf32>
    %c0_37 = arith.constant 0 : index
    %c0_38 = arith.constant 0 : index
    %85 = vector.load %arg10[%c0_37, %c0_38] : memref<1x64xf32, #tpu.memory_space<vmem>>, vector<1x64xf32>
    %86 = vector.broadcast %85 : vector<1x64xf32> to vector<8x64xf32>
    %87 = arith.addf %84, %86 : vector<8x64xf32>
    %cst_39 = arith.constant 5.000000e-01 : f32
    %88 = vector.broadcast %cst_39 : f32 to vector<8x64xf32>
    %89 = arith.mulf %88, %87 : vector<8x64xf32>
    %cst_40 = arith.constant 4.471500e-02 : f32
    %90 = vector.broadcast %cst_40 : f32 to vector<8x64xf32>
    %91 = arith.mulf %90, %87 : vector<8x64xf32>
    %92 = arith.mulf %91, %87 : vector<8x64xf32>
    %93 = arith.mulf %92, %87 : vector<8x64xf32>
    %94 = arith.addf %87, %93 : vector<8x64xf32>
    %cst_41 = arith.constant 0.797884583 : f32
    %95 = vector.broadcast %cst_41 : f32 to vector<8x64xf32>
    %96 = arith.mulf %95, %94 : vector<8x64xf32>
    %97 = math.tanh %96 : vector<8x64xf32>
    %cst_42 = arith.constant 1.000000e+00 : f32
    %98 = vector.broadcast %cst_42 : f32 to vector<8x64xf32>
    %99 = arith.addf %98, %97 : vector<8x64xf32>
    %100 = arith.mulf %89, %99 : vector<8x64xf32>
    %101 = arith.truncf %100 : vector<8x64xf32> to vector<8x64xbf16>
    %c0_43 = arith.constant 0 : index
    %c0_44 = arith.constant 0 : index
    %102 = vector.load %arg11[%c0_43, %c0_44] : memref<64x32xbf16, #tpu.memory_space<vmem>>, vector<64x32xbf16>
    %cst_45 = arith.constant dense<0.000000e+00> : vector<8x32xf32>
    %103 = tpu.matmul %101, %102, %cst_45 {dimension_numbers = #tpu.dot_dimension_numbers<[1], [0], [0], [1], [0, 0, 1, 1], [], []>} : vector<8x64xbf16>, vector<64x32xbf16>, vector<8x32xf32> -> vector<8x32xf32>
    %c0_46 = arith.constant 0 : index
    %c0_47 = arith.constant 0 : index
    %104 = vector.load %arg12[%c0_46, %c0_47] : memref<1x32xf32, #tpu.memory_space<vmem>>, vector<1x32xf32>
    %105 = vector.broadcast %104 : vector<1x32xf32> to vector<8x32xf32>
    %106 = arith.addf %103, %105 : vector<8x32xf32>
    %107 = arith.addf %106, %81 : vector<8x32xf32>
    %c0_48 = arith.constant 0 : index
    %c0_49 = arith.constant 0 : index
    %108 = vector.load %arg13[%c0_48, %c0_49] : memref<1x32xf32, #tpu.memory_space<vmem>>, vector<1x32xf32>
    %c0_50 = arith.constant 0 : index
    %c0_51 = arith.constant 0 : index
    %109 = vector.load %arg14[%c0_50, %c0_51] : memref<1x32xf32, #tpu.memory_space<vmem>>, vector<1x32xf32>
    %cst_52 = arith.constant dense<0.000000e+00> : vector<8xf32>
    %110 = vector.multi_reduction <add>, %107, %cst_52 [1] : vector<8x32xf32> to vector<8xf32>
    %111 = vector.shape_cast %110 : vector<8xf32> to vector<8x1xf32>
    %cst_53 = arith.constant 3.200000e+01 : f32
    %112 = vector.broadcast %cst_53 : f32 to vector<8x1xf32>
    %113 = arith.divf %111, %112 : vector<8x1xf32>
    %114 = vector.broadcast %113 : vector<8x1xf32> to vector<8x32xf32>
    %115 = arith.subf %107, %114 : vector<8x32xf32>
    %116 = arith.mulf %115, %115 : vector<8x32xf32>
    %cst_54 = arith.constant dense<0.000000e+00> : vector<8xf32>
    %117 = vector.multi_reduction <add>, %116, %cst_54 [1] : vector<8x32xf32> to vector<8xf32>
    %118 = vector.shape_cast %117 : vector<8xf32> to vector<8x1xf32>
    %cst_55 = arith.constant 3.200000e+01 : f32
    %119 = vector.broadcast %cst_55 : f32 to vector<8x1xf32>
    %120 = arith.divf %118, %119 : vector<8x1xf32>
    %121 = vector.broadcast %113 : vector<8x1xf32> to vector<8x32xf32>
    %122 = arith.subf %107, %121 : vector<8x32xf32>
    %cst_56 = arith.constant 9.99999974E-6 : f32
    %123 = vector.broadcast %cst_56 : f32 to vector<8x1xf32>
    %124 = arith.addf %120, %123 : vector<8x1xf32>
    %125 = math.rsqrt %124 : vector<8x1xf32>
    %126 = vector.broadcast %125 : vector<8x1xf32> to vector<8x32xf32>
    %127 = arith.mulf %122, %126 : vector<8x32xf32>
    %128 = vector.broadcast %108 : vector<1x32xf32> to vector<8x32xf32>
    %129 = arith.mulf %127, %128 : vector<8x32xf32>
    %130 = vector.broadcast %109 : vector<1x32xf32> to vector<8x32xf32>
    %131 = arith.addf %129, %130 : vector<8x32xf32>
    %c0_57 = arith.constant 0 : index
    %c0_58 = arith.constant 0 : index
    %132 = vector.load %arg15[%c0_57, %c0_58] : memref<8x32xf32, #tpu.memory_space<vmem>>, vector<8x32xf32>
    tpu.vector_store %arg15[%c0_57, %c0_58], %131 {strides = array<i32>} : memref<8x32xf32, #tpu.memory_space<vmem>>, vector<8x32xf32>,
    return
  }
  func.func @transform_0(%arg0: i32) -> (i32, i32) {
    %c0_i32 = arith.constant 0 : i32
    %c0_i32_0 = arith.constant 0 : i32
    return %arg0, %c0_i32 : i32, i32
  }
  func.func @transform_1(%arg0: i32) -> (i32, i32, i32) {
    %c0_i32 = arith.constant 0 : i32
    %c0_i32_0 = arith.constant 0 : i32
    %c0_i32_1 = arith.constant 0 : i32
    return %arg0, %c0_i32, %c0_i32_0 : i32, i32, i32
  }
  func.func @transform_2(%arg0: i32) -> (i32, i32) {
    %c0_i32 = arith.constant 0 : i32
    %c0_i32_0 = arith.constant 0 : i32
    %c0_i32_1 = arith.constant 0 : i32
    return %c0_i32, %c0_i32_0 : i32, i32
  }
  func.func @transform_3(%arg0: i32) -> (i32, i32) {
    %c0_i32 = arith.constant 0 : i32
    %c0_i32_0 = arith.constant 0 : i32
    %c0_i32_1 = arith.constant 0 : i32
    return %c0_i32, %c0_i32_0 : i32, i32
  }
  func.func @transform_4(%arg0: i32) -> (i32, i32) {
    %c0_i32 = arith.constant 0 : i32
    %c0_i32_0 = arith.constant 0 : i32
    %c0_i32_1 = arith.constant 0 : i32
    return %c0_i32, %c0_i32_0 : i32, i32
  }
  func.func @transform_5(%arg0: i32) -> (i32, i32) {
    %c0_i32 = arith.constant 0 : i32
    %c0_i32_0 = arith.constant 0 : i32
    %c0_i32_1 = arith.constant 0 : i32
    return %c0_i32, %c0_i32_0 : i32, i32
  }
  func.func @transform_6(%arg0: i32) -> (i32, i32) {
    %c0_i32 = arith.constant 0 : i32
    %c0_i32_0 = arith.constant 0 : i32
    %c0_i32_1 = arith.constant 0 : i32
    return %c0_i32, %c0_i32_0 : i32, i32
  }
  func.func @transform_7(%arg0: i32) -> (i32, i32) {
    %c0_i32 = arith.constant 0 : i32
    %c0_i32_0 = arith.constant 0 : i32
    %c0_i32_1 = arith.constant 0 : i32
    return %c0_i32, %c0_i32_0 : i32, i32
  }
  func.func @transform_8(%arg0: i32) -> (i32, i32) {
    %c0_i32 = arith.constant 0 : i32
    %c0_i32_0 = arith.constant 0 : i32
    %c0_i32_1 = arith.constant 0 : i32
    return %c0_i32, %c0_i32_0 : i32, i32
  }
  func.func @transform_9(%arg0: i32) -> (i32, i32) {
    %c0_i32 = arith.constant 0 : i32
    %c0_i32_0 = arith.constant 0 : i32
    %c0_i32_1 = arith.constant 0 : i32
    return %c0_i32, %c0_i32_0 : i32, i32
  }
  func.func @transform_10(%arg0: i32) -> (i32, i32) {
    %c0_i32 = arith.constant 0 : i32
    %c0_i32_0 = arith.constant 0 : i32
    %c0_i32_1 = arith.constant 0 : i32
    return %c0_i32, %c0_i32_0 : i32, i32
  }
  func.func @transform_11(%arg0: i32) -> (i32, i32) {
    %c0_i32 = arith.constant 0 : i32
    %c0_i32_0 = arith.constant 0 : i32
    %c0_i32_1 = arith.constant 0 : i32
    return %c0_i32, %c0_i32_0 : i32, i32
  }
  func.func @transform_12(%arg0: i32) -> (i32, i32) {
    %c0_i32 = arith.constant 0 : i32
    %c0_i32_0 = arith.constant 0 : i32
    %c0_i32_1 = arith.constant 0 : i32
    return %c0_i32, %c0_i32_0 : i32, i32
  }
  func.func @transform_13(%arg0: i32) -> (i32, i32) {
    %c0_i32 = arith.constant 0 : i32
    %c0_i32_0 = arith.constant 0 : i32
    %c0_i32_1 = arith.constant 0 : i32
    return %c0_i32, %c0_i32_0 : i32, i32
  }
  func.func @transform_14(%arg0: i32) -> (i32, i32) {
    %c0_i32 = arith.constant 0 : i32
    %c0_i32_0 = arith.constant 0 : i32
    return %arg0, %c0_i32 : i32, i32
  }
}

module attributes {stable_mosaic.version = 11 : i64} {
  func.func @_layer_kernel(%arg0: i32, %arg1: memref<8x32xf32, #tpu.memory_space<vmem>>, %arg2: memref<1x1x8xf32, #tpu.memory_space<vmem>>, %arg3: memref<32x96xbf16, #tpu.memory_space<vmem>>, %arg4: memref<1x96xf32, #tpu.memory_space<vmem>>, %arg5: memref<32x32xbf16, #tpu.memory_space<vmem>>, %arg6: memref<1x32xf32, #tpu.memory_space<vmem>>, %arg7: memref<1x32xf32, #tpu.memory_space<vmem>>, %arg8: memref<1x32xf32, #tpu.memory_space<vmem>>, %arg9: memref<32x64xbf16, #tpu.memory_space<vmem>>, %arg10: memref<1x64xf32, #tpu.memory_space<vmem>>, %arg11: memref<64x32xbf16, #tpu.memory_space<vmem>>, %arg12: memref<1x32xf32, #tpu.memory_space<vmem>>, %arg13: memref<1x32xf32, #tpu.memory_space<vmem>>, %arg14: memref<1x32xf32, #tpu.memory_space<vmem>>, %arg15: memref<8x32xf32, #tpu.memory_space<vmem>>) attributes {dimension_semantics = [#tpu.dimension_semantics<parallel>], iteration_bounds = array<i64: 2>, scalar_prefetch = 0 : i64, scratch_operands = 0 : i64, tpu.core_type = #tpu.core_type<tc>, window_params = [{transform_indices = @transform_0, window_bounds = array<i64: 8, 32>}, {transform_indices = @transform_1, window_bounds = array<i64: 1, 1, 8>}, {pipeline_mode = #tpu.pipeline_mode<synchronous>, transform_indices = @transform_2, window_bounds = array<i64: 32, 96>}, {pipeline_mode = #tpu.pipeline_mode<synchronous>, transform_indices = @transform_3, window_bounds = array<i64: 1, 96>}, {pipeline_mode = #tpu.pipeline_mode<synchronous>, transform_indices = @transform_4, window_bounds = array<i64: 32, 32>}, {pipeline_mode = #tpu.pipeline_mode<synchronous>, transform_indices = @transform_5, window_bounds = array<i64: 1, 32>}, {pipeline_mode = #tpu.pipeline_mode<synchronous>, transform_indices = @transform_6, window_bounds = array<i64: 1, 32>}, {pipeline_mode = #tpu.pipeline_mode<synchronous>, transform_indices = @transform_7, window_bounds = array<i64: 1, 32>}, {pipeline_mode = #tpu.pipeline_mode<synchronous>, transform_indices = @transform_8, window_bounds = array<i64: 32, 64>}, {pipeline_mode = #tpu.pipeline_mode<synchronous>, transform_indices = @transform_9, window_bounds = array<i64: 1, 64>}, {pipeline_mode = #tpu.pipeline_mode<synchronous>, transform_indices = @transform_10, window_bounds = array<i64: 64, 32>}, {pipeline_mode = #tpu.pipeline_mode<synchronous>, transform_indices = @transform_11, window_bounds = array<i64: 1, 32>}, {pipeline_mode = #tpu.pipeline_mode<synchronous>, transform_indices = @transform_12, window_bounds = array<i64: 1, 32>}, {pipeline_mode = #tpu.pipeline_mode<synchronous>, transform_indices = @transform_13, window_bounds = array<i64: 1, 32>}, {transform_indices = @transform_14, window_bounds = array<i64: 8, 32>}]} {
    %c0 = arith.constant 0 : index
    %c0_0 = arith.constant 0 : index
    %0 = vector.load %arg1[%c0, %c0_0] : memref<8x32xf32, #tpu.memory_space<vmem>>, vector<8x32xf32>
    %1 = arith.truncf %0 : vector<8x32xf32> to vector<8x32xbf16>
    %c0_1 = arith.constant 0 : index
    %c0_2 = arith.constant 0 : index
    %2 = vector.load %arg3[%c0_1, %c0_2] : memref<32x96xbf16, #tpu.memory_space<vmem>>, vector<32x96xbf16>
    %cst = arith.constant dense<0.000000e+00> : vector<8x96xf32>
    %3 = tpu.matmul %1, %2, %cst {dimension_numbers = #tpu.dot_dimension_numbers<[1], [0], [0], [1], [0, 0, 1, 1], [], []>} : vector<8x32xbf16>, vector<32x96xbf16>, vector<8x96xf32> -> vector<8x96xf32>
    %c0_3 = arith.constant 0 : index
    %c0_4 = arith.constant 0 : index
    %4 = vector.load %arg4[%c0_3, %c0_4] : memref<1x96xf32, #tpu.memory_space<vmem>>, vector<1x96xf32>
    %5 = vector.broadcast %4 : vector<1x96xf32> to vector<8x96xf32>
    %6 = arith.addf %3, %5 : vector<8x96xf32>
    %c0_5 = arith.constant 0 : index
    %c0_6 = arith.constant 0 : index
    %c0_7 = arith.constant 0 : index
    %7 = vector.load %arg2[%c0_5, %c0_6, %c0_7] : memref<1x1x8xf32, #tpu.memory_space<vmem>>, vector<1x1x8xf32>
    %8 = vector.shape_cast %7 : vector<1x1x8xf32> to vector<1x8xf32>
    %9 = vector.extract_strided_slice %6 {offsets = [0, 0], sizes = [8, 16], strides = [1, 1]} : vector<8x96xf32> to vector<8x16xf32>
    %10 = vector.extract_strided_slice %6 {offsets = [0, 32], sizes = [8, 16], strides = [1, 1]} : vector<8x96xf32> to vector<8x16xf32>
    %11 = vector.extract_strided_slice %6 {offsets = [0, 64], sizes = [8, 16], strides = [1, 1]} : vector<8x96xf32> to vector<8x16xf32>
    %cst_8 = arith.constant dense<0.000000e+00> : vector<8x8xf32>
    %12 = tpu.matmul %9, %10, %cst_8 {dimension_numbers = #tpu.dot_dimension_numbers<[1], [1], [0], [0], [0, 0, 1, 0], [], []>} : vector<8x16xf32>, vector<8x16xf32>, vector<8x8xf32> -> vector<8x8xf32>
    %cst_9 = arith.constant 2.500000e-01 : f32
    %13 = vector.broadcast %cst_9 : f32 to vector<8x8xf32>
    %14 = arith.mulf %12, %13 : vector<8x8xf32>
    %15 = vector.broadcast %8 : vector<1x8xf32> to vector<8x8xf32>
    %16 = arith.addf %14, %15 : vector<8x8xf32>
    %cst_10 = arith.constant dense<0xFF800000> : vector<8xf32>
    %17 = vector.multi_reduction <maximumf>, %16, %cst_10 [1] : vector<8x8xf32> to vector<8xf32>
    %18 = vector.shape_cast %17 : vector<8xf32> to vector<8x1xf32>
    %19 = vector.broadcast %18 : vector<8x1xf32> to vector<8x8xf32>
    %20 = arith.subf %16, %19 : vector<8x8xf32>
    %21 = math.exp %20 : vector<8x8xf32>
    %cst_11 = arith.constant dense<0.000000e+00> : vector<8xf32>
    %22 = vector.multi_reduction <add>, %21, %cst_11 [1] : vector<8x8xf32> to vector<8xf32>
    %23 = vector.shape_cast %22 : vector<8xf32> to vector<8x1xf32>
    %24 = tpu.reciprocal %23 {approx = true} : vector<8x1xf32> -> vector<8x1xf32>
    %25 = vector.broadcast %24 : vector<8x1xf32> to vector<8x8xf32>
    %26 = arith.mulf %21, %25 : vector<8x8xf32>
    %cst_12 = arith.constant dense<0.000000e+00> : vector<8x16xf32>
    %27 = tpu.matmul %26, %11, %cst_12 {dimension_numbers = #tpu.dot_dimension_numbers<[1], [0], [0], [1], [0, 0, 1, 1], [], []>} : vector<8x8xf32>, vector<8x16xf32>, vector<8x16xf32> -> vector<8x16xf32>
    %28 = arith.truncf %27 : vector<8x16xf32> to vector<8x16xbf16>
    %c0_13 = arith.constant 0 : index
    %c0_14 = arith.constant 0 : index
    %29 = vector.load %arg5[%c0_13, %c0_14] : memref<32x32xbf16, #tpu.memory_space<vmem>>, vector<16x32xbf16>
    %cst_15 = arith.constant dense<0.000000e+00> : vector<8x32xf32>
    %30 = tpu.matmul %28, %29, %cst_15 {dimension_numbers = #tpu.dot_dimension_numbers<[1], [0], [0], [1], [0, 0, 1, 1], [], []>} : vector<8x16xbf16>, vector<16x32xbf16>, vector<8x32xf32> -> vector<8x32xf32>
    %31 = vector.extract_strided_slice %6 {offsets = [0, 16], sizes = [8, 16], strides = [1, 1]} : vector<8x96xf32> to vector<8x16xf32>
    %32 = vector.extract_strided_slice %6 {offsets = [0, 48], sizes = [8, 16], strides = [1, 1]} : vector<8x96xf32> to vector<8x16xf32>
    %33 = vector.extract_strided_slice %6 {offsets = [0, 80], sizes = [8, 16], strides = [1, 1]} : vector<8x96xf32> to vector<8x16xf32>
    %cst_16 = arith.constant dense<0.000000e+00> : vector<8x8xf32>
    %34 = tpu.matmul %31, %32, %cst_16 {dimension_numbers = #tpu.dot_dimension_numbers<[1], [1], [0], [0], [0, 0, 1, 0], [], []>} : vector<8x16xf32>, vector<8x16xf32>, vector<8x8xf32> -> vector<8x8xf32>
    %cst_17 = arith.constant 2.500000e-01 : f32
    %35 = vector.broadcast %cst_17 : f32 to vector<8x8xf32>
    %36 = arith.mulf %34, %35 : vector<8x8xf32>
    %37 = vector.broadcast %8 : vector<1x8xf32> to vector<8x8xf32>
    %38 = arith.addf %36, %37 : vector<8x8xf32>
    %cst_18 = arith.constant dense<0xFF800000> : vector<8xf32>
    %39 = vector.multi_reduction <maximumf>, %38, %cst_18 [1] : vector<8x8xf32> to vector<8xf32>
    %40 = vector.shape_cast %39 : vector<8xf32> to vector<8x1xf32>
    %41 = vector.broadcast %40 : vector<8x1xf32> to vector<8x8xf32>
    %42 = arith.subf %38, %41 : vector<8x8xf32>
    %43 = math.exp %42 : vector<8x8xf32>
    %cst_19 = arith.constant dense<0.000000e+00> : vector<8xf32>
    %44 = vector.multi_reduction <add>, %43, %cst_19 [1] : vector<8x8xf32> to vector<8xf32>
    %45 = vector.shape_cast %44 : vector<8xf32> to vector<8x1xf32>
    %46 = tpu.reciprocal %45 {approx = true} : vector<8x1xf32> -> vector<8x1xf32>
    %47 = vector.broadcast %46 : vector<8x1xf32> to vector<8x8xf32>
    %48 = arith.mulf %43, %47 : vector<8x8xf32>
    %cst_20 = arith.constant dense<0.000000e+00> : vector<8x16xf32>
    %49 = tpu.matmul %48, %33, %cst_20 {dimension_numbers = #tpu.dot_dimension_numbers<[1], [0], [0], [1], [0, 0, 1, 1], [], []>} : vector<8x8xf32>, vector<8x16xf32>, vector<8x16xf32> -> vector<8x16xf32>
    %50 = arith.truncf %49 : vector<8x16xf32> to vector<8x16xbf16>
    %c16 = arith.constant 16 : index
    %c0_21 = arith.constant 0 : index
    %51 = vector.load %arg5[%c16, %c0_21] : memref<32x32xbf16, #tpu.memory_space<vmem>>, vector<16x32xbf16>
    %cst_22 = arith.constant dense<0.000000e+00> : vector<8x32xf32>
    %52 = tpu.matmul %50, %51, %cst_22 {dimension_numbers = #tpu.dot_dimension_numbers<[1], [0], [0], [1], [0, 0, 1, 1], [], []>} : vector<8x16xbf16>, vector<16x32xbf16>, vector<8x32xf32> -> vector<8x32xf32>
    %53 = arith.addf %30, %52 : vector<8x32xf32>
    %c0_23 = arith.constant 0 : index
    %c0_24 = arith.constant 0 : index
    %54 = vector.load %arg6[%c0_23, %c0_24] : memref<1x32xf32, #tpu.memory_space<vmem>>, vector<1x32xf32>
    %55 = vector.broadcast %54 : vector<1x32xf32> to vector<8x32xf32>
    %56 = arith.addf %53, %55 : vector<8x32xf32>
    %57 = arith.addf %56, %0 : vector<8x32xf32>
    %c0_25 = arith.constant 0 : index
    %c0_26 = arith.constant 0 : index
    %58 = vector.load %arg7[%c0_25, %c0_26] : memref<1x32xf32, #tpu.memory_space<vmem>>, vector<1x32xf32>
    %c0_27 = arith.constant 0 : index
    %c0_28 = arith.constant 0 : index
    %59 = vector.load %arg8[%c0_27, %c0_28] : memref<1x32xf32, #tpu.memory_space<vmem>>, vector<1x32xf32>
    %cst_29 = arith.constant dense<0.000000e+00> : vector<8xf32>
    %60 = vector.multi_reduction <add>, %57, %cst_29 [1] : vector<8x32xf32> to vector<8xf32>
    %61 = vector.shape_cast %60 : vector<8xf32> to vector<8x1xf32>
    %cst_30 = arith.constant 3.200000e+01 : f32
    %62 = vector.broadcast %cst_30 : f32 to vector<8x1xf32>
    %63 = arith.divf %61, %62 : vector<8x1xf32>
    %64 = vector.broadcast %63 : vector<8x1xf32> to vector<8x32xf32>
    %65 = arith.subf %57, %64 : vector<8x32xf32>
    %66 = arith.mulf %65, %65 : vector<8x32xf32>
    %cst_31 = arith.constant dense<0.000000e+00> : vector<8xf32>
    %67 = vector.multi_reduction <add>, %66, %cst_31 [1] : vector<8x32xf32> to vector<8xf32>
    %68 = vector.shape_cast %67 : vector<8xf32> to vector<8x1xf32>
    %cst_32 = arith.constant 3.200000e+01 : f32
    %69 = vector.broadcast %cst_32 : f32 to vector<8x1xf32>
    %70 = arith.divf %68, %69 : vector<8x1xf32>
    %71 = vector.broadcast %63 : vector<8x1xf32> to vector<8x32xf32>
    %72 = arith.subf %57, %71 : vector<8x32xf32>
    %cst_33 = arith.constant 9.99999974E-6 : f32
    %73 = vector.broadcast %cst_33 : f32 to vector<8x1xf32>
    %74 = arith.addf %70, %73 : vector<8x1xf32>
    %75 = math.rsqrt %74 : vector<8x1xf32>
    %76 = vector.broadcast %75 : vector<8x1xf32> to vector<8x32xf32>
    %77 = arith.mulf %72, %76 : vector<8x32xf32>
    %78 = vector.broadcast %58 : vector<1x32xf32> to vector<8x32xf32>
    %79 = arith.mulf %77, %78 : vector<8x32xf32>
    %80 = vector.broadcast %59 : vector<1x32xf32> to vector<8x32xf32>
    %81 = arith.addf %79, %80 : vector<8x32xf32>
    %82 = arith.truncf %81 : vector<8x32xf32> to vector<8x32xbf16>
    %c0_34 = arith.constant 0 : index
    %c0_35 = arith.constant 0 : index
    %83 = vector.load %arg9[%c0_34, %c0_35] : memref<32x64xbf16, #tpu.memory_space<vmem>>, vector<32x64xbf16>
    %cst_36 = arith.constant dense<0.000000e+00> : vector<8x64xf32>
    %84 = tpu.matmul %82, %83, %cst_36 {dimension_numbers = #tpu.dot_dimension_numbers<[1], [0], [0], [1], [0, 0, 1, 1], [], []>} : vector<8x32xbf16>, vector<32x64xbf16>, vector<8x64xf32> -> vector<8x64xf32>
    %c0_37 = arith.constant 0 : index
    %c0_38 = arith.constant 0 : index
    %85 = vector.load %arg10[%c0_37, %c0_38] : memref<1x64xf32, #tpu.memory_space<vmem>>, vector<1x64xf32>
    %86 = vector.broadcast %85 : vector<1x64xf32> to vector<8x64xf32>
    %87 = arith.addf %84, %86 : vector<8x64xf32>
    %cst_39 = arith.constant 5.000000e-01 : f32
    %88 = vector.broadcast %cst_39 : f32 to vector<8x64xf32>
    %89 = arith.mulf %88, %87 : vector<8x64xf32>
    %cst_40 = arith.constant 4.471500e-02 : f32
    %90 = vector.broadcast %cst_40 : f32 to vector<8x64xf32>
    %91 = arith.mulf %90, %87 : vector<8x64xf32>
    %92 = arith.mulf %91, %87 : vector<8x64xf32>
    %93 = arith.mulf %92, %87 : vector<8x64xf32>
    %94 = arith.addf %87, %93 : vector<8x64xf32>
    %cst_41 = arith.constant 0.797884583 : f32
    %95 = vector.broadcast %cst_41 : f32 to vector<8x64xf32>
    %96 = arith.mulf %95, %94 : vector<8x64xf32>
    %97 = math.tanh %96 : vector<8x64xf32>
    %cst_42 = arith.constant 1.000000e+00 : f32
    %98 = vector.broadcast %cst_42 : f32 to vector<8x64xf32>
    %99 = arith.addf %98, %97 : vector<8x64xf32>
    %100 = arith.mulf %89, %99 : vector<8x64xf32>
    %101 = arith.truncf %100 : vector<8x64xf32> to vector<8x64xbf16>
    %c0_43 = arith.constant 0 : index
    %c0_44 = arith.constant 0 : index
    %102 = vector.load %arg11[%c0_43, %c0_44] : memref<64x32xbf16, #tpu.memory_space<vmem>>, vector<64x32xbf16>
    %cst_45 = arith.constant dense<0.000000e+00> : vector<8x32xf32>
    %103 = tpu.matmul %101, %102, %cst_45 {dimension_numbers = #tpu.dot_dimension_numbers<[1], [0], [0], [1], [0, 0, 1, 1], [], []>} : vector<8x64xbf16>, vector<64x32xbf16>, vector<8x32xf32> -> vector<8x32xf32>
    %c0_46 = arith.constant 0 : index
    %c0_47 = arith.constant 0 : index
    %104 = vector.load %arg12[%c0_46, %c0_47] : memref<1x32xf32, #tpu.memory_space<vmem>>, vector<1x32xf32>
    %105 = vector.broadcast %104 : vector<1x32xf32> to vector<8x32xf32>
    %106 = arith.addf %103, %105 : vector<8x32xf32>
    %107 = arith.addf %106, %81 : vector<8x32xf32>
    %c0_48 = arith.constant 0 : index
    %c0_49 = arith.constant 0 : index
    %108 = vector.load %arg13[%c0_48, %c0_49] : memref<1x32xf32, #tpu.memory_space<vmem>>, vector<1x32xf32>
    %c0_50 = arith.constant 0 : index
    %c0_51 = arith.constant 0 : index
    %109 = vector.load %arg14[%c0_50, %c0_51] : memref<1x32xf32, #tpu.memory_space<vmem>>, vector<1x32xf32>
    %cst_52 = arith.constant dense<0.000000e+00> : vector<8xf32>
    %110 = vector.multi_reduction <add>, %107, %cst_52 [1] : vector<8x32xf32> to vector<8xf32>
    %111 = vector.shape_cast %110 : vector<8xf32> to vector<8x1xf32>
    %cst_53 = arith.constant 3.200000e+01 : f32
    %112 = vector.broadcast %cst_53 : f32 to vector<8x1xf32>
    %113 = arith.divf %111, %112 : vector<8x1xf32>
    %114 = vector.broadcast %113 : vector<8x1xf32> to vector<8x32xf32>
    %115 = arith.subf %107, %114 : vector<8x32xf32>
    %116 = arith.mulf %115, %115 : vector<8x32xf32>
    %cst_54 = arith.constant dense<0.000000e+00> : vector<8xf32>
    %117 = vector.multi_reduction <add>, %116, %cst_54 [1] : vector<8x32xf32> to vector<8xf32>
    %118 = vector.shape_cast %117 : vector<8xf32> to vector<8x1xf32>
    %cst_55 = arith.constant 3.200000e+01 : f32
    %119 = vector.broadcast %cst_55 : f32 to vector<8x1xf32>
    %120 = arith.divf %118, %119 : vector<8x1xf32>
    %121 = vector.broadcast %113 : vector<8x1xf32> to vector<8x32xf32>
    %122 = arith.subf %107, %121 : vector<8x32xf32>
    %cst_56 = arith.constant 9.99999974E-6 : f32
    %123 = vector.broadcast %cst_56 : f32 to vector<8x1xf32>
    %124 = arith.addf %120, %123 : vector<8x1xf32>
    %125 = math.rsqrt %124 : vector<8x1xf32>
    %126 = vector.broadcast %125 : vector<8x1xf32> to vector<8x32xf32>
    %127 = arith.mulf %122, %126 : vector<8x32xf32>
    %128 = vector.broadcast %108 : vector<1x32xf32> to vector<8x32xf32>
    %129 = arith.mulf %127, %128 : vector<8x32xf32>
    %130 = vector.broadcast %109 : vector<1x32xf32> to vector<8x32xf32>
    %131 = arith.addf %129, %130 : vector<8x32xf32>
    %c0_57 = arith.constant 0 : index
    %c0_58 = arith.constant 0 : index
    %132 = vector.load %arg15[%c0_57, %c0_58] : memref<8x32xf32, #tpu.memory_space<vmem>>, vector<8x32xf32>
    tpu.vector_store %arg15[%c0_57, %c0_58], %131 {strides = array<i32>} : memref<8x32xf32, #tpu.memory_space<vmem>>, vector<8x32xf32>,
    return
  }
  func.func @transform_0(%arg0: i32) -> (i32, i32) {
    %c0_i32 = arith.constant 0 : i32
    %c0_i32_0 = arith.constant 0 : i32
    return %arg0, %c0_i32 : i32, i32
  }
  func.func @transform_1(%arg0: i32) -> (i32, i32, i32) {
    %c0_i32 = arith.constant 0 : i32
    %c0_i32_0 = arith.constant 0 : i32
    %c0_i32_1 = arith.constant 0 : i32
    return %arg0, %c0_i32, %c0_i32_0 : i32, i32, i32
  }
  func.func @transform_2(%arg0: i32) -> (i32, i32) {
    %c0_i32 = arith.constant 0 : i32
    %c0_i32_0 = arith.constant 0 : i32
    %c0_i32_1 = arith.constant 0 : i32
    return %c0_i32, %c0_i32_0 : i32, i32
  }
  func.func @transform_3(%arg0: i32) -> (i32, i32) {
    %c0_i32 = arith.constant 0 : i32
    %c0_i32_0 = arith.constant 0 : i32
    %c0_i32_1 = arith.constant 0 : i32
    return %c0_i32, %c0_i32_0 : i32, i32
  }
  func.func @transform_4(%arg0: i32) -> (i32, i32) {
    %c0_i32 = arith.constant 0 : i32
    %c0_i32_0 = arith.constant 0 : i32
    %c0_i32_1 = arith.constant 0 : i32
    return %c0_i32, %c0_i32_0 : i32, i32
  }
  func.func @transform_5(%arg0: i32) -> (i32, i32) {
    %c0_i32 = arith.constant 0 : i32
    %c0_i32_0 = arith.constant 0 : i32
    %c0_i32_1 = arith.constant 0 : i32
    return %c0_i32, %c0_i32_0 : i32, i32
  }
  func.func @transform_6(%arg0: i32) -> (i32, i32) {
    %c0_i32 = arith.constant 0 : i32
    %c0_i32_0 = arith.constant 0 : i32
    %c0_i32_1 = arith.constant 0 : i32
    return %c0_i32, %c0_i32_0 : i32, i32
  }
  func.func @transform_7(%arg0: i32) -> (i32, i32) {
    %c0_i32 = arith.constant 0 : i32
    %c0_i32_0 = arith.constant 0 : i32
    %c0_i32_1 = arith.constant 0 : i32
    return %c0_i32, %c0_i32_0 : i32, i32
  }
  func.func @transform_8(%arg0: i32) -> (i32, i32) {
    %c0_i32 = arith.constant 0 : i32
    %c0_i32_0 = arith.constant 0 : i32
    %c0_i32_1 = arith.constant 0 : i32
    return %c0_i32, %c0_i32_0 : i32, i32
  }
  func.func @transform_9(%arg0: i32) -> (i32, i32) {
    %c0_i32 = arith.constant 0 : i32
    %c0_i32_0 = arith.constant 0 : i32
    %c0_i32_1 = arith.constant 0 : i32
    return %c0_i32, %c0_i32_0 : i32, i32
  }
  func.func @transform_10(%arg0: i32) -> (i32, i32) {
    %c0_i32 = arith.constant 0 : i32
    %c0_i32_0 = arith.constant 0 : i32
    %c0_i32_1 = arith.constant 0 : i32
    return %c0_i32, %c0_i32_0 : i32, i32
  }
  func.func @transform_11(%arg0: i32) -> (i32, i32) {
    %c0_i32 = arith.constant 0 : i32
    %c0_i32_0 = arith.constant 0 : i32
    %c0_i32_1 = arith.constant 0 : i32
    return %c0_i32, %c0_i32_0 : i32, i32
  }
  func.func @transform_12(%arg0: i32) -> (i32, i32) {
    %c0_i32 = arith.constant 0 : i32
    %c0_i32_0 = arith.constant 0 : i32
    %c0_i32_1 = arith.constant 0 : i32
    return %c0_i32, %c0_i32_0 : i32, i32
  }
  func.func @transform_13(%arg0: i32) -> (i32, i32) {
    %c0_i32 = arith.constant 0 : i32
    %c0_i32_0 = arith.constant 0 : i32
    %c0_i32_1 = arith.constant 0 : i32
    return %c0_i32, %c0_i32_0 : i32, i32
  }
  func.func @transform_14(%arg0: i32) -> (i32, i32) {
    %c0_i32 = arith.constant 0 : i32
    %c0_i32_0 = arith.constant 0 : i32
    return %arg0, %c0_i32 : i32, i32
  }
}

</mosaic_0001>

<llo_original>
// kernel: roberta_forward.3
$region0: #{roberta_forward.3}
  #allocation0 [shape = 'u32[]', space=smem, size = 0x4, offset = 0x4, fixed_abs, tag = 'smem constant byte address 0x4 - core index']
  #allocation1 [shape = 'u32[144,128]{1,0:T(1,128)}', space=vmem, size = 0x12000, scoped, tag = 'internal scratch']
  %s0 = inlined_call_operand.vmem [shape: f32[16,32], index: 0, kind: input, shape index: {}]
  %s1 = inlined_call_operand.vmem [shape: f32[1,32], index: 1, kind: input, shape index: {}]
  %s2 = inlined_call_operand.vmem [shape: f32[1,32], index: 2, kind: input, shape index: {}]
  %s3 = inlined_call_operand.vmem [shape: f32[16,32], index: 3, kind: output, shape index: {}]
  %s4 = sld [smem:[#allocation0]]
  $region45: #{roberta_forward.3} parent=0
    _
  %s6 = ssub.s32 1, %s4
  %s7 = scalar_select 0, %s6, %s4
  loop: start=0, step=1, limit=4
  $region2: #{roberta_forward.3} parent=0 // loop_pre_header
    _
  $region3: #{roberta_forward.3} parent=0 // loop_header
    %s9 = sphi 0, %s13
    %p10 = scmp.ge.s32.totalorder %s9, 4
    %s19 = sphi 0, %s21
    %s22 = sphi 0, %s19
    %s23 = sphi 0, %s22
    %s39 = sphi 0, %s23
    %s43 = sphi 0, %s43
    %s45 = sphi 0, %s43
    %s46 = sphi 0, %s45
    %s60 = sphi 0, %s46
    %s64 = sphi 0, %s64
    %s66 = sphi 0, %s64
    %s67 = sphi 0, %s66
    %s81 = sphi 0, %s67
    %s87 = sphi 0, %s89
    %s90 = sphi 0, %s87
    %s91 = sphi 0, %s90
    %s107 = sphi 0, %s91
  $region4: #{roberta_forward.3} parent=0 // loop_header_branch
    %12 = sbr.rel (%p10) target = $region8
  $region5: #{roberta_forward.3} parent=0 // loop_body
    %s14 = ssub.s32 %s9, 1
    %s15 = ssub.s32 %s9, 2
    %s16 = sadd.s32 %s9, 1
    %s17 = ssub.s32 %s9, %s16
    %p18 = scmp.eq.s32.totalorder %s17, 0
    %s20 = sadd.s32 %s19, 1
    %s21 = scalar_select %p18, %s19, %s20
    %p24 = pneg %p18
    %p25 = scmp.eq.s32.totalorder %s9, 1
    %p26 = por %p24, %p25
    %p27 = scmp.ne.s32.totalorder %s19, %s22
    %p28 = scmp.eq.s32.totalorder %s9, 0
    %p29 = por %p27, %p28
    %p30 = scmp.ne.s32.totalorder %s19, %s22
    %p31 = scmp.eq.s32.totalorder %s14, 1
    %p32 = por %p30, %p31
    %p33 = scmp.ne.s32.totalorder %s22, %s23
    %p34 = scmp.eq.s32.totalorder %s14, 0
    %p35 = por %p33, %p34
    %p36 = scmp.ne.s32.totalorder %s22, %s23
    %p37 = scmp.eq.s32.totalorder %s15, 1
    %p38 = por %p36, %p37
    %p40 = scmp.ne.s32.totalorder %s23, %s39
    %p41 = scmp.eq.s32.totalorder %s15, 0
    %p42 = por %p40, %p41
    %s44 = sadd.s32 %s43, 1
    %p47 = scmp.eq.s32.totalorder %s9, 1
    %p48 = scmp.ne.s32.totalorder %s43, %s45
    %p49 = scmp.eq.s32.totalorder %s9, 0
    %p50 = por %p48, %p49
    %p51 = scmp.ne.s32.totalorder %s43, %s45
    %p52 = scmp.eq.s32.totalorder %s14, 1
    %p53 = por %p51, %p52
    %p54 = scmp.ne.s32.totalorder %s45, %s46
    %p55 = scmp.eq.s32.totalorder %s14, 0
    %p56 = por %p54, %p55
    %p57 = scmp.ne.s32.totalorder %s45, %s46
    %p58 = scmp.eq.s32.totalorder %s15, 1
    %p59 = por %p57, %p58
    %p61 = scmp.ne.s32.totalorder %s46, %s60
    %p62 = scmp.eq.s32.totalorder %s15, 0
    %p63 = por %p61, %p62
    %s65 = sadd.s32 %s64, 1
    %p68 = scmp.eq.s32.totalorder %s9, 1
    %p69 = scmp.ne.s32.totalorder %s64, %s66
    %p70 = scmp.eq.s32.totalorder %s9, 0
    %p71 = por %p69, %p70
    %p72 = scmp.ne.s32.totalorder %s64, %s66
    %p73 = scmp.eq.s32.totalorder %s14, 1
    %p74 = por %p72, %p73
    %p75 = scmp.ne.s32.totalorder %s66, %s67
    %p76 = scmp.eq.s32.totalorder %s14, 0
    %p77 = por %p75, %p76
    %p78 = scmp.ne.s32.totalorder %s66, %s67
    %p79 = scmp.eq.s32.totalorder %s15, 1
    %p80 = por %p78, %p79
    %p82 = scmp.ne.s32.totalorder %s67, %s81
    %p83 = scmp.eq.s32.totalorder %s15, 0
    %p84 = por %p82, %p83
    %s85 = ssub.s32 %s9, %s16
    %p86 = scmp.eq.s32.totalorder %s85, 0
    %s88 = sadd.s32 %s87, 1
    %s89 = scalar_select %p86, %s87, %s88
    %p92 = pneg %p86
    %p93 = scmp.eq.s32.totalorder %s9, 1
    %p94 = por %p92, %p93
    %p95 = scmp.ne.s32.totalorder %s87, %s90
    %p96 = scmp.eq.s32.totalorder %s9, 0
    %p97 = por %p95, %p96
    %p98 = scmp.ne.s32.totalorder %s87, %s90
    %p99 = scmp.eq.s32.totalorder %s14, 1
    %p100 = por %p98, %p99
    %p101 = scmp.ne.s32.totalorder %s90, %s91
    %p102 = scmp.eq.s32.totalorder %s14, 0
    %p103 = por %p101, %p102
    %p104 = scmp.ne.s32.totalorder %s90, %s91
    %p105 = scmp.eq.s32.totalorder %s15, 1
    %p106 = por %p104, %p105
    %p108 = scmp.ne.s32.totalorder %s91, %s107
    %p109 = scmp.eq.s32.totalorder %s15, 0
    %p110 = por %p108, %p109
    %p111 = scmp.le.s32.totalorder 1, %s9
    %p112 = scmp.lt.s32.totalorder %s9, 3
    %p113 = pnand %p111, %p112
    %p114 = pneg %p113
    // Predicated region
    $region9: #{roberta_forward.3} parent=5 // pred_check
      _
    $region10: #{roberta_forward.3} parent=5 // pred_check_branch
      %116 = sbr.rel (%p113) target = $region12
    $region11: #{roberta_forward.3} parent=5 // pred_region
      %s117 = ssub.s32 %s9, 1
      // Predicated region
      $region13: #{roberta_forward.3} parent=11 // pred_check
        %p118 = pneg %p56
      $region14: #{roberta_forward.3} parent=11 // pred_check_branch
        %120 = sbr.rel (%p118) target = $region16
      $region15: #{roberta_forward.3} parent=11 // pred_region
        _
      $region16: #{roberta_forward.3} parent=11 // pred_fallthru
        _
      // Predicated region
      $region17: #{roberta_forward.3} parent=11 // pred_check
        %p121 = pneg %p77
      $region18: #{roberta_forward.3} parent=11 // pred_check_branch
        %123 = sbr.rel (%p121) target = $region20
      $region19: #{roberta_forward.3} parent=11 // pred_region
        _
      $region20: #{roberta_forward.3} parent=11 // pred_fallthru
        _
    $region12: #{roberta_forward.3} parent=5 // pred_fallthru
      _
    %p124 = scmp.lt.s32.totalorder %s9, 2
    // Predicated region
    $region21: #{roberta_forward.3} parent=5 // pred_check
      %p125 = pneg %p124
    $region22: #{roberta_forward.3} parent=5 // pred_check_branch
      %127 = sbr.rel (%p125) target = $region24
    $region23: #{roberta_forward.3} parent=5 // pred_region
      // Predicated region
      $region25: #{roberta_forward.3} parent=23 // pred_check
        %p128 = pneg %p29
      $region26: #{roberta_forward.3} parent=23 // pred_check_branch
        %130 = sbr.rel (%p128) target = $region28
      $region27: #{roberta_forward.3} parent=23 // pred_region
        %p131 = scmp.lt.s32.totalorder %s9, 1
        %s132 = scalar_select %p131, %s9, 1
        %s133 = smul.addr %s132, 8
        %s134 = scalar_lea.vmem %s0, %s133
      $region28: #{roberta_forward.3} parent=23 // pred_fallthru
        _
    $region24: #{roberta_forward.3} parent=5 // pred_fallthru
      _
    %p135 = scmp.le.s32.totalorder 1, %s9
    %p136 = scmp.lt.s32.totalorder %s9, 3
    %p137 = pnand %p135, %p136
    %p138 = pneg %p137
    // Predicated region
    $region29: #{roberta_forward.3} parent=5 // pred_check
      _
    $region30: #{roberta_forward.3} parent=5 // pred_check_branch
      %140 = sbr.rel (%p137) target = $region32
    $region31: #{roberta_forward.3} parent=5 // pred_region
      %s141 = ssub.s32 %s9, 1
      %p142 = scmp.lt.s32.totalorder %s14, 1
      %s143 = scalar_select %p142, %s14, 1
      %s144 = smul.addr %s143, 8
      %s145 = scalar_lea.vmem %s0, %s144
      %p146 = pneg %p35
      %p147 = pneg %p32
      %p148 = pneg %p56
      %p149 = pneg %p53
      %p150 = pneg %p77
      %p151 = pneg %p74
      %p152 = pneg %p103
      %p153 = pneg %p100
      %p154 = scmp.lt.s32.totalorder %s14, 1
      %s155 = scalar_select %p154, %s14, 1
      %s156 = smul.addr %s155, 8
      %s157 = scalar_lea.vmem %s3, %s156
      %p158 = scmp.lt.s32.totalorder %s14, 1
      %s159 = scalar_select %p158, %s14, 1
      %s160 = smul.addr %s159, 8
      %s161 = scalar_lea.vmem %s0, %s160
      %p162 = scmp.lt.s32.totalorder %s14, 1
      %s163 = scalar_select %p162, %s14, 1
      %s164 = smul.addr %s163, 8
      %s165 = scalar_lea.vmem %s3, %s164
      %v166 = vld [vmem:[%s161] sm:$0xff]
      %vm167 = vcmask 261120
      %v168 = vsel %vm167, %v166, 0.0
      %169 = vadd.xlane.f32.xlu0 %v168
      %v170 = vpop.xlane.xlu0 %169
      %v171 = vrcp.pop 32.0
      %v172 = vmul.f32 %v170, %v171
      %v173 = vsub.f32 %v166, %v172
      %v174 = vmul.f32 %v173, %v173
      %v175 = vsel %vm167, %v174, 0.0
      %176 = vadd.xlane.f32.xlu0 %v175
      %v177 = vpop.xlane.xlu0 %176
      %v178 = vmul.f32 %v177, %v171
      %v179 = vadd.f32 %v178, 1e-05
      %v180 = vrsqrt.pop %v179
      %v181 = vmul.f32 %v173, %v180
      %v182 = vld [vmem:[%s1] sm:$0x1]
      %v184 = vlaneseq
      %v185 = vshrl.u32 %v184, 7
      %v186 = vsub.s32 0, %v185
      %v187 = vrot.slane %v182, %v186
      %v189 = vmul.f32 %v181, %v187
      %v190 = vld [vmem:[%s2] sm:$0x1]
      %v192 = vlaneseq
      %v193 = vshrl.u32 %v192, 7
      %v194 = vsub.s32 0, %v193
      %v195 = vrot.slane %v190, %v194
      %v197 = vadd.f32 %v189, %v195
      %198 = vst.msk [vmem:[%s165] sm:$0xff] %vm167, %v197
      %p199 = scmp.lt.s32.totalorder %s14, 1
      %s200 = scalar_select %p199, %s14, 1
      %s201 = smul.addr %s200, 8
      %s202 = scalar_lea.vmem %s3, %s201
      // Predicated region
      $region33: #{roberta_forward.3} parent=31 // pred_check
        %p203 = pneg %p100
      $region34: #{roberta_forward.3} parent=31 // pred_check_branch
        %205 = sbr.rel (%p203) target = $region36
      $region35: #{roberta_forward.3} parent=31 // pred_region
        _
      $region36: #{roberta_forward.3} parent=31 // pred_fallthru
        _
    $region32: #{roberta_forward.3} parent=5 // pred_fallthru
      _
    %p206 = scmp.le.s32.totalorder 2, %s9
    // Predicated region
    $region37: #{roberta_forward.3} parent=5 // pred_check
      %p207 = pneg %p206
    $region38: #{roberta_forward.3} parent=5 // pred_check_branch
      %209 = sbr.rel (%p207) target = $region40
    $region39: #{roberta_forward.3} parent=5 // pred_region
      %s210 = ssub.s32 %s9, 2
      // Predicated region
      $region41: #{roberta_forward.3} parent=39 // pred_check
        %p211 = pneg %p106
      $region42: #{roberta_forward.3} parent=39 // pred_check_branch
        %213 = sbr.rel (%p211) target = $region44
      $region43: #{roberta_forward.3} parent=39 // pred_region
        %p214 = scmp.lt.s32.totalorder %s15, 1
        %s215 = scalar_select %p214, %s15, 1
        %s216 = smul.addr %s215, 8
        %s217 = scalar_lea.vmem %s3, %s216
      $region44: #{roberta_forward.3} parent=39 // pred_fallthru
        _
    $region40: #{roberta_forward.3} parent=5 // pred_fallthru
      _
  $region6: #{roberta_forward.3} parent=0 // loop_footer
    %s13 = sadd.s32 1, %s9
  $region7: #{roberta_forward.3} parent=0 // loop_footer_branch
    %8 = sbr.rel target = $region3
  $region8: #{roberta_forward.3} parent=0 // loop_exit
    _

// kernel: roberta_forward.4
$region0: #{roberta_forward.4}
  #allocation0 [shape = 'u32[]', space=smem, size = 0x4, offset = 0x4, fixed_abs, tag = 'smem constant byte address 0x4 - core index']
  #allocation1 [shape = 'u32[144,128]{1,0:T(1,128)}', space=vmem, size = 0x12000, scoped, tag = 'internal scratch']
  %s0 = inlined_call_operand.vmem [shape: f32[16,32], index: 0, kind: input, shape index: {}]
  %s1 = inlined_call_operand.vmem [shape: f32[2,1,8], index: 1, kind: input, shape index: {}]
  %s2 = inlined_call_operand.vmem [shape: bf16[32,96], index: 2, kind: input, shape index: {}]
  %s3 = inlined_call_operand.vmem [shape: f32[1,96], index: 3, kind: input, shape index: {}]
  %s4 = inlined_call_operand.vmem [shape: bf16[32,32], index: 4, kind: input, shape index: {}]
  %s5 = inlined_call_operand.vmem [shape: f32[1,32], index: 5, kind: input, shape index: {}]
  %s6 = inlined_call_operand.vmem [shape: f32[1,32], index: 6, kind: input, shape index: {}]
  %s7 = inlined_call_operand.vmem [shape: f32[1,32], index: 7, kind: input, shape index: {}]
  %s8 = inlined_call_operand.vmem [shape: bf16[32,64], index: 8, kind: input, shape index: {}]
  %s9 = inlined_call_operand.vmem [shape: f32[1,64], index: 9, kind: input, shape index: {}]
  %s10 = inlined_call_operand.vmem [shape: bf16[64,32], index: 10, kind: input, shape index: {}]
  %s11 = inlined_call_operand.vmem [shape: f32[1,32], index: 11, kind: input, shape index: {}]
  %s12 = inlined_call_operand.vmem [shape: f32[1,32], index: 12, kind: input, shape index: {}]
  %s13 = inlined_call_operand.vmem [shape: f32[1,32], index: 13, kind: input, shape index: {}]
  %s14 = inlined_call_operand.vmem [shape: f32[16,32], index: 14, kind: output, shape index: {}]
  %s15 = sld [smem:[#allocation0]]
  $region89: #{roberta_forward.4} parent=0
    _
  %s17 = ssub.s32 1, %s15
  %s18 = scalar_select 0, %s17, %s15
  loop: start=0, step=1, limit=4
  $region2: #{roberta_forward.4} parent=0 // loop_pre_header
    _
  $region3: #{roberta_forward.4} parent=0 // loop_header
    %s20 = sphi 0, %s24
    %p21 = scmp.ge.s32.totalorder %s20, 4
    %s30 = sphi 0, %s32
    %s33 = sphi 0, %s30
    %s34 = sphi 0, %s33
    %s50 = sphi 0, %s34
    %s56 = sphi 0, %s58
    %s59 = sphi 0, %s56
    %s60 = sphi 0, %s59
    %s76 = sphi 0, %s60
    %s80 = sphi 0, %s80
    %s82 = sphi 0, %s80
    %s83 = sphi 0, %s82
    %s97 = sphi 0, %s83
    %s101 = sphi 0, %s101
    %s103 = sphi 0, %s101
    %s104 = sphi 0, %s103
    %s118 = sphi 0, %s104
    %s122 = sphi 0, %s122
    %s124 = sphi 0, %s122
    %s125 = sphi 0, %s124
    %s139 = sphi 0, %s125
    %s143 = sphi 0, %s143
    %s145 = sphi 0, %s143
    %s146 = sphi 0, %s145
    %s160 = sphi 0, %s146
    %s164 = sphi 0, %s164
    %s166 = sphi 0, %s164
    %s167 = sphi 0, %s166
    %s181 = sphi 0, %s167
    %s185 = sphi 0, %s185
    %s187 = sphi 0, %s185
    %s188 = sphi 0, %s187
    %s202 = sphi 0, %s188
    %s206 = sphi 0, %s206
    %s208 = sphi 0, %s206
    %s209 = sphi 0, %s208
    %s223 = sphi 0, %s209
    %s227 = sphi 0, %s227
    %s229 = sphi 0, %s227
    %s230 = sphi 0, %s229
    %s244 = sphi 0, %s230
    %s248 = sphi 0, %s248
    %s250 = sphi 0, %s248
    %s251 = sphi 0, %s250
    %s265 = sphi 0, %s251
    %s269 = sphi 0, %s269
    %s271 = sphi 0, %s269
    %s272 = sphi 0, %s271
    %s286 = sphi 0, %s272
    %s290 = sphi 0, %s290
    %s292 = sphi 0, %s290
    %s293 = sphi 0, %s292
    %s307 = sphi 0, %s293
    %s311 = sphi 0, %s311
    %s313 = sphi 0, %s311
    %s314 = sphi 0, %s313
    %s328 = sphi 0, %s314
    %s334 = sphi 0, %s336
    %s337 = sphi 0, %s334
    %s338 = sphi 0, %s337
    %s354 = sphi 0, %s338
  $region4: #{roberta_forward.4} parent=0 // loop_header_branch
    %23 = sbr.rel (%p21) target = $region8
  $region5: #{roberta_forward.4} parent=0 // loop_body
    %s25 = ssub.s32 %s20, 1
    %s26 = ssub.s32 %s20, 2
    %s27 = sadd.s32 %s20, 1
    %s28 = ssub.s32 %s20, %s27
    %p29 = scmp.eq.s32.totalorder %s28, 0
    %s31 = sadd.s32 %s30, 1
    %s32 = scalar_select %p29, %s30, %s31
    %p35 = pneg %p29
    %p36 = scmp.eq.s32.totalorder %s20, 1
    %p37 = por %p35, %p36
    %p38 = scmp.ne.s32.totalorder %s30, %s33
    %p39 = scmp.eq.s32.totalorder %s20, 0
    %p40 = por %p38, %p39
    %p41 = scmp.ne.s32.totalorder %s30, %s33
    %p42 = scmp.eq.s32.totalorder %s25, 1
    %p43 = por %p41, %p42
    %p44 = scmp.ne.s32.totalorder %s33, %s34
    %p45 = scmp.eq.s32.totalorder %s25, 0
    %p46 = por %p44, %p45
    %p47 = scmp.ne.s32.totalorder %s33, %s34
    %p48 = scmp.eq.s32.totalorder %s26, 1
    %p49 = por %p47, %p48
    %p51 = scmp.ne.s32.totalorder %s34, %s50
    %p52 = scmp.eq.s32.totalorder %s26, 0
    %p53 = por %p51, %p52
    %s54 = ssub.s32 %s20, %s27
    %p55 = scmp.eq.s32.totalorder %s54, 0
    %s57 = sadd.s32 %s56, 1
    %s58 = scalar_select %p55, %s56, %s57
    %p61 = pneg %p55
    %p62 = scmp.eq.s32.totalorder %s20, 1
    %p63 = por %p61, %p62
    %p64 = scmp.ne.s32.totalorder %s56, %s59
    %p65 = scmp.eq.s32.totalorder %s20, 0
    %p66 = por %p64, %p65
    %p67 = scmp.ne.s32.totalorder %s56, %s59
    %p68 = scmp.eq.s32.totalorder %s25, 1
    %p69 = por %p67, %p68
    %p70 = scmp.ne.s32.totalorder %s59, %s60
    %p71 = scmp.eq.s32.totalorder %s25, 0
    %p72 = por %p70, %p71
    %p73 = scmp.ne.s32.totalorder %s59, %s60
    %p74 = scmp.eq.s32.totalorder %s26, 1
    %p75 = por %p73, %p74
    %p77 = scmp.ne.s32.totalorder %s60, %s76
    %p78 = scmp.eq.s32.totalorder %s26, 0
    %p79 = por %p77, %p78
    %s81 = sadd.s32 %s80, 1
    %p84 = scmp.eq.s32.totalorder %s20, 1
    %p85 = scmp.ne.s32.totalorder %s80, %s82
    %p86 = scmp.eq.s32.totalorder %s20, 0
    %p87 = por %p85, %p86
    %p88 = scmp.ne.s32.totalorder %s80, %s82
    %p89 = scmp.eq.s32.totalorder %s25, 1
    %p90 = por %p88, %p89
    %p91 = scmp.ne.s32.totalorder %s82, %s83
    %p92 = scmp.eq.s32.totalorder %s25, 0
    %p93 = por %p91, %p92
    %p94 = scmp.ne.s32.totalorder %s82, %s83
    %p95 = scmp.eq.s32.totalorder %s26, 1
    %p96 = por %p94, %p95
    %p98 = scmp.ne.s32.totalorder %s83, %s97
    %p99 = scmp.eq.s32.totalorder %s26, 0
    %p100 = por %p98, %p99
    %s102 = sadd.s32 %s101, 1
    %p105 = scmp.eq.s32.totalorder %s20, 1
    %p106 = scmp.ne.s32.totalorder %s101, %s103
    %p107 = scmp.eq.s32.totalorder %s20, 0
    %p108 = por %p106, %p107
    %p109 = scmp.ne.s32.totalorder %s101, %s103
    %p110 = scmp.eq.s32.totalorder %s25, 1
    %p111 = por %p109, %p110
    %p112 = scmp.ne.s32.totalorder %s103, %s104
    %p113 = scmp.eq.s32.totalorder %s25, 0
    %p114 = por %p112, %p113
    %p115 = scmp.ne.s32.totalorder %s103, %s104
    %p116 = scmp.eq.s32.totalorder %s26, 1
    %p117 = por %p115, %p116
    %p119 = scmp.ne.s32.totalorder %s104, %s118
    %p120 = scmp.eq.s32.totalorder %s26, 0
    %p121 = por %p119, %p120
    %s123 = sadd.s32 %s122, 1
    %p126 = scmp.eq.s32.totalorder %s20, 1
    %p127 = scmp.ne.s32.totalorder %s122, %s124
    %p128 = scmp.eq.s32.totalorder %s20, 0
    %p129 = por %p127, %p128
    %p130 = scmp.ne.s32.totalorder %s122, %s124
    %p131 = scmp.eq.s32.totalorder %s25, 1
    %p132 = por %p130, %p131
    %p133 = scmp.ne.s32.totalorder %s124, %s125
    %p134 = scmp.eq.s32.totalorder %s25, 0
    %p135 = por %p133, %p134
    %p136 = scmp.ne.s32.totalorder %s124, %s125
    %p137 = scmp.eq.s32.totalorder %s26, 1
    %p138 = por %p136, %p137
    %p140 = scmp.ne.s32.totalorder %s125, %s139
    %p141 = scmp.eq.s32.totalorder %s26, 0
    %p142 = por %p140, %p141
    %s144 = sadd.s32 %s143, 1
    %p147 = scmp.eq.s32.totalorder %s20, 1
    %p148 = scmp.ne.s32.totalorder %s143, %s145
    %p149 = scmp.eq.s32.totalorder %s20, 0
    %p150 = por %p148, %p149
    %p151 = scmp.ne.s32.totalorder %s143, %s145
    %p152 = scmp.eq.s32.totalorder %s25, 1
    %p153 = por %p151, %p152
    %p154 = scmp.ne.s32.totalorder %s145, %s146
    %p155 = scmp.eq.s32.totalorder %s25, 0
    %p156 = por %p154, %p155
    %p157 = scmp.ne.s32.totalorder %s145, %s146
    %p158 = scmp.eq.s32.totalorder %s26, 1
    %p159 = por %p157, %p158
    %p161 = scmp.ne.s32.totalorder %s146, %s160
    %p162 = scmp.eq.s32.totalorder %s26, 0
    %p163 = por %p161, %p162
    %s165 = sadd.s32 %s164, 1
    %p168 = scmp.eq.s32.totalorder %s20, 1
    %p169 = scmp.ne.s32.totalorder %s164, %s166
    %p170 = scmp.eq.s32.totalorder %s20, 0
    %p171 = por %p169, %p170
    %p172 = scmp.ne.s32.totalorder %s164, %s166
    %p173 = scmp.eq.s32.totalorder %s25, 1
    %p174 = por %p172, %p173
    %p175 = scmp.ne.s32.totalorder %s166, %s167
    %p176 = scmp.eq.s32.totalorder %s25, 0
    %p177 = por %p175, %p176
    %p178 = scmp.ne.s32.totalorder %s166, %s167
    %p179 = scmp.eq.s32.totalorder %s26, 1
    %p180 = por %p178, %p179
    %p182 = scmp.ne.s32.totalorder %s167, %s181
    %p183 = scmp.eq.s32.totalorder %s26, 0
    %p184 = por %p182, %p183
    %s186 = sadd.s32 %s185, 1
    %p189 = scmp.eq.s32.totalorder %s20, 1
    %p190 = scmp.ne.s32.totalorder %s185, %s187
    %p191 = scmp.eq.s32.totalorder %s20, 0
    %p192 = por %p190, %p191
    %p193 = scmp.ne.s32.totalorder %s185, %s187
    %p194 = scmp.eq.s32.totalorder %s25, 1
    %p195 = por %p193, %p194
    %p196 = scmp.ne.s32.totalorder %s187, %s188
    %p197 = scmp.eq.s32.totalorder %s25, 0
    %p198 = por %p196, %p197
    %p199 = scmp.ne.s32.totalorder %s187, %s188
    %p200 = scmp.eq.s32.totalorder %s26, 1
    %p201 = por %p199, %p200
    %p203 = scmp.ne.s32.totalorder %s188, %s202
    %p204 = scmp.eq.s32.totalorder %s26, 0
    %p205 = por %p203, %p204
    %s207 = sadd.s32 %s206, 1
    %p210 = scmp.eq.s32.totalorder %s20, 1
    %p211 = scmp.ne.s32.totalorder %s206, %s208
    %p212 = scmp.eq.s32.totalorder %s20, 0
    %p213 = por %p211, %p212
    %p214 = scmp.ne.s32.totalorder %s206, %s208
    %p215 = scmp.eq.s32.totalorder %s25, 1
    %p216 = por %p214, %p215
    %p217 = scmp.ne.s32.totalorder %s208, %s209
    %p218 = scmp.eq.s32.totalorder %s25, 0
    %p219 = por %p217, %p218
    %p220 = scmp.ne.s32.totalorder %s208, %s209
    %p221 = scmp.eq.s32.totalorder %s26, 1
    %p222 = por %p220, %p221
    %p224 = scmp.ne.s32.totalorder %s209, %s223
    %p225 = scmp.eq.s32.totalorder %s26, 0
    %p226 = por %p224, %p225
    %s228 = sadd.s32 %s227, 1
    %p231 = scmp.eq.s32.totalorder %s20, 1
    %p232 = scmp.ne.s32.totalorder %s227, %s229
    %p233 = scmp.eq.s32.totalorder %s20, 0
    %p234 = por %p232, %p233
    %p235 = scmp.ne.s32.totalorder %s227, %s229
    %p236 = scmp.eq.s32.totalorder %s25, 1
    %p237 = por %p235, %p236
    %p238 = scmp.ne.s32.totalorder %s229, %s230
    %p239 = scmp.eq.s32.totalorder %s25, 0
    %p240 = por %p238, %p239
    %p241 = scmp.ne.s32.totalorder %s229, %s230
    %p242 = scmp.eq.s32.totalorder %s26, 1
    %p243 = por %p241, %p242
    %p245 = scmp.ne.s32.totalorder %s230, %s244
    %p246 = scmp.eq.s32.totalorder %s26, 0
    %p247 = por %p245, %p246
    %s249 = sadd.s32 %s248, 1
    %p252 = scmp.eq.s32.totalorder %s20, 1
    %p253 = scmp.ne.s32.totalorder %s248, %s250
    %p254 = scmp.eq.s32.totalorder %s20, 0
    %p255 = por %p253, %p254
    %p256 = scmp.ne.s32.totalorder %s248, %s250
    %p257 = scmp.eq.s32.totalorder %s25, 1
    %p258 = por %p256, %p257
    %p259 = scmp.ne.s32.totalorder %s250, %s251
    %p260 = scmp.eq.s32.totalorder %s25, 0
    %p261 = por %p259, %p260
    %p262 = scmp.ne.s32.totalorder %s250, %s251
    %p263 = scmp.eq.s32.totalorder %s26, 1
    %p264 = por %p262, %p263
    %p266 = scmp.ne.s32.totalorder %s251, %s265
    %p267 = scmp.eq.s32.totalorder %s26, 0
    %p268 = por %p266, %p267
    %s270 = sadd.s32 %s269, 1
    %p273 = scmp.eq.s32.totalorder %s20, 1
    %p274 = scmp.ne.s32.totalorder %s269, %s271
    %p275 = scmp.eq.s32.totalorder %s20, 0
    %p276 = por %p274, %p275
    %p277 = scmp.ne.s32.totalorder %s269, %s271
    %p278 = scmp.eq.s32.totalorder %s25, 1
    %p279 = por %p277, %p278
    %p280 = scmp.ne.s32.totalorder %s271, %s272
    %p281 = scmp.eq.s32.totalorder %s25, 0
    %p282 = por %p280, %p281
    %p283 = scmp.ne.s32.totalorder %s271, %s272
    %p284 = scmp.eq.s32.totalorder %s26, 1
    %p285 = por %p283, %p284
    %p287 = scmp.ne.s32.totalorder %s272, %s286
    %p288 = scmp.eq.s32.totalorder %s26, 0
    %p289 = por %p287, %p288
    %s291 = sadd.s32 %s290, 1
    %p294 = scmp.eq.s32.totalorder %s20, 1
    %p295 = scmp.ne.s32.totalorder %s290, %s292
    %p296 = scmp.eq.s32.totalorder %s20, 0
    %p297 = por %p295, %p296
    %p298 = scmp.ne.s32.totalorder %s290, %s292
    %p299 = scmp.eq.s32.totalorder %s25, 1
    %p300 = por %p298, %p299
    %p301 = scmp.ne.s32.totalorder %s292, %s293
    %p302 = scmp.eq.s32.totalorder %s25, 0
    %p303 = por %p301, %p302
    %p304 = scmp.ne.s32.totalorder %s292, %s293
    %p305 = scmp.eq.s32.totalorder %s26, 1
    %p306 = por %p304, %p305
    %p308 = scmp.ne.s32.totalorder %s293, %s307
    %p309 = scmp.eq.s32.totalorder %s26, 0
    %p310 = por %p308, %p309
    %s312 = sadd.s32 %s311, 1
    %p315 = scmp.eq.s32.totalorder %s20, 1
    %p316 = scmp.ne.s32.totalorder %s311, %s313
    %p317 = scmp.eq.s32.totalorder %s20, 0
    %p318 = por %p316, %p317
    %p319 = scmp.ne.s32.totalorder %s311, %s313
    %p320 = scmp.eq.s32.totalorder %s25, 1
    %p321 = por %p319, %p320
    %p322 = scmp.ne.s32.totalorder %s313, %s314
    %p323 = scmp.eq.s32.totalorder %s25, 0
    %p324 = por %p322, %p323
    %p325 = scmp.ne.s32.totalorder %s313, %s314
    %p326 = scmp.eq.s32.totalorder %s26, 1
    %p327 = por %p325, %p326
    %p329 = scmp.ne.s32.totalorder %s314, %s328
    %p330 = scmp.eq.s32.totalorder %s26, 0
    %p331 = por %p329, %p330
    %s332 = ssub.s32 %s20, %s27
    %p333 = scmp.eq.s32.totalorder %s332, 0
    %s335 = sadd.s32 %s334, 1
    %s336 = scalar_select %p333, %s334, %s335
    %p339 = pneg %p333
    %p340 = scmp.eq.s32.totalorder %s20, 1
    %p341 = por %p339, %p340
    %p342 = scmp.ne.s32.totalorder %s334, %s337
    %p343 = scmp.eq.s32.totalorder %s20, 0
    %p344 = por %p342, %p343
    %p345 = scmp.ne.s32.totalorder %s334, %s337
    %p346 = scmp.eq.s32.totalorder %s25, 1
    %p347 = por %p345, %p346
    %p348 = scmp.ne.s32.totalorder %s337, %s338
    %p349 = scmp.eq.s32.totalorder %s25, 0
    %p350 = por %p348, %p349
    %p351 = scmp.ne.s32.totalorder %s337, %s338
    %p352 = scmp.eq.s32.totalorder %s26, 1
    %p353 = por %p351, %p352
    %p355 = scmp.ne.s32.totalorder %s338, %s354
    %p356 = scmp.eq.s32.totalorder %s26, 0
    %p357 = por %p355, %p356
    %p358 = scmp.le.s32.totalorder 1, %s20
    %p359 = scmp.lt.s32.totalorder %s20, 3
    %p360 = pnand %p358, %p359
    %p361 = pneg %p360
    // Predicated region
    $region9: #{roberta_forward.4} parent=5 // pred_check
      _
    $region10: #{roberta_forward.4} parent=5 // pred_check_branch
      %363 = sbr.rel (%p360) target = $region12
    $region11: #{roberta_forward.4} parent=5 // pred_region
      %s364 = ssub.s32 %s20, 1
      // Predicated region
      $region13: #{roberta_forward.4} parent=11 // pred_check
        %p365 = pneg %p93
      $region14: #{roberta_forward.4} parent=11 // pred_check_branch
        %367 = sbr.rel (%p365) target = $region16
      $region15: #{roberta_forward.4} parent=11 // pred_region
        _
      $region16: #{roberta_forward.4} parent=11 // pred_fallthru
        _
      // Predicated region
      $region17: #{roberta_forward.4} parent=11 // pred_check
        %p368 = pneg %p114
      $region18: #{roberta_forward.4} parent=11 // pred_check_branch
        %370 = sbr.rel (%p368) target = $region20
      $region19: #{roberta_forward.4} parent=11 // pred_region
        _
      $region20: #{roberta_forward.4} parent=11 // pred_fallthru
        _
      // Predicated region
      $region21: #{roberta_forward.4} parent=11 // pred_check
        %p371 = pneg %p135
      $region22: #{roberta_forward.4} parent=11 // pred_check_branch
        %373 = sbr.rel (%p371) target = $region24
      $region23: #{roberta_forward.4} parent=11 // pred_region
        _
      $region24: #{roberta_forward.4} parent=11 // pred_fallthru
        _
      // Predicated region
      $region25: #{roberta_forward.4} parent=11 // pred_check
        %p374 = pneg %p156
      $region26: #{roberta_forward.4} parent=11 // pred_check_branch
        %376 = sbr.rel (%p374) target = $region28
      $region27: #{roberta_forward.4} parent=11 // pred_region
        _
      $region28: #{roberta_forward.4} parent=11 // pred_fallthru
        _
      // Predicated region
      $region29: #{roberta_forward.4} parent=11 // pred_check
        %p377 = pneg %p177
      $region30: #{roberta_forward.4} parent=11 // pred_check_branch
        %379 = sbr.rel (%p377) target = $region32
      $region31: #{roberta_forward.4} parent=11 // pred_region
        _
      $region32: #{roberta_forward.4} parent=11 // pred_fallthru
        _
      // Predicated region
      $region33: #{roberta_forward.4} parent=11 // pred_check
        %p380 = pneg %p198
      $region34: #{roberta_forward.4} parent=11 // pred_check_branch
        %382 = sbr.rel (%p380) target = $region36
      $region35: #{roberta_forward.4} parent=11 // pred_region
        _
      $region36: #{roberta_forward.4} parent=11 // pred_fallthru
        _
      // Predicated region
      $region37: #{roberta_forward.4} parent=11 // pred_check
        %p383 = pneg %p219
      $region38: #{roberta_forward.4} parent=11 // pred_check_branch
        %385 = sbr.rel (%p383) target = $region40
      $region39: #{roberta_forward.4} parent=11 // pred_region
        _
      $region40: #{roberta_forward.4} parent=11 // pred_fallthru
        _
      // Predicated region
      $region41: #{roberta_forward.4} parent=11 // pred_check
        %p386 = pneg %p240
      $region42: #{roberta_forward.4} parent=11 // pred_check_branch
        %388 = sbr.rel (%p386) target = $region44
      $region43: #{roberta_forward.4} parent=11 // pred_region
        _
      $region44: #{roberta_forward.4} parent=11 // pred_fallthru
        _
      // Predicated region
      $region45: #{roberta_forward.4} parent=11 // pred_check
        %p389 = pneg %p261
      $region46: #{roberta_forward.4} parent=11 // pred_check_branch
        %391 = sbr.rel (%p389) target = $region48
      $region47: #{roberta_forward.4} parent=11 // pred_region
        _
      $region48: #{roberta_forward.4} parent=11 // pred_fallthru
        _
      // Predicated region
      $region49: #{roberta_forward.4} parent=11 // pred_check
        %p392 = pneg %p282
      $region50: #{roberta_forward.4} parent=11 // pred_check_branch
        %394 = sbr.rel (%p392) target = $region52
      $region51: #{roberta_forward.4} parent=11 // pred_region
        _
      $region52: #{roberta_forward.4} parent=11 // pred_fallthru
        _
      // Predicated region
      $region53: #{roberta_forward.4} parent=11 // pred_check
        %p395 = pneg %p303
      $region54: #{roberta_forward.4} parent=11 // pred_check_branch
        %397 = sbr.rel (%p395) target = $region56
      $region55: #{roberta_forward.4} parent=11 // pred_region
        _
      $region56: #{roberta_forward.4} parent=11 // pred_fallthru
        _
      // Predicated region
      $region57: #{roberta_forward.4} parent=11 // pred_check
        %p398 = pneg %p324
      $region58: #{roberta_forward.4} parent=11 // pred_check_branch
        %400 = sbr.rel (%p398) target = $region60
      $region59: #{roberta_forward.4} parent=11 // pred_region
        _
      $region60: #{roberta_forward.4} parent=11 // pred_fallthru
        _
    $region12: #{roberta_forward.4} parent=5 // pred_fallthru
      _
    %p401 = scmp.lt.s32.totalorder %s20, 2
    // Predicated region
    $region61: #{roberta_forward.4} parent=5 // pred_check
      %p402 = pneg %p401
    $region62: #{roberta_forward.4} parent=5 // pred_check_branch
      %404 = sbr.rel (%p402) target = $region64
    $region63: #{roberta_forward.4} parent=5 // pred_region
      // Predicated region
      $region65: #{roberta_forward.4} parent=63 // pred_check
        %p405 = pneg %p40
      $region66: #{roberta_forward.4} parent=63 // pred_check_branch
        %407 = sbr.rel (%p405) target = $region68
      $region67: #{roberta_forward.4} parent=63 // pred_region
        %p408 = scmp.lt.s32.totalorder %s20, 1
        %s409 = scalar_select %p408, %s20, 1
        %s410 = smul.addr %s409, 8
        %s411 = scalar_lea.vmem %s0, %s410
      $region68: #{roberta_forward.4} parent=63 // pred_fallthru
        _
      // Predicated region
      $region69: #{roberta_forward.4} parent=63 // pred_check
        %p412 = pneg %p66
      $region70: #{roberta_forward.4} parent=63 // pred_check_branch
        %414 = sbr.rel (%p412) target = $region72
      $region71: #{roberta_forward.4} parent=63 // pred_region
        %p415 = scmp.lt.s32.totalorder %s20, 1
        %s416 = scalar_select %p415, %s20, 1
        %s417 = scalar_lea.vmem %s1, %s416
      $region72: #{roberta_forward.4} parent=63 // pred_fallthru
        _
    $region64: #{roberta_forward.4} parent=5 // pred_fallthru
      _
    %p418 = scmp.le.s32.totalorder 1, %s20
    %p419 = scmp.lt.s32.totalorder %s20, 3
    %p420 = pnand %p418, %p419
    %p421 = pneg %p420
    // Predicated region
    $region73: #{roberta_forward.4} parent=5 // pred_check
      _
    $region74: #{roberta_forward.4} parent=5 // pred_check_branch
      %423 = sbr.rel (%p420) target = $region76
    $region75: #{roberta_forward.4} parent=5 // pred_region
      %s424 = ssub.s32 %s20, 1
      %p425 = scmp.lt.s32.totalorder %s25, 1
      %s426 = scalar_select %p425, %s25, 1
      %s427 = smul.addr %s426, 8
      %s428 = scalar_lea.vmem %s0, %s427
      %p429 = pneg %p46
      %p430 = pneg %p43
      %p431 = scmp.lt.s32.totalorder %s25, 1
      %s432 = scalar_select %p431, %s25, 1
      %s433 = scalar_lea.vmem %s1, %s432
      %p434 = pneg %p72
      %p435 = pneg %p69
      %p436 = pneg %p93
      %p437 = pneg %p90
      %p438 = pneg %p114
      %p439 = pneg %p111
      %p440 = pneg %p135
      %p441 = pneg %p132
      %p442 = pneg %p156
      %p443 = pneg %p153
      %p444 = pneg %p177
      %p445 = pneg %p174
      %p446 = pneg %p198
      %p447 = pneg %p195
      %p448 = pneg %p219
      %p449 = pneg %p216
      %p450 = pneg %p240
      %p451 = pneg %p237
      %p452 = pneg %p261
      %p453 = pneg %p258
      %p454 = pneg %p282
      %p455 = pneg %p279
      %p456 = pneg %p303
      %p457 = pneg %p300
      %p458 = pneg %p324
      %p459 = pneg %p321
      %p460 = pneg %p350
      %p461 = pneg %p347
      %p462 = scmp.lt.s32.totalorder %s25, 1
      %s463 = scalar_select %p462, %s25, 1
      %s464 = smul.addr %s463, 8
      %s465 = scalar_lea.vmem %s14, %s464
      %p466 = scmp.lt.s32.totalorder %s25, 1
      %s467 = scalar_select %p466, %s25, 1
      %s468 = smul.addr %s467, 8
      %s469 = scalar_lea.vmem %s0, %s468
      %p470 = scmp.lt.s32.totalorder %s25, 1
      %s471 = scalar_select %p470, %s25, 1
      %s472 = scalar_lea.vmem %s1, %s471
      %p473 = scmp.lt.s32.totalorder %s25, 1
      %s474 = scalar_select %p473, %s25, 1
      %s475 = smul.addr %s474, 8
      %s476 = scalar_lea.vmem %s14, %s475
      %v478 = vld [vmem:[%s469] sm:$0xff]
      %v479 = vpack.c.bf16 %v478, %v478
      %v480 = vld [vmem:[%s2] sm:$0xf]
      %v481 = vld [vmem:[%s2 + $0x4] sm:$0xf]
      %v482 = vld [vmem:[%s2 + $0x8] sm:$0xf]
      %v483 = vld [vmem:[%s2 + $0xc] sm:$0xf]
      %v484 = vld [vmem:[%s3] sm:$0x1]
      %v486 = vlaneseq
      %v487 = vshrl.u32 %v486, 7
      %v488 = vsub.s32 0, %v487
      %v489 = vrot.slane %v484, %v488
      %v495 = vunpack.c.l.b16 %v480
      %v496 = vunpack.c.l.b16 %v481
      %v497 = vunpack.c.l.b16 %v482
      %v498 = vunpack.c.l.b16 %v483
      %v499 = vpack.c.b16 %v496, %v495
      %v500 = vpack.c.b16 %v498, %v497
      %vm503 = vcmask 261120
      %v505 = vsel %vm503, %v479, 0
      %507 = vmatprep.subr.bf16.mxu0 0
      %508 = vmatpush1.bf16.msra.mxu0 %v499
      %509 = vmatprep.subr.bf16.mxu0 0
      %510 = vmatpush1.bf16.msra.mxu0 %v500
      %511 = vmatprep.subr.bf16.mxu0 0
      %512 = vmatpush1.bf16.msra.mxu0 0
      %513 = vmatprep.subr.bf16.mxu0 0
      %514 = vmatpush1.bf16.msra.mxu0 0
      %515 = vmatprep.subr.bf16.mxu0 0
      %516 = vmatpush1.bf16.msra.mxu0 0
      %517 = vmatprep.subr.bf16.mxu0 0
      %518 = vmatpush1.bf16.msra.mxu0 0
      %519 = vmatprep.subr.bf16.mxu0 0
      %520 = vmatpush1.bf16.msra.mxu0 0
      %521 = vmatprep.subr.bf16.mxu0 0
      %522 = vmatpush1.bf16.msra.mxu0 0
      %523 = vmatprep.subr.bf16.mxu0 0
      %524 = vmatpush1.bf16.msra.mxu0 0
      %525 = vmatprep.subr.bf16.mxu0 0
      %526 = vmatpush1.bf16.msra.mxu0 0
      %527 = vmatprep.subr.bf16.mxu0 0
      %528 = vmatpush1.bf16.msra.mxu0 0
      %529 = vmatprep.subr.bf16.mxu0 0
      %530 = vmatpush1.bf16.msra.mxu0 0
      %531 = vmatprep.subr.bf16.mxu0 0
      %532 = vmatpush1.bf16.msra.mxu0 0
      %533 = vmatprep.subr.bf16.mxu0 0
      %534 = vmatpush1.bf16.msra.mxu0 0
      %535 = vmatprep.subr.bf16.mxu0 0
      %536 = vmatpush1.bf16.msra.mxu0 0
      %537 = vmatprep.subr.bf16.mxu0 0
      %538 = vmatpush1.bf16.msra.mxu0 0
      %539 = vmatprep.mubr.bf16.mxu0 0
      %540 = vmatmul.mubr.bf16.gmra.mrb[0].mxu0 %v505
      %v541 = vpop.f32.mrb[0].mxu0
      %v542 = vadd.f32 %v489, %v541
      %v543 = vpop.f32.mrb[0].mxu0
      %v544 = vpop.f32.mrb[0].mxu0
      %v545 = vpop.f32.mrb[0].mxu0
      %546 = vdwg.mxu0
      %v547 = vld [vmem:[%s472] sm:$0x1]
      %549 = vrot.lane.b32.xlu0 %v542, 96
      %v550 = vpop.permute.xlu0 %549
      %vm551 = vcmask 130048
      %v552 = vsel %vm551, %v542, 0
      %v554 = vsel %vm551, %v550, 0
      %556 = vmatprep.subr.mxu0 0.0
      %557 = vmatpush1.xpose.msra.mxu0 %v554
      %558 = vmatprep.subr.mxu0 0.0
      %559 = vmatpush1.xpose.msra.mxu0 0.0
      %560 = vmatprep.subr.mxu0 0.0
      %561 = vmatpush1.xpose.msra.mxu0 0.0
      %562 = vmatprep.subr.mxu0 0.0
      %563 = vmatpush1.xpose.msra.mxu0 0.0
      %564 = vmatprep.subr.mxu0 0.0
      %565 = vmatpush1.xpose.msra.mxu0 0.0
      %566 = vmatprep.subr.mxu0 0.0
      %567 = vmatpush1.xpose.msra.mxu0 0.0
      %568 = vmatprep.subr.mxu0 0.0
      %569 = vmatpush1.xpose.msra.mxu0 0.0
      %570 = vmatprep.subr.mxu0 0.0
      %571 = vmatpush1.xpose.msra.mxu0 0.0
      %572 = vmatprep.subr.mxu0 0.0
      %573 = vmatpush1.xpose.msra.mxu0 0.0
      %574 = vmatprep.subr.mxu0 0.0
      %575 = vmatpush1.xpose.msra.mxu0 0.0
      %576 = vmatprep.subr.mxu0 0.0
      %577 = vmatpush1.xpose.msra.mxu0 0.0
      %578 = vmatprep.subr.mxu0 0.0
      %579 = vmatpush1.xpose.msra.mxu0 0.0
      %580 = vmatprep.subr.mxu0 0.0
      %581 = vmatpush1.xpose.msra.mxu0 0.0
      %582 = vmatprep.subr.mxu0 0.0
      %583 = vmatpush1.xpose.msra.mxu0 0.0
      %584 = vmatprep.subr.mxu0 0.0
      %585 = vmatpush1.xpose.msra.mxu0 0.0
      %586 = vmatprep.subr.mxu0 0.0
      %587 = vmatpush1.xpose.msra.mxu0 0.0
      %588 = vmatprep.subr.mxu0 0.0
      %589 = vmatpush1.xpose.msra.mxu0 0.0
      %590 = vmatprep.subr.mxu0 0.0
      %591 = vmatpush1.xpose.msra.mxu0 0.0
      %592 = vmatprep.subr.mxu0 0.0
      %593 = vmatpush1.xpose.msra.mxu0 0.0
      %594 = vmatprep.subr.mxu0 0.0
      %595 = vmatpush1.xpose.msra.mxu0 0.0
      %596 = vmatprep.subr.mxu0 0.0
      %597 = vmatpush1.xpose.msra.mxu0 0.0
      %598 = vmatprep.subr.mxu0 0.0
      %599 = vmatpush1.xpose.msra.mxu0 0.0
      %600 = vmatprep.subr.mxu0 0.0
      %601 = vmatpush1.xpose.msra.mxu0 0.0
      %602 = vmatprep.subr.mxu0 0.0
      %603 = vmatpush1.xpose.msra.mxu0 0.0
      %604 = vmatprep.subr.mxu0 0.0
      %605 = vmatpush1.xpose.msra.mxu0 0.0
      %606 = vmatprep.subr.mxu0 0.0
      %607 = vmatpush1.xpose.msra.mxu0 0.0
      %608 = vmatprep.subr.mxu0 0.0
      %609 = vmatpush1.xpose.msra.mxu0 0.0
      %610 = vmatprep.subr.mxu0 0.0
      %611 = vmatpush1.xpose.msra.mxu0 0.0
      %612 = vmatprep.subr.mxu0 0.0
      %613 = vmatpush1.xpose.msra.mxu0 0.0
      %614 = vmatprep.subr.mxu0 0.0
      %615 = vmatpush1.xpose.msra.mxu0 0.0
      %616 = vmatprep.subr.mxu0 0.0
      %617 = vmatpush1.xpose.msra.mxu0 0.0
      %618 = vmatprep.subr.mxu0 0.0
      %619 = vmatpush1.xpose.msra.mxu0 0.0
      %620 = vmatprep.mubr.f32.mxu0 0.0
      %621 = vmatmul.mubr.f32.gmra.mrb[0].mxu0 %v552
      %v622 = vpop.f32.mrb[0].mxu0
      %v623 = vadd.f32 0.0, %v622
      %v624 = vpop.f32.mrb[0].mxu0
      %625 = vdwg.mxu0
      %v626 = vmul.f32 %v623, 0.25
      %v628 = vlaneseq
      %v629 = vshrl.u32 %v628, 7
      %v630 = vsub.s32 0, %v629
      %v631 = vrot.slane %v547, %v630
      %v633 = vadd.f32 %v626, %v631
      %vm634 = vcmask 64512
      %v635 = vsel %vm634, %v633, -inf
      %636 = vmax.xlane.f32.xlu0 %v635
      %v637 = vpop.xlane.xlu0 %636
      %v638 = vsub.f32 %v633, %v637
      %v639 = vmul.f32 %v638, 1.442695
      %v640 = vpow.pop %v639
      %v641 = vsel %vm634, %v640, 0.0
      %642 = vadd.xlane.f32.xlu0 %v641
      %v643 = vpop.xlane.xlu0 %642
      %v644 = vrcp.pop %v643
      %v645 = vmul.f32 %v640, %v644
      %646 = vrot.lane.b32.xlu0 %v542, 64
      %v647 = vpop.permute.xlu0 %646
      %v650 = vsel %vm634, %v645, 0
      %652 = vmatprep.subr.mxu0 0.0
      %653 = vmatpush1.msra.mxu0 %v647
      %654 = vmatprep.subr.mxu0 0.0
      %655 = vmatpush1.msra.mxu0 0.0
      %656 = vmatprep.subr.mxu0 0.0
      %657 = vmatpush1.msra.mxu0 0.0
      %658 = vmatprep.subr.mxu0 0.0
      %659 = vmatpush1.msra.mxu0 0.0
      %660 = vmatprep.subr.mxu0 0.0
      %661 = vmatpush1.msra.mxu0 0.0
      %662 = vmatprep.subr.mxu0 0.0
      %663 = vmatpush1.msra.mxu0 0.0
      %664 = vmatprep.subr.mxu0 0.0
      %665 = vmatpush1.msra.mxu0 0.0
      %666 = vmatprep.subr.mxu0 0.0
      %667 = vmatpush1.msra.mxu0 0.0
      %668 = vmatprep.subr.mxu0 0.0
      %669 = vmatpush1.msra.mxu0 0.0
      %670 = vmatprep.subr.mxu0 0.0
      %671 = vmatpush1.msra.mxu0 0.0
      %672 = vmatprep.subr.mxu0 0.0
      %673 = vmatpush1.msra.mxu0 0.0
      %674 = vmatprep.subr.mxu0 0.0
      %675 = vmatpush1.msra.mxu0 0.0
      %676 = vmatprep.subr.mxu0 0.0
      %677 = vmatpush1.msra.mxu0 0.0
      %678 = vmatprep.subr.mxu0 0.0
      %679 = vmatpush1.msra.mxu0 0.0
      %680 = vmatprep.subr.mxu0 0.0
      %681 = vmatpush1.msra.mxu0 0.0
      %682 = vmatprep.subr.mxu0 0.0
      %683 = vmatpush1.msra.mxu0 0.0
      %684 = vmatprep.subr.mxu0 0.0
      %685 = vmatpush1.msra.mxu0 0.0
      %686 = vmatprep.subr.mxu0 0.0
      %687 = vmatpush1.msra.mxu0 0.0
      %688 = vmatprep.subr.mxu0 0.0
      %689 = vmatpush1.msra.mxu0 0.0
      %690 = vmatprep.subr.mxu0 0.0
      %691 = vmatpush1.msra.mxu0 0.0
      %692 = vmatprep.subr.mxu0 0.0
      %693 = vmatpush1.msra.mxu0 0.0
      %694 = vmatprep.subr.mxu0 0.0
      %695 = vmatpush1.msra.mxu0 0.0
      %696 = vmatprep.subr.mxu0 0.0
      %697 = vmatpush1.msra.mxu0 0.0
      %698 = vmatprep.subr.mxu0 0.0
      %699 = vmatpush1.msra.mxu0 0.0
      %700 = vmatprep.subr.mxu0 0.0
      %701 = vmatpush1.msra.mxu0 0.0
      %702 = vmatprep.subr.mxu0 0.0
      %703 = vmatpush1.msra.mxu0 0.0
      %704 = vmatprep.subr.mxu0 0.0
      %705 = vmatpush1.msra.mxu0 0.0
      %706 = vmatprep.subr.mxu0 0.0
      %707 = vmatpush1.msra.mxu0 0.0
      %708 = vmatprep.subr.mxu0 0.0
      %709 = vmatpush1.msra.mxu0 0.0
      %710 = vmatprep.subr.mxu0 0.0
      %711 = vmatpush1.msra.mxu0 0.0
      %712 = vmatprep.subr.mxu0 0.0
      %713 = vmatpush1.msra.mxu0 0.0
      %714 = vmatprep.subr.mxu0 0.0
      %715 = vmatpush1.msra.mxu0 0.0
      %716 = vmatprep.mubr.f32.mxu0 0.0
      %717 = vmatmul.mubr.f32.gmra.mrb[0].mxu0 %v650
      %v718 = vpop.f32.mrb[0].mxu0
      %v719 = vadd.f32 0.0, %v718
      %v720 = vpop.f32.mrb[0].mxu0
      %721 = vdwg.mxu0
      %v722 = vpack.c.bf16 %v719, %v719
      %v723 = vld [vmem:[%s4] sm:$0xf]
      %v724 = vld [vmem:[%s4 + $0x4] sm:$0xf]
      %725 = vrot.lane.b32.xlu0 %v542, 112
      %v726 = vpop.permute.xlu0 %725
      %727 = vrot.lane.b32.xlu0 %v542, 80
      %v728 = vpop.permute.xlu0 %727
      %v729 = vsel %vm551, %v726, 0
      %v731 = vsel %vm551, %v728, 0
      %733 = vmatprep.subr.mxu0 0.0
      %734 = vmatpush1.xpose.msra.mxu0 %v731
      %735 = vmatprep.subr.mxu0 0.0
      %736 = vmatpush1.xpose.msra.mxu0 0.0
      %737 = vmatprep.subr.mxu0 0.0
      %738 = vmatpush1.xpose.msra.mxu0 0.0
      %739 = vmatprep.subr.mxu0 0.0
      %740 = vmatpush1.xpose.msra.mxu0 0.0
      %741 = vmatprep.subr.mxu0 0.0
      %742 = vmatpush1.xpose.msra.mxu0 0.0
      %743 = vmatprep.subr.mxu0 0.0
      %744 = vmatpush1.xpose.msra.mxu0 0.0
      %745 = vmatprep.subr.mxu0 0.0
      %746 = vmatpush1.xpose.msra.mxu0 0.0
      %747 = vmatprep.subr.mxu0 0.0
      %748 = vmatpush1.xpose.msra.mxu0 0.0
      %749 = vmatprep.subr.mxu0 0.0
      %750 = vmatpush1.xpose.msra.mxu0 0.0
      %751 = vmatprep.subr.mxu0 0.0
      %752 = vmatpush1.xpose.msra.mxu0 0.0
      %753 = vmatprep.subr.mxu0 0.0
      %754 = vmatpush1.xpose.msra.mxu0 0.0
      %755 = vmatprep.subr.mxu0 0.0
      %756 = vmatpush1.xpose.msra.mxu0 0.0
      %757 = vmatprep.subr.mxu0 0.0
      %758 = vmatpush1.xpose.msra.mxu0 0.0
      %759 = vmatprep.subr.mxu0 0.0
      %760 = vmatpush1.xpose.msra.mxu0 0.0
      %761 = vmatprep.subr.mxu0 0.0
      %762 = vmatpush1.xpose.msra.mxu0 0.0
      %763 = vmatprep.subr.mxu0 0.0
      %764 = vmatpush1.xpose.msra.mxu0 0.0
      %765 = vmatprep.subr.mxu0 0.0
      %766 = vmatpush1.xpose.msra.mxu0 0.0
      %767 = vmatprep.subr.mxu0 0.0
      %768 = vmatpush1.xpose.msra.mxu0 0.0
      %769 = vmatprep.subr.mxu0 0.0
      %770 = vmatpush1.xpose.msra.mxu0 0.0
      %771 = vmatprep.subr.mxu0 0.0
      %772 = vmatpush1.xpose.msra.mxu0 0.0
      %773 = vmatprep.subr.mxu0 0.0
      %774 = vmatpush1.xpose.msra.mxu0 0.0
      %775 = vmatprep.subr.mxu0 0.0
      %776 = vmatpush1.xpose.msra.mxu0 0.0
      %777 = vmatprep.subr.mxu0 0.0
      %778 = vmatpush1.xpose.msra.mxu0 0.0
      %779 = vmatprep.subr.mxu0 0.0
      %780 = vmatpush1.xpose.msra.mxu0 0.0
      %781 = vmatprep.subr.mxu0 0.0
      %782 = vmatpush1.xpose.msra.mxu0 0.0
      %783 = vmatprep.subr.mxu0 0.0
      %784 = vmatpush1.xpose.msra.mxu0 0.0
      %785 = vmatprep.subr.mxu0 0.0
      %786 = vmatpush1.xpose.msra.mxu0 0.0
      %787 = vmatprep.subr.mxu0 0.0
      %788 = vmatpush1.xpose.msra.mxu0 0.0
      %789 = vmatprep.subr.mxu0 0.0
      %790 = vmatpush1.xpose.msra.mxu0 0.0
      %791 = vmatprep.subr.mxu0 0.0
      %792 = vmatpush1.xpose.msra.mxu0 0.0
      %793 = vmatprep.subr.mxu0 0.0
      %794 = vmatpush1.xpose.msra.mxu0 0.0
      %795 = vmatprep.subr.mxu0 0.0
      %796 = vmatpush1.xpose.msra.mxu0 0.0
      %797 = vmatprep.mubr.f32.mxu0 0.0
      %798 = vmatmul.mubr.f32.gmra.mrb[0].mxu0 %v729
      %v799 = vpop.f32.mrb[0].mxu0
      %v800 = vadd.f32 0.0, %v799
      %v801 = vpop.f32.mrb[0].mxu0
      %802 = vdwg.mxu0
      %v803 = vmul.f32 %v800, 0.25
      %v804 = vadd.f32 %v803, %v631
      %v805 = vsel %vm634, %v804, -inf
      %806 = vmax.xlane.f32.xlu0 %v805
      %v807 = vpop.xlane.xlu0 %806
      %v808 = vsub.f32 %v804, %v807
      %v809 = vmul.f32 %v808, 1.442695
      %v810 = vpow.pop %v809
      %v811 = vsel %vm634, %v810, 0.0
      %812 = vadd.xlane.f32.xlu0 %v811
      %v813 = vpop.xlane.xlu0 %812
      %v814 = vrcp.pop %v813
      %v815 = vmul.f32 %v810, %v814
      %816 = vrot.lane.b32.xlu0 %v542, 48
      %v817 = vpop.permute.xlu0 %816
      %v820 = vsel %vm634, %v815, 0
      %822 = vmatprep.subr.mxu0 0.0
      %823 = vmatpush1.msra.mxu0 %v817
      %824 = vmatprep.subr.mxu0 0.0
      %825 = vmatpush1.msra.mxu0 0.0
      %826 = vmatprep.subr.mxu0 0.0
      %827 = vmatpush1.msra.mxu0 0.0
      %828 = vmatprep.subr.mxu0 0.0
      %829 = vmatpush1.msra.mxu0 0.0
      %830 = vmatprep.subr.mxu0 0.0
      %831 = vmatpush1.msra.mxu0 0.0
      %832 = vmatprep.subr.mxu0 0.0
      %833 = vmatpush1.msra.mxu0 0.0
      %834 = vmatprep.subr.mxu0 0.0
      %835 = vmatpush1.msra.mxu0 0.0
      %836 = vmatprep.subr.mxu0 0.0
      %837 = vmatpush1.msra.mxu0 0.0
      %838 = vmatprep.subr.mxu0 0.0
      %839 = vmatpush1.msra.mxu0 0.0
      %840 = vmatprep.subr.mxu0 0.0
      %841 = vmatpush1.msra.mxu0 0.0
      %842 = vmatprep.subr.mxu0 0.0
      %843 = vmatpush1.msra.mxu0 0.0
      %844 = vmatprep.subr.mxu0 0.0
      %845 = vmatpush1.msra.mxu0 0.0
      %846 = vmatprep.subr.mxu0 0.0
      %847 = vmatpush1.msra.mxu0 0.0
      %848 = vmatprep.subr.mxu0 0.0
      %849 = vmatpush1.msra.mxu0 0.0
      %850 = vmatprep.subr.mxu0 0.0
      %851 = vmatpush1.msra.mxu0 0.0
      %852 = vmatprep.subr.mxu0 0.0
      %853 = vmatpush1.msra.mxu0 0.0
      %854 = vmatprep.subr.mxu0 0.0
      %855 = vmatpush1.msra.mxu0 0.0
      %856 = vmatprep.subr.mxu0 0.0
      %857 = vmatpush1.msra.mxu0 0.0
      %858 = vmatprep.subr.mxu0 0.0
      %859 = vmatpush1.msra.mxu0 0.0
      %860 = vmatprep.subr.mxu0 0.0
      %861 = vmatpush1.msra.mxu0 0.0
      %862 = vmatprep.subr.mxu0 0.0
      %863 = vmatpush1.msra.mxu0 0.0
      %864 = vmatprep.subr.mxu0 0.0
      %865 = vmatpush1.msra.mxu0 0.0
      %866 = vmatprep.subr.mxu0 0.0
      %867 = vmatpush1.msra.mxu0 0.0
      %868 = vmatprep.subr.mxu0 0.0
      %869 = vmatpush1.msra.mxu0 0.0
      %870 = vmatprep.subr.mxu0 0.0
      %871 = vmatpush1.msra.mxu0 0.0
      %872 = vmatprep.subr.mxu0 0.0
      %873 = vmatpush1.msra.mxu0 0.0
      %874 = vmatprep.subr.mxu0 0.0
      %875 = vmatpush1.msra.mxu0 0.0
      %876 = vmatprep.subr.mxu0 0.0
      %877 = vmatpush1.msra.mxu0 0.0
      %878 = vmatprep.subr.mxu0 0.0
      %879 = vmatpush1.msra.mxu0 0.0
      %880 = vmatprep.subr.mxu0 0.0
      %881 = vmatpush1.msra.mxu0 0.0
      %882 = vmatprep.subr.mxu0 0.0
      %883 = vmatpush1.msra.mxu0 0.0
      %884 = vmatprep.subr.mxu0 0.0
      %885 = vmatpush1.msra.mxu0 0.0
      %886 = vmatprep.mubr.f32.mxu0 0.0
      %887 = vmatmul.mubr.f32.gmra.mrb[0].mxu0 %v820
      %v888 = vpop.f32.mrb[0].mxu0
      %v889 = vadd.f32 0.0, %v888
      %v890 = vpop.f32.mrb[0].mxu0
      %891 = vdwg.mxu0
      %v892 = vpack.c.bf16 %v889, %v889
      %v893 = vld [vmem:[%s4 + $0x8] sm:$0xf]
      %v894 = vld [vmem:[%s4 + $0xc] sm:$0xf]
      %v897 = vunpack.c.l.b16 %v893
      %v898 = vunpack.c.l.b16 %v894
      %v899 = vpack.c.b16 %v898, %v897
      %v902 = vsel %vm551, %v892, 0
      %904 = vmatprep.subr.bf16.mxu0 0
      %905 = vmatpush1.bf16.msra.mxu0 %v899
      %906 = vmatprep.subr.bf16.mxu0 0
      %907 = vmatpush1.bf16.msra.mxu0 0
      %908 = vmatprep.subr.bf16.mxu0 0
      %909 = vmatpush1.bf16.msra.mxu0 0
      %910 = vmatprep.subr.bf16.mxu0 0
      %911 = vmatpush1.bf16.msra.mxu0 0
      %912 = vmatprep.subr.bf16.mxu0 0
      %913 = vmatpush1.bf16.msra.mxu0 0
      %914 = vmatprep.subr.bf16.mxu0 0
      %915 = vmatpush1.bf16.msra.mxu0 0
      %916 = vmatprep.subr.bf16.mxu0 0
      %917 = vmatpush1.bf16.msra.mxu0 0
      %918 = vmatprep.subr.bf16.mxu0 0
      %919 = vmatpush1.bf16.msra.mxu0 0
      %920 = vmatprep.subr.bf16.mxu0 0
      %921 = vmatpush1.bf16.msra.mxu0 0
      %922 = vmatprep.subr.bf16.mxu0 0
      %923 = vmatpush1.bf16.msra.mxu0 0
      %924 = vmatprep.subr.bf16.mxu0 0
      %925 = vmatpush1.bf16.msra.mxu0 0
      %926 = vmatprep.subr.bf16.mxu0 0
      %927 = vmatpush1.bf16.msra.mxu0 0
      %928 = vmatprep.subr.bf16.mxu0 0
      %929 = vmatpush1.bf16.msra.mxu0 0
      %930 = vmatprep.subr.bf16.mxu0 0
      %931 = vmatpush1.bf16.msra.mxu0 0
      %932 = vmatprep.subr.bf16.mxu0 0
      %933 = vmatpush1.bf16.msra.mxu0 0
      %934 = vmatprep.subr.bf16.mxu0 0
      %935 = vmatpush1.bf16.msra.mxu0 0
      %936 = vmatprep.mubr.bf16.mxu0 0
      %937 = vmatmul.mubr.bf16.gmra.mrb[0].mxu0 %v902
      %v938 = vpop.f32.mrb[0].mxu0
      %v939 = vadd.f32 0.0, %v938
      %v940 = vpop.f32.mrb[0].mxu0
      %v941 = vpop.f32.mrb[0].mxu0
      %v942 = vpop.f32.mrb[0].mxu0
      %943 = vdwg.mxu0
      %v946 = vunpack.c.l.b16 %v723
      %v947 = vunpack.c.l.b16 %v724
      %v948 = vpack.c.b16 %v947, %v946
      %v951 = vsel %vm551, %v722, 0
      %953 = vmatprep.subr.bf16.mxu0 0
      %954 = vmatpush1.bf16.msra.mxu0 %v948
      %955 = vmatprep.subr.bf16.mxu0 0
      %956 = vmatpush1.bf16.msra.mxu0 0
      %957 = vmatprep.subr.bf16.mxu0 0
      %958 = vmatpush1.bf16.msra.mxu0 0
      %959 = vmatprep.subr.bf16.mxu0 0
      %960 = vmatpush1.bf16.msra.mxu0 0
      %961 = vmatprep.subr.bf16.mxu0 0
      %962 = vmatpush1.bf16.msra.mxu0 0
      %963 = vmatprep.subr.bf16.mxu0 0
      %964 = vmatpush1.bf16.msra.mxu0 0
      %965 = vmatprep.subr.bf16.mxu0 0
      %966 = vmatpush1.bf16.msra.mxu0 0
      %967 = vmatprep.subr.bf16.mxu0 0
      %968 = vmatpush1.bf16.msra.mxu0 0
      %969 = vmatprep.subr.bf16.mxu0 0
      %970 = vmatpush1.bf16.msra.mxu0 0
      %971 = vmatprep.subr.bf16.mxu0 0
      %972 = vmatpush1.bf16.msra.mxu0 0
      %973 = vmatprep.subr.bf16.mxu0 0
      %974 = vmatpush1.bf16.msra.mxu0 0
      %975 = vmatprep.subr.bf16.mxu0 0
      %976 = vmatpush1.bf16.msra.mxu0 0
      %977 = vmatprep.subr.bf16.mxu0 0
      %978 = vmatpush1.bf16.msra.mxu0 0
      %979 = vmatprep.subr.bf16.mxu0 0
      %980 = vmatpush1.bf16.msra.mxu0 0
      %981 = vmatprep.subr.bf16.mxu0 0
      %982 = vmatpush1.bf16.msra.mxu0 0
      %983 = vmatprep.subr.bf16.mxu0 0
      %984 = vmatpush1.bf16.msra.mxu0 0
      %985 = vmatprep.mubr.bf16.mxu0 0
      %986 = vmatmul.mubr.bf16.gmra.mrb[0].mxu0 %v951
      %v987 = vpop.f32.mrb[0].mxu0
      %v988 = vadd.f32 %v939, %v987
      %v989 = vpop.f32.mrb[0].mxu0
      %v990 = vpop.f32.mrb[0].mxu0
      %v991 = vpop.f32.mrb[0].mxu0
      %992 = vdwg.mxu0
      %v993 = vld [vmem:[%s5] sm:$0x1]
      %v995 = vlaneseq
      %v996 = vshrl.u32 %v995, 7
      %v997 = vsub.s32 0, %v996
      %v998 = vrot.slane %v993, %v997
      %v1000 = vadd.f32 %v988, %v998
      %v1001 = vadd.f32 %v1000, %v478
      %v1002 = vld [vmem:[%s6] sm:$0x1]
      %v1003 = vld [vmem:[%s7] sm:$0x1]
      %v1004 = vsel %vm503, %v1001, 0.0
      %1005 = vadd.xlane.f32.xlu0 %v1004
      %v1006 = vpop.xlane.xlu0 %1005
      %v1007 = vrcp.pop 32.0
      %v1008 = vmul.f32 %v1006, %v1007
      %v1009 = vsub.f32 %v1001, %v1008
      %v1010 = vmul.f32 %v1009, %v1009
      %v1011 = vsel %vm503, %v1010, 0.0
      %1012 = vadd.xlane.f32.xlu0 %v1011
      %v1013 = vpop.xlane.xlu0 %1012
      %v1014 = vmul.f32 %v1013, %v1007
      %v1015 = vadd.f32 %v1014, 1e-05
      %v1016 = vrsqrt.pop %v1015
      %v1017 = vmul.f32 %v1009, %v1016
      %v1019 = vlaneseq
      %v1020 = vshrl.u32 %v1019, 7
      %v1021 = vsub.s32 0, %v1020
      %v1022 = vrot.slane %v1002, %v1021
      %v1024 = vmul.f32 %v1017, %v1022
      %v1026 = vlaneseq
      %v1027 = vshrl.u32 %v1026, 7
      %v1028 = vsub.s32 0, %v1027
      %v1029 = vrot.slane %v1003, %v1028
      %v1031 = vadd.f32 %v1024, %v1029
      %v1032 = vpack.c.bf16 %v1031, %v1031
      %v1033 = vld [vmem:[%s8] sm:$0xf]
      %v1034 = vld [vmem:[%s8 + $0x4] sm:$0xf]
      %v1035 = vld [vmem:[%s8 + $0x8] sm:$0xf]
      %v1036 = vld [vmem:[%s8 + $0xc] sm:$0xf]
      %v1037 = vld [vmem:[%s9] sm:$0x1]
      %v1039 = vlaneseq
      %v1040 = vshrl.u32 %v1039, 7
      %v1041 = vsub.s32 0, %v1040
      %v1042 = vrot.slane %v1037, %v1041
      %v1048 = vunpack.c.l.b16 %v1033
      %v1049 = vunpack.c.l.b16 %v1034
      %v1050 = vunpack.c.l.b16 %v1035
      %v1051 = vunpack.c.l.b16 %v1036
      %v1052 = vpack.c.b16 %v1049, %v1048
      %v1053 = vpack.c.b16 %v1051, %v1050
      %v1057 = vsel %vm503, %v1032, 0
      %1059 = vmatprep.subr.bf16.mxu0 0
      %1060 = vmatpush1.bf16.msra.mxu0 %v1052
      %1061 = vmatprep.subr.bf16.mxu0 0
      %1062 = vmatpush1.bf16.msra.mxu0 %v1053
      %1063 = vmatprep.subr.bf16.mxu0 0
      %1064 = vmatpush1.bf16.msra.mxu0 0
      %1065 = vmatprep.subr.bf16.mxu0 0
      %1066 = vmatpush1.bf16.msra.mxu0 0
      %1067 = vmatprep.subr.bf16.mxu0 0
      %1068 = vmatpush1.bf16.msra.mxu0 0
      %1069 = vmatprep.subr.bf16.mxu0 0
      %1070 = vmatpush1.bf16.msra.mxu0 0
      %1071 = vmatprep.subr.bf16.mxu0 0
      %1072 = vmatpush1.bf16.msra.mxu0 0
      %1073 = vmatprep.subr.bf16.mxu0 0
      %1074 = vmatpush1.bf16.msra.mxu0 0
      %1075 = vmatprep.subr.bf16.mxu0 0
      %1076 = vmatpush1.bf16.msra.mxu0 0
      %1077 = vmatprep.subr.bf16.mxu0 0
      %1078 = vmatpush1.bf16.msra.mxu0 0
      %1079 = vmatprep.subr.bf16.mxu0 0
      %1080 = vmatpush1.bf16.msra.mxu0 0
      %1081 = vmatprep.subr.bf16.mxu0 0
      %1082 = vmatpush1.bf16.msra.mxu0 0
      %1083 = vmatprep.subr.bf16.mxu0 0
      %1084 = vmatpush1.bf16.msra.mxu0 0
      %1085 = vmatprep.subr.bf16.mxu0 0
      %1086 = vmatpush1.bf16.msra.mxu0 0
      %1087 = vmatprep.subr.bf16.mxu0 0
      %1088 = vmatpush1.bf16.msra.mxu0 0
      %1089 = vmatprep.subr.bf16.mxu0 0
      %1090 = vmatpush1.bf16.msra.mxu0 0
      %1091 = vmatprep.mubr.bf16.mxu0 0
      %1092 = vmatmul.mubr.bf16.gmra.mrb[0].mxu0 %v1057
      %v1093 = vpop.f32.mrb[0].mxu0
      %v1094 = vadd.f32 %v1042, %v1093
      %v1095 = vpop.f32.mrb[0].mxu0
      %v1096 = vpop.f32.mrb[0].mxu0
      %v1097 = vpop.f32.mrb[0].mxu0
      %1098 = vdwg.mxu0
      %v1099 = vmul.f32 %v1094, 0.5
      %v1100 = vmul.f32 %v1094, 0.044715
      %v1101 = vmul.f32 %v1100, %v1094
      %v1102 = vmul.f32 %v1101, %v1094
      %v1103 = vadd.f32 %v1094, %v1102
      %v1104 = vmul.f32 %v1103, 0.7978846
      %v1105 = vtanh.pop %v1104
      %v1106 = vadd.f32 %v1105, 1.0
      %v1107 = vmul.f32 %v1099, %v1106
      %v1108 = vpack.c.bf16 %v1107, %v1107
      %v1109 = vld [vmem:[%s10] sm:$0xf]
      %v1110 = vld [vmem:[%s10 + $0x4] sm:$0xf]
      %v1111 = vld [vmem:[%s10 + $0x8] sm:$0xf]
      %v1112 = vld [vmem:[%s10 + $0xc] sm:$0xf]
      %v1113 = vld [vmem:[%s10 + $0x10] sm:$0xf]
      %v1114 = vld [vmem:[%s10 + $0x14] sm:$0xf]
      %v1115 = vld [vmem:[%s10 + $0x18] sm:$0xf]
      %v1116 = vld [vmem:[%s10 + $0x1c] sm:$0xf]
      %v1117 = vld [vmem:[%s11] sm:$0x1]
      %v1119 = vlaneseq
      %v1120 = vshrl.u32 %v1119, 7
      %v1121 = vsub.s32 0, %v1120
      %v1122 = vrot.slane %v1117, %v1121
      %v1132 = vunpack.c.l.b16 %v1109
      %v1133 = vunpack.c.l.b16 %v1110
      %v1134 = vunpack.c.l.b16 %v1111
      %v1135 = vunpack.c.l.b16 %v1112
      %v1136 = vunpack.c.l.b16 %v1113
      %v1137 = vunpack.c.l.b16 %v1114
      %v1138 = vunpack.c.l.b16 %v1115
      %v1139 = vunpack.c.l.b16 %v1116
      %v1140 = vpack.c.b16 %v1133, %v1132
      %v1141 = vpack.c.b16 %v1135, %v1134
      %v1142 = vpack.c.b16 %v1137, %v1136
      %v1143 = vpack.c.b16 %v1139, %v1138
      %vm1148 = vcmask 523264
      %v1150 = vsel %vm1148, %v1108, 0
      %1152 = vmatprep.subr.bf16.mxu0 0
      %1153 = vmatpush1.bf16.msra.mxu0 %v1140
      %1154 = vmatprep.subr.bf16.mxu0 0
      %1155 = vmatpush1.bf16.msra.mxu0 %v1141
      %1156 = vmatprep.subr.bf16.mxu0 0
      %1157 = vmatpush1.bf16.msra.mxu0 %v1142
      %1158 = vmatprep.subr.bf16.mxu0 0
      %1159 = vmatpush1.bf16.msra.mxu0 %v1143
      %1160 = vmatprep.subr.bf16.mxu0 0
      %1161 = vmatpush1.bf16.msra.mxu0 0
      %1162 = vmatprep.subr.bf16.mxu0 0
      %1163 = vmatpush1.bf16.msra.mxu0 0
      %1164 = vmatprep.subr.bf16.mxu0 0
      %1165 = vmatpush1.bf16.msra.mxu0 0
      %1166 = vmatprep.subr.bf16.mxu0 0
      %1167 = vmatpush1.bf16.msra.mxu0 0
      %1168 = vmatprep.subr.bf16.mxu0 0
      %1169 = vmatpush1.bf16.msra.mxu0 0
      %1170 = vmatprep.subr.bf16.mxu0 0
      %1171 = vmatpush1.bf16.msra.mxu0 0
      %1172 = vmatprep.subr.bf16.mxu0 0
      %1173 = vmatpush1.bf16.msra.mxu0 0
      %1174 = vmatprep.subr.bf16.mxu0 0
      %1175 = vmatpush1.bf16.msra.mxu0 0
      %1176 = vmatprep.subr.bf16.mxu0 0
      %1177 = vmatpush1.bf16.msra.mxu0 0
      %1178 = vmatprep.subr.bf16.mxu0 0
      %1179 = vmatpush1.bf16.msra.mxu0 0
      %1180 = vmatprep.subr.bf16.mxu0 0
      %1181 = vmatpush1.bf16.msra.mxu0 0
      %1182 = vmatprep.subr.bf16.mxu0 0
      %1183 = vmatpush1.bf16.msra.mxu0 0
      %1184 = vmatprep.mubr.bf16.mxu0 0
      %1185 = vmatmul.mubr.bf16.gmra.mrb[0].mxu0 %v1150
      %v1186 = vpop.f32.mrb[0].mxu0
      %v1187 = vadd.f32 %v1122, %v1186
      %v1188 = vpop.f32.mrb[0].mxu0
      %v1189 = vpop.f32.mrb[0].mxu0
      %v1190 = vpop.f32.mrb[0].mxu0
      %1191 = vdwg.mxu0
      %v1192 = vadd.f32 %v1187, %v1031
      %v1193 = vld [vmem:[%s12] sm:$0x1]
      %v1194 = vld [vmem:[%s13] sm:$0x1]
      %v1195 = vsel %vm503, %v1192, 0.0
      %1196 = vadd.xlane.f32.xlu0 %v1195
      %v1197 = vpop.xlane.xlu0 %1196
      %v1198 = vmul.f32 %v1197, %v1007
      %v1199 = vsub.f32 %v1192, %v1198
      %v1200 = vmul.f32 %v1199, %v1199
      %v1201 = vsel %vm503, %v1200, 0.0
      %1202 = vadd.xlane.f32.xlu0 %v1201
      %v1203 = vpop.xlane.xlu0 %1202
      %v1204 = vmul.f32 %v1203, %v1007
      %v1205 = vadd.f32 %v1204, 1e-05
      %v1206 = vrsqrt.pop %v1205
      %v1207 = vmul.f32 %v1199, %v1206
      %v1209 = vlaneseq
      %v1210 = vshrl.u32 %v1209, 7
      %v1211 = vsub.s32 0, %v1210
      %v1212 = vrot.slane %v1193, %v1211
      %v1214 = vmul.f32 %v1207, %v1212
      %v1216 = vlaneseq
      %v1217 = vshrl.u32 %v1216, 7
      %v1218 = vsub.s32 0, %v1217
      %v1219 = vrot.slane %v1194, %v1218
      %v1221 = vadd.f32 %v1214, %v1219
      %1222 = vst.msk [vmem:[%s476] sm:$0xff] %vm503, %v1221
      %p1223 = scmp.lt.s32.totalorder %s25, 1
      %s1224 = scalar_select %p1223, %s25, 1
      %s1225 = smul.addr %s1224, 8
      %s1226 = scalar_lea.vmem %s14, %s1225
      // Predicated region
      $region77: #{roberta_forward.4} parent=75 // pred_check
        %p1227 = pneg %p347
      $region78: #{roberta_forward.4} parent=75 // pred_check_branch
        %1229 = sbr.rel (%p1227) target = $region80
      $region79: #{roberta_forward.4} parent=75 // pred_region
        _
      $region80: #{roberta_forward.4} parent=75 // pred_fallthru
        _
    $region76: #{roberta_forward.4} parent=5 // pred_fallthru
      _
    %p1230 = scmp.le.s32.totalorder 2, %s20
    // Predicated region
    $region81: #{roberta_forward.4} parent=5 // pred_check
      %p1231 = pneg %p1230
    $region82: #{roberta_forward.4} parent=5 // pred_check_branch
      %1233 = sbr.rel (%p1231) target = $region84
    $region83: #{roberta_forward.4} parent=5 // pred_region
      %s1234 = ssub.s32 %s20, 2
      // Predicated region
      $region85: #{roberta_forward.4} parent=83 // pred_check
        %p1235 = pneg %p353
      $region86: #{roberta_forward.4} parent=83 // pred_check_branch
        %1237 = sbr.rel (%p1235) target = $region88
      $region87: #{roberta_forward.4} parent=83 // pred_region
        %p1238 = scmp.lt.s32.totalorder %s26, 1
        %s1239 = scalar_select %p1238, %s26, 1
        %s1240 = smul.addr %s1239, 8
        %s1241 = scalar_lea.vmem %s14, %s1240
      $region88: #{roberta_forward.4} parent=83 // pred_fallthru
        _
    $region84: #{roberta_forward.4} parent=5 // pred_fallthru
      _
  $region6: #{roberta_forward.4} parent=0 // loop_footer
    %s24 = sadd.s32 1, %s20
  $region7: #{roberta_forward.4} parent=0 // loop_footer_branch
    %19 = sbr.rel target = $region3
  $region8: #{roberta_forward.4} parent=0 // loop_exit
    _

// kernel: roberta_forward.5
$region0: #{roberta_forward.5}
  #allocation0 [shape = 'u32[]', space=smem, size = 0x4, offset = 0x4, fixed_abs, tag = 'smem constant byte address 0x4 - core index']
  #allocation1 [shape = 'u32[144,128]{1,0:T(1,128)}', space=vmem, size = 0x12000, scoped, tag = 'internal scratch']
  %s0 = inlined_call_operand.vmem [shape: f32[16,32], index: 0, kind: input, shape index: {}]
  %s1 = inlined_call_operand.vmem [shape: f32[2,1,8], index: 1, kind: input, shape index: {}]
  %s2 = inlined_call_operand.vmem [shape: bf16[32,96], index: 2, kind: input, shape index: {}]
  %s3 = inlined_call_operand.vmem [shape: f32[1,96], index: 3, kind: input, shape index: {}]
  %s4 = inlined_call_operand.vmem [shape: bf16[32,32], index: 4, kind: input, shape index: {}]
  %s5 = inlined_call_operand.vmem [shape: f32[1,32], index: 5, kind: input, shape index: {}]
  %s6 = inlined_call_operand.vmem [shape: f32[1,32], index: 6, kind: input, shape index: {}]
  %s7 = inlined_call_operand.vmem [shape: f32[1,32], index: 7, kind: input, shape index: {}]
  %s8 = inlined_call_operand.vmem [shape: bf16[32,64], index: 8, kind: input, shape index: {}]
  %s9 = inlined_call_operand.vmem [shape: f32[1,64], index: 9, kind: input, shape index: {}]
  %s10 = inlined_call_operand.vmem [shape: bf16[64,32], index: 10, kind: input, shape index: {}]
  %s11 = inlined_call_operand.vmem [shape: f32[1,32], index: 11, kind: input, shape index: {}]
  %s12 = inlined_call_operand.vmem [shape: f32[1,32], index: 12, kind: input, shape index: {}]
  %s13 = inlined_call_operand.vmem [shape: f32[1,32], index: 13, kind: input, shape index: {}]
  %s14 = inlined_call_operand.hbm [shape: f32[16,32], index: 14, kind: output, shape index: {}]
  %s15 = sld [smem:[#allocation0]]
  $region89: #{roberta_forward.5} parent=0
    _
  %s17 = ssub.s32 1, %s15
  %s18 = scalar_select 0, %s17, %s15
  $region1: #{roberta_forward.5} parent=0
    #allocation2 [shape = 'u8[8192]{0}', space=vmem, size = 0x2000, scoped, tag = 'output window, operand 0']
    #allocation3 [shape = 's32[2]{0}', space=sflag, size = 0x8, scoped, tag = 'scoped memory for roberta_forward.5']
    %19 = vsyncpa [#allocation3], 0
    %s20 = scalar_lea.sflag [#allocation3], 1
    %21 = vsyncpa %s20, 0
    loop: start=0, step=1, limit=4
    $region2: #{roberta_forward.5} parent=1 // loop_pre_header
      _
    $region3: #{roberta_forward.5} parent=1 // loop_header
      %s23 = sphi 0, %s27
      %p24 = scmp.ge.s32.totalorder %s23, 4
      %s33 = sphi 0, %s35
      %s36 = sphi 0, %s33
      %s37 = sphi 0, %s36
      %s53 = sphi 0, %s37
      %s59 = sphi 0, %s61
      %s62 = sphi 0, %s59
      %s63 = sphi 0, %s62
      %s79 = sphi 0, %s63
      %s83 = sphi 0, %s83
      %s85 = sphi 0, %s83
      %s86 = sphi 0, %s85
      %s100 = sphi 0, %s86
      %s104 = sphi 0, %s104
      %s106 = sphi 0, %s104
      %s107 = sphi 0, %s106
      %s121 = sphi 0, %s107
      %s125 = sphi 0, %s125
      %s127 = sphi 0, %s125
      %s128 = sphi 0, %s127
      %s142 = sphi 0, %s128
      %s146 = sphi 0, %s146
      %s148 = sphi 0, %s146
      %s149 = sphi 0, %s148
      %s163 = sphi 0, %s149
      %s167 = sphi 0, %s167
      %s169 = sphi 0, %s167
      %s170 = sphi 0, %s169
      %s184 = sphi 0, %s170
      %s188 = sphi 0, %s188
      %s190 = sphi 0, %s188
      %s191 = sphi 0, %s190
      %s205 = sphi 0, %s191
      %s209 = sphi 0, %s209
      %s211 = sphi 0, %s209
      %s212 = sphi 0, %s211
      %s226 = sphi 0, %s212
      %s230 = sphi 0, %s230
      %s232 = sphi 0, %s230
      %s233 = sphi 0, %s232
      %s247 = sphi 0, %s233
      %s251 = sphi 0, %s251
      %s253 = sphi 0, %s251
      %s254 = sphi 0, %s253
      %s268 = sphi 0, %s254
      %s272 = sphi 0, %s272
      %s274 = sphi 0, %s272
      %s275 = sphi 0, %s274
      %s289 = sphi 0, %s275
      %s293 = sphi 0, %s293
      %s295 = sphi 0, %s293
      %s296 = sphi 0, %s295
      %s310 = sphi 0, %s296
      %s314 = sphi 0, %s314
      %s316 = sphi 0, %s314
      %s317 = sphi 0, %s316
      %s331 = sphi 0, %s317
      %s337 = sphi 0, %s339
      %s340 = sphi 0, %s337
      %s341 = sphi 0, %s340
      %s357 = sphi 0, %s341
    $region4: #{roberta_forward.5} parent=1 // loop_header_branch
      %26 = sbr.rel (%p24) target = $region8
    $region5: #{roberta_forward.5} parent=1 // loop_body
      %s28 = ssub.s32 %s23, 1
      %s29 = ssub.s32 %s23, 2
      %s30 = sadd.s32 %s23, 1
      %s31 = ssub.s32 %s23, %s30
      %p32 = scmp.eq.s32.totalorder %s31, 0
      %s34 = sadd.s32 %s33, 1
      %s35 = scalar_select %p32, %s33, %s34
      %p38 = pneg %p32
      %p39 = scmp.eq.s32.totalorder %s23, 1
      %p40 = por %p38, %p39
      %p41 = scmp.ne.s32.totalorder %s33, %s36
      %p42 = scmp.eq.s32.totalorder %s23, 0
      %p43 = por %p41, %p42
      %p44 = scmp.ne.s32.totalorder %s33, %s36
      %p45 = scmp.eq.s32.totalorder %s28, 1
      %p46 = por %p44, %p45
      %p47 = scmp.ne.s32.totalorder %s36, %s37
      %p48 = scmp.eq.s32.totalorder %s28, 0
      %p49 = por %p47, %p48
      %p50 = scmp.ne.s32.totalorder %s36, %s37
      %p51 = scmp.eq.s32.totalorder %s29, 1
      %p52 = por %p50, %p51
      %p54 = scmp.ne.s32.totalorder %s37, %s53
      %p55 = scmp.eq.s32.totalorder %s29, 0
      %p56 = por %p54, %p55
      %s57 = ssub.s32 %s23, %s30
      %p58 = scmp.eq.s32.totalorder %s57, 0
      %s60 = sadd.s32 %s59, 1
      %s61 = scalar_select %p58, %s59, %s60
      %p64 = pneg %p58
      %p65 = scmp.eq.s32.totalorder %s23, 1
      %p66 = por %p64, %p65
      %p67 = scmp.ne.s32.totalorder %s59, %s62
      %p68 = scmp.eq.s32.totalorder %s23, 0
      %p69 = por %p67, %p68
      %p70 = scmp.ne.s32.totalorder %s59, %s62
      %p71 = scmp.eq.s32.totalorder %s28, 1
      %p72 = por %p70, %p71
      %p73 = scmp.ne.s32.totalorder %s62, %s63
      %p74 = scmp.eq.s32.totalorder %s28, 0
      %p75 = por %p73, %p74
      %p76 = scmp.ne.s32.totalorder %s62, %s63
      %p77 = scmp.eq.s32.totalorder %s29, 1
      %p78 = por %p76, %p77
      %p80 = scmp.ne.s32.totalorder %s63, %s79
      %p81 = scmp.eq.s32.totalorder %s29, 0
      %p82 = por %p80, %p81
      %s84 = sadd.s32 %s83, 1
      %p87 = scmp.eq.s32.totalorder %s23, 1
      %p88 = scmp.ne.s32.totalorder %s83, %s85
      %p89 = scmp.eq.s32.totalorder %s23, 0
      %p90 = por %p88, %p89
      %p91 = scmp.ne.s32.totalorder %s83, %s85
      %p92 = scmp.eq.s32.totalorder %s28, 1
      %p93 = por %p91, %p92
      %p94 = scmp.ne.s32.totalorder %s85, %s86
      %p95 = scmp.eq.s32.totalorder %s28, 0
      %p96 = por %p94, %p95
      %p97 = scmp.ne.s32.totalorder %s85, %s86
      %p98 = scmp.eq.s32.totalorder %s29, 1
      %p99 = por %p97, %p98
      %p101 = scmp.ne.s32.totalorder %s86, %s100
      %p102 = scmp.eq.s32.totalorder %s29, 0
      %p103 = por %p101, %p102
      %s105 = sadd.s32 %s104, 1
      %p108 = scmp.eq.s32.totalorder %s23, 1
      %p109 = scmp.ne.s32.totalorder %s104, %s106
      %p110 = scmp.eq.s32.totalorder %s23, 0
      %p111 = por %p109, %p110
      %p112 = scmp.ne.s32.totalorder %s104, %s106
      %p113 = scmp.eq.s32.totalorder %s28, 1
      %p114 = por %p112, %p113
      %p115 = scmp.ne.s32.totalorder %s106, %s107
      %p116 = scmp.eq.s32.totalorder %s28, 0
      %p117 = por %p115, %p116
      %p118 = scmp.ne.s32.totalorder %s106, %s107
      %p119 = scmp.eq.s32.totalorder %s29, 1
      %p120 = por %p118, %p119
      %p122 = scmp.ne.s32.totalorder %s107, %s121
      %p123 = scmp.eq.s32.totalorder %s29, 0
      %p124 = por %p122, %p123
      %s126 = sadd.s32 %s125, 1
      %p129 = scmp.eq.s32.totalorder %s23, 1
      %p130 = scmp.ne.s32.totalorder %s125, %s127
      %p131 = scmp.eq.s32.totalorder %s23, 0
      %p132 = por %p130, %p131
      %p133 = scmp.ne.s32.totalorder %s125, %s127
      %p134 = scmp.eq.s32.totalorder %s28, 1
      %p135 = por %p133, %p134
      %p136 = scmp.ne.s32.totalorder %s127, %s128
      %p137 = scmp.eq.s32.totalorder %s28, 0
      %p138 = por %p136, %p137
      %p139 = scmp.ne.s32.totalorder %s127, %s128
      %p140 = scmp.eq.s32.totalorder %s29, 1
      %p141 = por %p139, %p140
      %p143 = scmp.ne.s32.totalorder %s128, %s142
      %p144 = scmp.eq.s32.totalorder %s29, 0
      %p145 = por %p143, %p144
      %s147 = sadd.s32 %s146, 1
      %p150 = scmp.eq.s32.totalorder %s23, 1
      %p151 = scmp.ne.s32.totalorder %s146, %s148
      %p152 = scmp.eq.s32.totalorder %s23, 0
      %p153 = por %p151, %p152
      %p154 = scmp.ne.s32.totalorder %s146, %s148
      %p155 = scmp.eq.s32.totalorder %s28, 1
      %p156 = por %p154, %p155
      %p157 = scmp.ne.s32.totalorder %s148, %s149
      %p158 = scmp.eq.s32.totalorder %s28, 0
      %p159 = por %p157, %p158
      %p160 = scmp.ne.s32.totalorder %s148, %s149
      %p161 = scmp.eq.s32.totalorder %s29, 1
      %p162 = por %p160, %p161
      %p164 = scmp.ne.s32.totalorder %s149, %s163
      %p165 = scmp.eq.s32.totalorder %s29, 0
      %p166 = por %p164, %p165
      %s168 = sadd.s32 %s167, 1
      %p171 = scmp.eq.s32.totalorder %s23, 1
      %p172 = scmp.ne.s32.totalorder %s167, %s169
      %p173 = scmp.eq.s32.totalorder %s23, 0
      %p174 = por %p172, %p173
      %p175 = scmp.ne.s32.totalorder %s167, %s169
      %p176 = scmp.eq.s32.totalorder %s28, 1
      %p177 = por %p175, %p176
      %p178 = scmp.ne.s32.totalorder %s169, %s170
      %p179 = scmp.eq.s32.totalorder %s28, 0
      %p180 = por %p178, %p179
      %p181 = scmp.ne.s32.totalorder %s169, %s170
      %p182 = scmp.eq.s32.totalorder %s29, 1
      %p183 = por %p181, %p182
      %p185 = scmp.ne.s32.totalorder %s170, %s184
      %p186 = scmp.eq.s32.totalorder %s29, 0
      %p187 = por %p185, %p186
      %s189 = sadd.s32 %s188, 1
      %p192 = scmp.eq.s32.totalorder %s23, 1
      %p193 = scmp.ne.s32.totalorder %s188, %s190
      %p194 = scmp.eq.s32.totalorder %s23, 0
      %p195 = por %p193, %p194
      %p196 = scmp.ne.s32.totalorder %s188, %s190
      %p197 = scmp.eq.s32.totalorder %s28, 1
      %p198 = por %p196, %p197
      %p199 = scmp.ne.s32.totalorder %s190, %s191
      %p200 = scmp.eq.s32.totalorder %s28, 0
      %p201 = por %p199, %p200
      %p202 = scmp.ne.s32.totalorder %s190, %s191
      %p203 = scmp.eq.s32.totalorder %s29, 1
      %p204 = por %p202, %p203
      %p206 = scmp.ne.s32.totalorder %s191, %s205
      %p207 = scmp.eq.s32.totalorder %s29, 0
      %p208 = por %p206, %p207
      %s210 = sadd.s32 %s209, 1
      %p213 = scmp.eq.s32.totalorder %s23, 1
      %p214 = scmp.ne.s32.totalorder %s209, %s211
      %p215 = scmp.eq.s32.totalorder %s23, 0
      %p216 = por %p214, %p215
      %p217 = scmp.ne.s32.totalorder %s209, %s211
      %p218 = scmp.eq.s32.totalorder %s28, 1
      %p219 = por %p217, %p218
      %p220 = scmp.ne.s32.totalorder %s211, %s212
      %p221 = scmp.eq.s32.totalorder %s28, 0
      %p222 = por %p220, %p221
      %p223 = scmp.ne.s32.totalorder %s211, %s212
      %p224 = scmp.eq.s32.totalorder %s29, 1
      %p225 = por %p223, %p224
      %p227 = scmp.ne.s32.totalorder %s212, %s226
      %p228 = scmp.eq.s32.totalorder %s29, 0
      %p229 = por %p227, %p228
      %s231 = sadd.s32 %s230, 1
      %p234 = scmp.eq.s32.totalorder %s23, 1
      %p235 = scmp.ne.s32.totalorder %s230, %s232
      %p236 = scmp.eq.s32.totalorder %s23, 0
      %p237 = por %p235, %p236
      %p238 = scmp.ne.s32.totalorder %s230, %s232
      %p239 = scmp.eq.s32.totalorder %s28, 1
      %p240 = por %p238, %p239
      %p241 = scmp.ne.s32.totalorder %s232, %s233
      %p242 = scmp.eq.s32.totalorder %s28, 0
      %p243 = por %p241, %p242
      %p244 = scmp.ne.s32.totalorder %s232, %s233
      %p245 = scmp.eq.s32.totalorder %s29, 1
      %p246 = por %p244, %p245
      %p248 = scmp.ne.s32.totalorder %s233, %s247
      %p249 = scmp.eq.s32.totalorder %s29, 0
      %p250 = por %p248, %p249
      %s252 = sadd.s32 %s251, 1
      %p255 = scmp.eq.s32.totalorder %s23, 1
      %p256 = scmp.ne.s32.totalorder %s251, %s253
      %p257 = scmp.eq.s32.totalorder %s23, 0
      %p258 = por %p256, %p257
      %p259 = scmp.ne.s32.totalorder %s251, %s253
      %p260 = scmp.eq.s32.totalorder %s28, 1
      %p261 = por %p259, %p260
      %p262 = scmp.ne.s32.totalorder %s253, %s254
      %p263 = scmp.eq.s32.totalorder %s28, 0
      %p264 = por %p262, %p263
      %p265 = scmp.ne.s32.totalorder %s253, %s254
      %p266 = scmp.eq.s32.totalorder %s29, 1
      %p267 = por %p265, %p266
      %p269 = scmp.ne.s32.totalorder %s254, %s268
      %p270 = scmp.eq.s32.totalorder %s29, 0
      %p271 = por %p269, %p270
      %s273 = sadd.s32 %s272, 1
      %p276 = scmp.eq.s32.totalorder %s23, 1
      %p277 = scmp.ne.s32.totalorder %s272, %s274
      %p278 = scmp.eq.s32.totalorder %s23, 0
      %p279 = por %p277, %p278
      %p280 = scmp.ne.s32.totalorder %s272, %s274
      %p281 = scmp.eq.s32.totalorder %s28, 1
      %p282 = por %p280, %p281
      %p283 = scmp.ne.s32.totalorder %s274, %s275
      %p284 = scmp.eq.s32.totalorder %s28, 0
      %p285 = por %p283, %p284
      %p286 = scmp.ne.s32.totalorder %s274, %s275
      %p287 = scmp.eq.s32.totalorder %s29, 1
      %p288 = por %p286, %p287
      %p290 = scmp.ne.s32.totalorder %s275, %s289
      %p291 = scmp.eq.s32.totalorder %s29, 0
      %p292 = por %p290, %p291
      %s294 = sadd.s32 %s293, 1
      %p297 = scmp.eq.s32.totalorder %s23, 1
      %p298 = scmp.ne.s32.totalorder %s293, %s295
      %p299 = scmp.eq.s32.totalorder %s23, 0
      %p300 = por %p298, %p299
      %p301 = scmp.ne.s32.totalorder %s293, %s295
      %p302 = scmp.eq.s32.totalorder %s28, 1
      %p303 = por %p301, %p302
      %p304 = scmp.ne.s32.totalorder %s295, %s296
      %p305 = scmp.eq.s32.totalorder %s28, 0
      %p306 = por %p304, %p305
      %p307 = scmp.ne.s32.totalorder %s295, %s296
      %p308 = scmp.eq.s32.totalorder %s29, 1
      %p309 = por %p307, %p308
      %p311 = scmp.ne.s32.totalorder %s296, %s310
      %p312 = scmp.eq.s32.totalorder %s29, 0
      %p313 = por %p311, %p312
      %s315 = sadd.s32 %s314, 1
      %p318 = scmp.eq.s32.totalorder %s23, 1
      %p319 = scmp.ne.s32.totalorder %s314, %s316
      %p320 = scmp.eq.s32.totalorder %s23, 0
      %p321 = por %p319, %p320
      %p322 = scmp.ne.s32.totalorder %s314, %s316
      %p323 = scmp.eq.s32.totalorder %s28, 1
      %p324 = por %p322, %p323
      %p325 = scmp.ne.s32.totalorder %s316, %s317
      %p326 = scmp.eq.s32.totalorder %s28, 0
      %p327 = por %p325, %p326
      %p328 = scmp.ne.s32.totalorder %s316, %s317
      %p329 = scmp.eq.s32.totalorder %s29, 1
      %p330 = por %p328, %p329
      %p332 = scmp.ne.s32.totalorder %s317, %s331
      %p333 = scmp.eq.s32.totalorder %s29, 0
      %p334 = por %p332, %p333
      %s335 = ssub.s32 %s23, %s30
      %p336 = scmp.eq.s32.totalorder %s335, 0
      %s338 = sadd.s32 %s337, 1
      %s339 = scalar_select %p336, %s337, %s338
      %p342 = pneg %p336
      %p343 = scmp.eq.s32.totalorder %s23, 1
      %p344 = por %p342, %p343
      %p345 = scmp.ne.s32.totalorder %s337, %s340
      %p346 = scmp.eq.s32.totalorder %s23, 0
      %p347 = por %p345, %p346
      %p348 = scmp.ne.s32.totalorder %s337, %s340
      %p349 = scmp.eq.s32.totalorder %s28, 1
      %p350 = por %p348, %p349
      %p351 = scmp.ne.s32.totalorder %s340, %s341
      %p352 = scmp.eq.s32.totalorder %s28, 0
      %p353 = por %p351, %p352
      %p354 = scmp.ne.s32.totalorder %s340, %s341
      %p355 = scmp.eq.s32.totalorder %s29, 1
      %p356 = por %p354, %p355
      %p358 = scmp.ne.s32.totalorder %s341, %s357
      %p359 = scmp.eq.s32.totalorder %s29, 0
      %p360 = por %p358, %p359
      %p361 = scmp.le.s32.totalorder 1, %s23
      %p362 = scmp.lt.s32.totalorder %s23, 3
      %p363 = pnand %p361, %p362
      %p364 = pneg %p363
      // Predicated region
      $region9: #{roberta_forward.5} parent=5 // pred_check
        _
      $region10: #{roberta_forward.5} parent=5 // pred_check_branch
        %366 = sbr.rel (%p363) target = $region12
      $region11: #{roberta_forward.5} parent=5 // pred_region
        %s367 = ssub.s32 %s23, 1
        // Predicated region
        $region13: #{roberta_forward.5} parent=11 // pred_check
          %p368 = pneg %p96
        $region14: #{roberta_forward.5} parent=11 // pred_check_branch
          %370 = sbr.rel (%p368) target = $region16
        $region15: #{roberta_forward.5} parent=11 // pred_region
          _
        $region16: #{roberta_forward.5} parent=11 // pred_fallthru
          _
        // Predicated region
        $region17: #{roberta_forward.5} parent=11 // pred_check
          %p371 = pneg %p117
        $region18: #{roberta_forward.5} parent=11 // pred_check_branch
          %373 = sbr.rel (%p371) target = $region20
        $region19: #{roberta_forward.5} parent=11 // pred_region
          _
        $region20: #{roberta_forward.5} parent=11 // pred_fallthru
          _
        // Predicated region
        $region21: #{roberta_forward.5} parent=11 // pred_check
          %p374 = pneg %p138
        $region22: #{roberta_forward.5} parent=11 // pred_check_branch
          %376 = sbr.rel (%p374) target = $region24
        $region23: #{roberta_forward.5} parent=11 // pred_region
          _
        $region24: #{roberta_forward.5} parent=11 // pred_fallthru
          _
        // Predicated region
        $region25: #{roberta_forward.5} parent=11 // pred_check
          %p377 = pneg %p159
        $region26: #{roberta_forward.5} parent=11 // pred_check_branch
          %379 = sbr.rel (%p377) target = $region28
        $region27: #{roberta_forward.5} parent=11 // pred_region
          _
        $region28: #{roberta_forward.5} parent=11 // pred_fallthru
          _
        // Predicated region
        $region29: #{roberta_forward.5} parent=11 // pred_check
          %p380 = pneg %p180
        $region30: #{roberta_forward.5} parent=11 // pred_check_branch
          %382 = sbr.rel (%p380) target = $region32
        $region31: #{roberta_forward.5} parent=11 // pred_region
          _
        $region32: #{roberta_forward.5} parent=11 // pred_fallthru
          _
        // Predicated region
        $region33: #{roberta_forward.5} parent=11 // pred_check
          %p383 = pneg %p201
        $region34: #{roberta_forward.5} parent=11 // pred_check_branch
          %385 = sbr.rel (%p383) target = $region36
        $region35: #{roberta_forward.5} parent=11 // pred_region
          _
        $region36: #{roberta_forward.5} parent=11 // pred_fallthru
          _
        // Predicated region
        $region37: #{roberta_forward.5} parent=11 // pred_check
          %p386 = pneg %p222
        $region38: #{roberta_forward.5} parent=11 // pred_check_branch
          %388 = sbr.rel (%p386) target = $region40
        $region39: #{roberta_forward.5} parent=11 // pred_region
          _
        $region40: #{roberta_forward.5} parent=11 // pred_fallthru
          _
        // Predicated region
        $region41: #{roberta_forward.5} parent=11 // pred_check
          %p389 = pneg %p243
        $region42: #{roberta_forward.5} parent=11 // pred_check_branch
          %391 = sbr.rel (%p389) target = $region44
        $region43: #{roberta_forward.5} parent=11 // pred_region
          _
        $region44: #{roberta_forward.5} parent=11 // pred_fallthru
          _
        // Predicated region
        $region45: #{roberta_forward.5} parent=11 // pred_check
          %p392 = pneg %p264
        $region46: #{roberta_forward.5} parent=11 // pred_check_branch
          %394 = sbr.rel (%p392) target = $region48
        $region47: #{roberta_forward.5} parent=11 // pred_region
          _
        $region48: #{roberta_forward.5} parent=11 // pred_fallthru
          _
        // Predicated region
        $region49: #{roberta_forward.5} parent=11 // pred_check
          %p395 = pneg %p285
        $region50: #{roberta_forward.5} parent=11 // pred_check_branch
          %397 = sbr.rel (%p395) target = $region52
        $region51: #{roberta_forward.5} parent=11 // pred_region
          _
        $region52: #{roberta_forward.5} parent=11 // pred_fallthru
          _
        // Predicated region
        $region53: #{roberta_forward.5} parent=11 // pred_check
          %p398 = pneg %p306
        $region54: #{roberta_forward.5} parent=11 // pred_check_branch
          %400 = sbr.rel (%p398) target = $region56
        $region55: #{roberta_forward.5} parent=11 // pred_region
          _
        $region56: #{roberta_forward.5} parent=11 // pred_fallthru
          _
        // Predicated region
        $region57: #{roberta_forward.5} parent=11 // pred_check
          %p401 = pneg %p327
        $region58: #{roberta_forward.5} parent=11 // pred_check_branch
          %403 = sbr.rel (%p401) target = $region60
        $region59: #{roberta_forward.5} parent=11 // pred_region
          _
        $region60: #{roberta_forward.5} parent=11 // pred_fallthru
          _
      $region12: #{roberta_forward.5} parent=5 // pred_fallthru
        _
      %p404 = scmp.lt.s32.totalorder %s23, 2
      // Predicated region
      $region61: #{roberta_forward.5} parent=5 // pred_check
        %p405 = pneg %p404
      $region62: #{roberta_forward.5} parent=5 // pred_check_branch
        %407 = sbr.rel (%p405) target = $region64
      $region63: #{roberta_forward.5} parent=5 // pred_region
        // Predicated region
        $region65: #{roberta_forward.5} parent=63 // pred_check
          %p408 = pneg %p43
        $region66: #{roberta_forward.5} parent=63 // pred_check_branch
          %410 = sbr.rel (%p408) target = $region68
        $region67: #{roberta_forward.5} parent=63 // pred_region
          %p411 = scmp.lt.s32.totalorder %s23, 1
          %s412 = scalar_select %p411, %s23, 1
          %s413 = smul.addr %s412, 8
          %s414 = scalar_lea.vmem %s0, %s413
        $region68: #{roberta_forward.5} parent=63 // pred_fallthru
          _
        // Predicated region
        $region69: #{roberta_forward.5} parent=63 // pred_check
          %p415 = pneg %p69
        $region70: #{roberta_forward.5} parent=63 // pred_check_branch
          %417 = sbr.rel (%p415) target = $region72
        $region71: #{roberta_forward.5} parent=63 // pred_region
          %p418 = scmp.lt.s32.totalorder %s23, 1
          %s419 = scalar_select %p418, %s23, 1
          %s420 = scalar_lea.vmem %s1, %s419
        $region72: #{roberta_forward.5} parent=63 // pred_fallthru
          _
      $region64: #{roberta_forward.5} parent=5 // pred_fallthru
        _
      %p421 = scmp.le.s32.totalorder 1, %s23
      %p422 = scmp.lt.s32.totalorder %s23, 3
      %p423 = pnand %p421, %p422
      %p424 = pneg %p423
      // Predicated region
      $region73: #{roberta_forward.5} parent=5 // pred_check
        _
      $region74: #{roberta_forward.5} parent=5 // pred_check_branch
        %426 = sbr.rel (%p423) target = $region76
      $region75: #{roberta_forward.5} parent=5 // pred_region
        %s427 = ssub.s32 %s23, 1
        %p428 = scmp.lt.s32.totalorder %s28, 1
        %s429 = scalar_select %p428, %s28, 1
        %s430 = smul.addr %s429, 8
        %s431 = scalar_lea.vmem %s0, %s430
        %p432 = pneg %p49
        %p433 = pneg %p46
        %p434 = scmp.lt.s32.totalorder %s28, 1
        %s435 = scalar_select %p434, %s28, 1
        %s436 = scalar_lea.vmem %s1, %s435
        %p437 = pneg %p75
        %p438 = pneg %p72
        %p439 = pneg %p96
        %p440 = pneg %p93
        %p441 = pneg %p117
        %p442 = pneg %p114
        %p443 = pneg %p138
        %p444 = pneg %p135
        %p445 = pneg %p159
        %p446 = pneg %p156
        %p447 = pneg %p180
        %p448 = pneg %p177
        %p449 = pneg %p201
        %p450 = pneg %p198
        %p451 = pneg %p222
        %p452 = pneg %p219
        %p453 = pneg %p243
        %p454 = pneg %p240
        %p455 = pneg %p264
        %p456 = pneg %p261
        %p457 = pneg %p285
        %p458 = pneg %p282
        %p459 = pneg %p306
        %p460 = pneg %p303
        %p461 = pneg %p327
        %p462 = pneg %p324
        %p463 = pneg %p353
        %p464 = pneg %p350
        %s465 = sand.u32 %s340, 1
        %s466 = scalar_lea.sflag [#allocation3], %s465
        %s467 = sand.u32 %s340, 1
        %s468 = smul.addr %s467, 8
        %s469 = scalar_lea.vmem [#allocation2], %s468
        %p470 = scmp.lt.s32.totalorder %s28, 1
        %s471 = scalar_select %p470, %s28, 1
        %s472 = smul.addr %s471, 8
        %s473 = scalar_lea.vmem %s0, %s472
        %p474 = scmp.lt.s32.totalorder %s28, 1
        %s475 = scalar_select %p474, %s28, 1
        %s476 = scalar_lea.vmem %s1, %s475
        %v478 = vld [vmem:[%s473] sm:$0xff]
        %v479 = vpack.c.bf16 %v478, %v478
        %v480 = vld [vmem:[%s2] sm:$0xf]
        %v481 = vld [vmem:[%s2 + $0x4] sm:$0xf]
        %v482 = vld [vmem:[%s2 + $0x8] sm:$0xf]
        %v483 = vld [vmem:[%s2 + $0xc] sm:$0xf]
        %v484 = vld [vmem:[%s3] sm:$0x1]
        %v486 = vlaneseq
        %v487 = vshrl.u32 %v486, 7
        %v488 = vsub.s32 0, %v487
        %v489 = vrot.slane %v484, %v488
        %v495 = vunpack.c.l.b16 %v480
        %v496 = vunpack.c.l.b16 %v481
        %v497 = vunpack.c.l.b16 %v482
        %v498 = vunpack.c.l.b16 %v483
        %v499 = vpack.c.b16 %v496, %v495
        %v500 = vpack.c.b16 %v498, %v497
        %vm503 = vcmask 261120
        %v505 = vsel %vm503, %v479, 0
        %507 = vmatprep.subr.bf16.mxu0 0
        %508 = vmatpush1.bf16.msra.mxu0 %v499
        %509 = vmatprep.subr.bf16.mxu0 0
        %510 = vmatpush1.bf16.msra.mxu0 %v500
        %511 = vmatprep.subr.bf16.mxu0 0
        %512 = vmatpush1.bf16.msra.mxu0 0
        %513 = vmatprep.subr.bf16.mxu0 0
        %514 = vmatpush1.bf16.msra.mxu0 0
        %515 = vmatprep.subr.bf16.mxu0 0
        %516 = vmatpush1.bf16.msra.mxu0 0
        %517 = vmatprep.subr.bf16.mxu0 0
        %518 = vmatpush1.bf16.msra.mxu0 0
        %519 = vmatprep.subr.bf16.mxu0 0
        %520 = vmatpush1.bf16.msra.mxu0 0
        %521 = vmatprep.subr.bf16.mxu0 0
        %522 = vmatpush1.bf16.msra.mxu0 0
        %523 = vmatprep.subr.bf16.mxu0 0
        %524 = vmatpush1.bf16.msra.mxu0 0
        %525 = vmatprep.subr.bf16.mxu0 0
        %526 = vmatpush1.bf16.msra.mxu0 0
        %527 = vmatprep.subr.bf16.mxu0 0
        %528 = vmatpush1.bf16.msra.mxu0 0
        %529 = vmatprep.subr.bf16.mxu0 0
        %530 = vmatpush1.bf16.msra.mxu0 0
        %531 = vmatprep.subr.bf16.mxu0 0
        %532 = vmatpush1.bf16.msra.mxu0 0
        %533 = vmatprep.subr.bf16.mxu0 0
        %534 = vmatpush1.bf16.msra.mxu0 0
        %535 = vmatprep.subr.bf16.mxu0 0
        %536 = vmatpush1.bf16.msra.mxu0 0
        %537 = vmatprep.subr.bf16.mxu0 0
        %538 = vmatpush1.bf16.msra.mxu0 0
        %539 = vmatprep.mubr.bf16.mxu0 0
        %540 = vmatmul.mubr.bf16.gmra.mrb[0].mxu0 %v505
        %v541 = vpop.f32.mrb[0].mxu0
        %v542 = vadd.f32 %v489, %v541
        %v543 = vpop.f32.mrb[0].mxu0
        %v544 = vpop.f32.mrb[0].mxu0
        %v545 = vpop.f32.mrb[0].mxu0
        %546 = vdwg.mxu0
        %v547 = vld [vmem:[%s476] sm:$0x1]
        %549 = vrot.lane.b32.xlu0 %v542, 96
        %v550 = vpop.permute.xlu0 %549
        %vm551 = vcmask 130048
        %v552 = vsel %vm551, %v542, 0
        %v554 = vsel %vm551, %v550, 0
        %556 = vmatprep.subr.mxu0 0.0
        %557 = vmatpush1.xpose.msra.mxu0 %v554
        %558 = vmatprep.subr.mxu0 0.0
        %559 = vmatpush1.xpose.msra.mxu0 0.0
        %560 = vmatprep.subr.mxu0 0.0
        %561 = vmatpush1.xpose.msra.mxu0 0.0
        %562 = vmatprep.subr.mxu0 0.0
        %563 = vmatpush1.xpose.msra.mxu0 0.0
        %564 = vmatprep.subr.mxu0 0.0
        %565 = vmatpush1.xpose.msra.mxu0 0.0
        %566 = vmatprep.subr.mxu0 0.0
        %567 = vmatpush1.xpose.msra.mxu0 0.0
        %568 = vmatprep.subr.mxu0 0.0
        %569 = vmatpush1.xpose.msra.mxu0 0.0
        %570 = vmatprep.subr.mxu0 0.0
        %571 = vmatpush1.xpose.msra.mxu0 0.0
        %572 = vmatprep.subr.mxu0 0.0
        %573 = vmatpush1.xpose.msra.mxu0 0.0
        %574 = vmatprep.subr.mxu0 0.0
        %575 = vmatpush1.xpose.msra.mxu0 0.0
        %576 = vmatprep.subr.mxu0 0.0
        %577 = vmatpush1.xpose.msra.mxu0 0.0
        %578 = vmatprep.subr.mxu0 0.0
        %579 = vmatpush1.xpose.msra.mxu0 0.0
        %580 = vmatprep.subr.mxu0 0.0
        %581 = vmatpush1.xpose.msra.mxu0 0.0
        %582 = vmatprep.subr.mxu0 0.0
        %583 = vmatpush1.xpose.msra.mxu0 0.0
        %584 = vmatprep.subr.mxu0 0.0
        %585 = vmatpush1.xpose.msra.mxu0 0.0
        %586 = vmatprep.subr.mxu0 0.0
        %587 = vmatpush1.xpose.msra.mxu0 0.0
        %588 = vmatprep.subr.mxu0 0.0
        %589 = vmatpush1.xpose.msra.mxu0 0.0
        %590 = vmatprep.subr.mxu0 0.0
        %591 = vmatpush1.xpose.msra.mxu0 0.0
        %592 = vmatprep.subr.mxu0 0.0
        %593 = vmatpush1.xpose.msra.mxu0 0.0
        %594 = vmatprep.subr.mxu0 0.0
        %595 = vmatpush1.xpose.msra.mxu0 0.0
        %596 = vmatprep.subr.mxu0 0.0
        %597 = vmatpush1.xpose.msra.mxu0 0.0
        %598 = vmatprep.subr.mxu0 0.0
        %599 = vmatpush1.xpose.msra.mxu0 0.0
        %600 = vmatprep.subr.mxu0 0.0
        %601 = vmatpush1.xpose.msra.mxu0 0.0
        %602 = vmatprep.subr.mxu0 0.0
        %603 = vmatpush1.xpose.msra.mxu0 0.0
        %604 = vmatprep.subr.mxu0 0.0
        %605 = vmatpush1.xpose.msra.mxu0 0.0
        %606 = vmatprep.subr.mxu0 0.0
        %607 = vmatpush1.xpose.msra.mxu0 0.0
        %608 = vmatprep.subr.mxu0 0.0
        %609 = vmatpush1.xpose.msra.mxu0 0.0
        %610 = vmatprep.subr.mxu0 0.0
        %611 = vmatpush1.xpose.msra.mxu0 0.0
        %612 = vmatprep.subr.mxu0 0.0
        %613 = vmatpush1.xpose.msra.mxu0 0.0
        %614 = vmatprep.subr.mxu0 0.0
        %615 = vmatpush1.xpose.msra.mxu0 0.0
        %616 = vmatprep.subr.mxu0 0.0
        %617 = vmatpush1.xpose.msra.mxu0 0.0
        %618 = vmatprep.subr.mxu0 0.0
        %619 = vmatpush1.xpose.msra.mxu0 0.0
        %620 = vmatprep.mubr.f32.mxu0 0.0
        %621 = vmatmul.mubr.f32.gmra.mrb[0].mxu0 %v552
        %v622 = vpop.f32.mrb[0].mxu0
        %v623 = vadd.f32 0.0, %v622
        %v624 = vpop.f32.mrb[0].mxu0
        %625 = vdwg.mxu0
        %v626 = vmul.f32 %v623, 0.25
        %v628 = vlaneseq
        %v629 = vshrl.u32 %v628, 7
        %v630 = vsub.s32 0, %v629
        %v631 = vrot.slane %v547, %v630
        %v633 = vadd.f32 %v626, %v631
        %vm634 = vcmask 64512
        %v635 = vsel %vm634, %v633, -inf
        %636 = vmax.xlane.f32.xlu0 %v635
        %v637 = vpop.xlane.xlu0 %636
        %v638 = vsub.f32 %v633, %v637
        %v639 = vmul.f32 %v638, 1.442695
        %v640 = vpow.pop %v639
        %v641 = vsel %vm634, %v640, 0.0
        %642 = vadd.xlane.f32.xlu0 %v641
        %v643 = vpop.xlane.xlu0 %642
        %v644 = vrcp.pop %v643
        %v645 = vmul.f32 %v640, %v644
        %646 = vrot.lane.b32.xlu0 %v542, 64
        %v647 = vpop.permute.xlu0 %646
        %v650 = vsel %vm634, %v645, 0
        %652 = vmatprep.subr.mxu0 0.0
        %653 = vmatpush1.msra.mxu0 %v647
        %654 = vmatprep.subr.mxu0 0.0
        %655 = vmatpush1.msra.mxu0 0.0
        %656 = vmatprep.subr.mxu0 0.0
        %657 = vmatpush1.msra.mxu0 0.0
        %658 = vmatprep.subr.mxu0 0.0
        %659 = vmatpush1.msra.mxu0 0.0
        %660 = vmatprep.subr.mxu0 0.0
        %661 = vmatpush1.msra.mxu0 0.0
        %662 = vmatprep.subr.mxu0 0.0
        %663 = vmatpush1.msra.mxu0 0.0
        %664 = vmatprep.subr.mxu0 0.0
        %665 = vmatpush1.msra.mxu0 0.0
        %666 = vmatprep.subr.mxu0 0.0
        %667 = vmatpush1.msra.mxu0 0.0
        %668 = vmatprep.subr.mxu0 0.0
        %669 = vmatpush1.msra.mxu0 0.0
        %670 = vmatprep.subr.mxu0 0.0
        %671 = vmatpush1.msra.mxu0 0.0
        %672 = vmatprep.subr.mxu0 0.0
        %673 = vmatpush1.msra.mxu0 0.0
        %674 = vmatprep.subr.mxu0 0.0
        %675 = vmatpush1.msra.mxu0 0.0
        %676 = vmatprep.subr.mxu0 0.0
        %677 = vmatpush1.msra.mxu0 0.0
        %678 = vmatprep.subr.mxu0 0.0
        %679 = vmatpush1.msra.mxu0 0.0
        %680 = vmatprep.subr.mxu0 0.0
        %681 = vmatpush1.msra.mxu0 0.0
        %682 = vmatprep.subr.mxu0 0.0
        %683 = vmatpush1.msra.mxu0 0.0
        %684 = vmatprep.subr.mxu0 0.0
        %685 = vmatpush1.msra.mxu0 0.0
        %686 = vmatprep.subr.mxu0 0.0
        %687 = vmatpush1.msra.mxu0 0.0
        %688 = vmatprep.subr.mxu0 0.0
        %689 = vmatpush1.msra.mxu0 0.0
        %690 = vmatprep.subr.mxu0 0.0
        %691 = vmatpush1.msra.mxu0 0.0
        %692 = vmatprep.subr.mxu0 0.0
        %693 = vmatpush1.msra.mxu0 0.0
        %694 = vmatprep.subr.mxu0 0.0
        %695 = vmatpush1.msra.mxu0 0.0
        %696 = vmatprep.subr.mxu0 0.0
        %697 = vmatpush1.msra.mxu0 0.0
        %698 = vmatprep.subr.mxu0 0.0
        %699 = vmatpush1.msra.mxu0 0.0
        %700 = vmatprep.subr.mxu0 0.0
        %701 = vmatpush1.msra.mxu0 0.0
        %702 = vmatprep.subr.mxu0 0.0
        %703 = vmatpush1.msra.mxu0 0.0
        %704 = vmatprep.subr.mxu0 0.0
        %705 = vmatpush1.msra.mxu0 0.0
        %706 = vmatprep.subr.mxu0 0.0
        %707 = vmatpush1.msra.mxu0 0.0
        %708 = vmatprep.subr.mxu0 0.0
        %709 = vmatpush1.msra.mxu0 0.0
        %710 = vmatprep.subr.mxu0 0.0
        %711 = vmatpush1.msra.mxu0 0.0
        %712 = vmatprep.subr.mxu0 0.0
        %713 = vmatpush1.msra.mxu0 0.0
        %714 = vmatprep.subr.mxu0 0.0
        %715 = vmatpush1.msra.mxu0 0.0
        %716 = vmatprep.mubr.f32.mxu0 0.0
        %717 = vmatmul.mubr.f32.gmra.mrb[0].mxu0 %v650
        %v718 = vpop.f32.mrb[0].mxu0
        %v719 = vadd.f32 0.0, %v718
        %v720 = vpop.f32.mrb[0].mxu0
        %721 = vdwg.mxu0
        %v722 = vpack.c.bf16 %v719, %v719
        %v723 = vld [vmem:[%s4] sm:$0xf]
        %v724 = vld [vmem:[%s4 + $0x4] sm:$0xf]
        %725 = vrot.lane.b32.xlu0 %v542, 112
        %v726 = vpop.permute.xlu0 %725
        %727 = vrot.lane.b32.xlu0 %v542, 80
        %v728 = vpop.permute.xlu0 %727
        %v729 = vsel %vm551, %v726, 0
        %v731 = vsel %vm551, %v728, 0
        %733 = vmatprep.subr.mxu0 0.0
        %734 = vmatpush1.xpose.msra.mxu0 %v731
        %735 = vmatprep.subr.mxu0 0.0
        %736 = vmatpush1.xpose.msra.mxu0 0.0
        %737 = vmatprep.subr.mxu0 0.0
        %738 = vmatpush1.xpose.msra.mxu0 0.0
        %739 = vmatprep.subr.mxu0 0.0
        %740 = vmatpush1.xpose.msra.mxu0 0.0
        %741 = vmatprep.subr.mxu0 0.0
        %742 = vmatpush1.xpose.msra.mxu0 0.0
        %743 = vmatprep.subr.mxu0 0.0
        %744 = vmatpush1.xpose.msra.mxu0 0.0
        %745 = vmatprep.subr.mxu0 0.0
        %746 = vmatpush1.xpose.msra.mxu0 0.0
        %747 = vmatprep.subr.mxu0 0.0
        %748 = vmatpush1.xpose.msra.mxu0 0.0
        %749 = vmatprep.subr.mxu0 0.0
        %750 = vmatpush1.xpose.msra.mxu0 0.0
        %751 = vmatprep.subr.mxu0 0.0
        %752 = vmatpush1.xpose.msra.mxu0 0.0
        %753 = vmatprep.subr.mxu0 0.0
        %754 = vmatpush1.xpose.msra.mxu0 0.0
        %755 = vmatprep.subr.mxu0 0.0
        %756 = vmatpush1.xpose.msra.mxu0 0.0
        %757 = vmatprep.subr.mxu0 0.0
        %758 = vmatpush1.xpose.msra.mxu0 0.0
        %759 = vmatprep.subr.mxu0 0.0
        %760 = vmatpush1.xpose.msra.mxu0 0.0
        %761 = vmatprep.subr.mxu0 0.0
        %762 = vmatpush1.xpose.msra.mxu0 0.0
        %763 = vmatprep.subr.mxu0 0.0
        %764 = vmatpush1.xpose.msra.mxu0 0.0
        %765 = vmatprep.subr.mxu0 0.0
        %766 = vmatpush1.xpose.msra.mxu0 0.0
        %767 = vmatprep.subr.mxu0 0.0
        %768 = vmatpush1.xpose.msra.mxu0 0.0
        %769 = vmatprep.subr.mxu0 0.0
        %770 = vmatpush1.xpose.msra.mxu0 0.0
        %771 = vmatprep.subr.mxu0 0.0
        %772 = vmatpush1.xpose.msra.mxu0 0.0
        %773 = vmatprep.subr.mxu0 0.0
        %774 = vmatpush1.xpose.msra.mxu0 0.0
        %775 = vmatprep.subr.mxu0 0.0
        %776 = vmatpush1.xpose.msra.mxu0 0.0
        %777 = vmatprep.subr.mxu0 0.0
        %778 = vmatpush1.xpose.msra.mxu0 0.0
        %779 = vmatprep.subr.mxu0 0.0
        %780 = vmatpush1.xpose.msra.mxu0 0.0
        %781 = vmatprep.subr.mxu0 0.0
        %782 = vmatpush1.xpose.msra.mxu0 0.0
        %783 = vmatprep.subr.mxu0 0.0
        %784 = vmatpush1.xpose.msra.mxu0 0.0
        %785 = vmatprep.subr.mxu0 0.0
        %786 = vmatpush1.xpose.msra.mxu0 0.0
        %787 = vmatprep.subr.mxu0 0.0
        %788 = vmatpush1.xpose.msra.mxu0 0.0
        %789 = vmatprep.subr.mxu0 0.0
        %790 = vmatpush1.xpose.msra.mxu0 0.0
        %791 = vmatprep.subr.mxu0 0.0
        %792 = vmatpush1.xpose.msra.mxu0 0.0
        %793 = vmatprep.subr.mxu0 0.0
        %794 = vmatpush1.xpose.msra.mxu0 0.0
        %795 = vmatprep.subr.mxu0 0.0
        %796 = vmatpush1.xpose.msra.mxu0 0.0
        %797 = vmatprep.mubr.f32.mxu0 0.0
        %798 = vmatmul.mubr.f32.gmra.mrb[0].mxu0 %v729
        %v799 = vpop.f32.mrb[0].mxu0
        %v800 = vadd.f32 0.0, %v799
        %v801 = vpop.f32.mrb[0].mxu0
        %802 = vdwg.mxu0
        %v803 = vmul.f32 %v800, 0.25
        %v804 = vadd.f32 %v803, %v631
        %v805 = vsel %vm634, %v804, -inf
        %806 = vmax.xlane.f32.xlu0 %v805
        %v807 = vpop.xlane.xlu0 %806
        %v808 = vsub.f32 %v804, %v807
        %v809 = vmul.f32 %v808, 1.442695
        %v810 = vpow.pop %v809
        %v811 = vsel %vm634, %v810, 0.0
        %812 = vadd.xlane.f32.xlu0 %v811
        %v813 = vpop.xlane.xlu0 %812
        %v814 = vrcp.pop %v813
        %v815 = vmul.f32 %v810, %v814
        %816 = vrot.lane.b32.xlu0 %v542, 48
        %v817 = vpop.permute.xlu0 %816
        %v820 = vsel %vm634, %v815, 0
        %822 = vmatprep.subr.mxu0 0.0
        %823 = vmatpush1.msra.mxu0 %v817
        %824 = vmatprep.subr.mxu0 0.0
        %825 = vmatpush1.msra.mxu0 0.0
        %826 = vmatprep.subr.mxu0 0.0
        %827 = vmatpush1.msra.mxu0 0.0
        %828 = vmatprep.subr.mxu0 0.0
        %829 = vmatpush1.msra.mxu0 0.0
        %830 = vmatprep.subr.mxu0 0.0
        %831 = vmatpush1.msra.mxu0 0.0
        %832 = vmatprep.subr.mxu0 0.0
        %833 = vmatpush1.msra.mxu0 0.0
        %834 = vmatprep.subr.mxu0 0.0
        %835 = vmatpush1.msra.mxu0 0.0
        %836 = vmatprep.subr.mxu0 0.0
        %837 = vmatpush1.msra.mxu0 0.0
        %838 = vmatprep.subr.mxu0 0.0
        %839 = vmatpush1.msra.mxu0 0.0
        %840 = vmatprep.subr.mxu0 0.0
        %841 = vmatpush1.msra.mxu0 0.0
        %842 = vmatprep.subr.mxu0 0.0
        %843 = vmatpush1.msra.mxu0 0.0
        %844 = vmatprep.subr.mxu0 0.0
        %845 = vmatpush1.msra.mxu0 0.0
        %846 = vmatprep.subr.mxu0 0.0
        %847 = vmatpush1.msra.mxu0 0.0
        %848 = vmatprep.subr.mxu0 0.0
        %849 = vmatpush1.msra.mxu0 0.0
        %850 = vmatprep.subr.mxu0 0.0
        %851 = vmatpush1.msra.mxu0 0.0
        %852 = vmatprep.subr.mxu0 0.0
        %853 = vmatpush1.msra.mxu0 0.0
        %854 = vmatprep.subr.mxu0 0.0
        %855 = vmatpush1.msra.mxu0 0.0
        %856 = vmatprep.subr.mxu0 0.0
        %857 = vmatpush1.msra.mxu0 0.0
        %858 = vmatprep.subr.mxu0 0.0
        %859 = vmatpush1.msra.mxu0 0.0
        %860 = vmatprep.subr.mxu0 0.0
        %861 = vmatpush1.msra.mxu0 0.0
        %862 = vmatprep.subr.mxu0 0.0
        %863 = vmatpush1.msra.mxu0 0.0
        %864 = vmatprep.subr.mxu0 0.0
        %865 = vmatpush1.msra.mxu0 0.0
        %866 = vmatprep.subr.mxu0 0.0
        %867 = vmatpush1.msra.mxu0 0.0
        %868 = vmatprep.subr.mxu0 0.0
        %869 = vmatpush1.msra.mxu0 0.0
        %870 = vmatprep.subr.mxu0 0.0
        %871 = vmatpush1.msra.mxu0 0.0
        %872 = vmatprep.subr.mxu0 0.0
        %873 = vmatpush1.msra.mxu0 0.0
        %874 = vmatprep.subr.mxu0 0.0
        %875 = vmatpush1.msra.mxu0 0.0
        %876 = vmatprep.subr.mxu0 0.0
        %877 = vmatpush1.msra.mxu0 0.0
        %878 = vmatprep.subr.mxu0 0.0
        %879 = vmatpush1.msra.mxu0 0.0
        %880 = vmatprep.subr.mxu0 0.0
        %881 = vmatpush1.msra.mxu0 0.0
        %882 = vmatprep.subr.mxu0 0.0
        %883 = vmatpush1.msra.mxu0 0.0
        %884 = vmatprep.subr.mxu0 0.0
        %885 = vmatpush1.msra.mxu0 0.0
        %886 = vmatprep.mubr.f32.mxu0 0.0
        %887 = vmatmul.mubr.f32.gmra.mrb[0].mxu0 %v820
        %v888 = vpop.f32.mrb[0].mxu0
        %v889 = vadd.f32 0.0, %v888
        %v890 = vpop.f32.mrb[0].mxu0
        %891 = vdwg.mxu0
        %v892 = vpack.c.bf16 %v889, %v889
        %v893 = vld [vmem:[%s4 + $0x8] sm:$0xf]
        %v894 = vld [vmem:[%s4 + $0xc] sm:$0xf]
        %v897 = vunpack.c.l.b16 %v893
        %v898 = vunpack.c.l.b16 %v894
        %v899 = vpack.c.b16 %v898, %v897
        %v902 = vsel %vm551, %v892, 0
        %904 = vmatprep.subr.bf16.mxu0 0
        %905 = vmatpush1.bf16.msra.mxu0 %v899
        %906 = vmatprep.subr.bf16.mxu0 0
        %907 = vmatpush1.bf16.msra.mxu0 0
        %908 = vmatprep.subr.bf16.mxu0 0
        %909 = vmatpush1.bf16.msra.mxu0 0
        %910 = vmatprep.subr.bf16.mxu0 0
        %911 = vmatpush1.bf16.msra.mxu0 0
        %912 = vmatprep.subr.bf16.mxu0 0
        %913 = vmatpush1.bf16.msra.mxu0 0
        %914 = vmatprep.subr.bf16.mxu0 0
        %915 = vmatpush1.bf16.msra.mxu0 0
        %916 = vmatprep.subr.bf16.mxu0 0
        %917 = vmatpush1.bf16.msra.mxu0 0
        %918 = vmatprep.subr.bf16.mxu0 0
        %919 = vmatpush1.bf16.msra.mxu0 0
        %920 = vmatprep.subr.bf16.mxu0 0
        %921 = vmatpush1.bf16.msra.mxu0 0
        %922 = vmatprep.subr.bf16.mxu0 0
        %923 = vmatpush1.bf16.msra.mxu0 0
        %924 = vmatprep.subr.bf16.mxu0 0
        %925 = vmatpush1.bf16.msra.mxu0 0
        %926 = vmatprep.subr.bf16.mxu0 0
        %927 = vmatpush1.bf16.msra.mxu0 0
        %928 = vmatprep.subr.bf16.mxu0 0
        %929 = vmatpush1.bf16.msra.mxu0 0
        %930 = vmatprep.subr.bf16.mxu0 0
        %931 = vmatpush1.bf16.msra.mxu0 0
        %932 = vmatprep.subr.bf16.mxu0 0
        %933 = vmatpush1.bf16.msra.mxu0 0
        %934 = vmatprep.subr.bf16.mxu0 0
        %935 = vmatpush1.bf16.msra.mxu0 0
        %936 = vmatprep.mubr.bf16.mxu0 0
        %937 = vmatmul.mubr.bf16.gmra.mrb[0].mxu0 %v902
        %v938 = vpop.f32.mrb[0].mxu0
        %v939 = vadd.f32 0.0, %v938
        %v940 = vpop.f32.mrb[0].mxu0
        %v941 = vpop.f32.mrb[0].mxu0
        %v942 = vpop.f32.mrb[0].mxu0
        %943 = vdwg.mxu0
        %v946 = vunpack.c.l.b16 %v723
        %v947 = vunpack.c.l.b16 %v724
        %v948 = vpack.c.b16 %v947, %v946
        %v951 = vsel %vm551, %v722, 0
        %953 = vmatprep.subr.bf16.mxu0 0
        %954 = vmatpush1.bf16.msra.mxu0 %v948
        %955 = vmatprep.subr.bf16.mxu0 0
        %956 = vmatpush1.bf16.msra.mxu0 0
        %957 = vmatprep.subr.bf16.mxu0 0
        %958 = vmatpush1.bf16.msra.mxu0 0
        %959 = vmatprep.subr.bf16.mxu0 0
        %960 = vmatpush1.bf16.msra.mxu0 0
        %961 = vmatprep.subr.bf16.mxu0 0
        %962 = vmatpush1.bf16.msra.mxu0 0
        %963 = vmatprep.subr.bf16.mxu0 0
        %964 = vmatpush1.bf16.msra.mxu0 0
        %965 = vmatprep.subr.bf16.mxu0 0
        %966 = vmatpush1.bf16.msra.mxu0 0
        %967 = vmatprep.subr.bf16.mxu0 0
        %968 = vmatpush1.bf16.msra.mxu0 0
        %969 = vmatprep.subr.bf16.mxu0 0
        %970 = vmatpush1.bf16.msra.mxu0 0
        %971 = vmatprep.subr.bf16.mxu0 0
        %972 = vmatpush1.bf16.msra.mxu0 0
        %973 = vmatprep.subr.bf16.mxu0 0
        %974 = vmatpush1.bf16.msra.mxu0 0
        %975 = vmatprep.subr.bf16.mxu0 0
        %976 = vmatpush1.bf16.msra.mxu0 0
        %977 = vmatprep.subr.bf16.mxu0 0
        %978 = vmatpush1.bf16.msra.mxu0 0
        %979 = vmatprep.subr.bf16.mxu0 0
        %980 = vmatpush1.bf16.msra.mxu0 0
        %981 = vmatprep.subr.bf16.mxu0 0
        %982 = vmatpush1.bf16.msra.mxu0 0
        %983 = vmatprep.subr.bf16.mxu0 0
        %984 = vmatpush1.bf16.msra.mxu0 0
        %985 = vmatprep.mubr.bf16.mxu0 0
        %986 = vmatmul.mubr.bf16.gmra.mrb[0].mxu0 %v951
        %v987 = vpop.f32.mrb[0].mxu0
        %v988 = vadd.f32 %v939, %v987
        %v989 = vpop.f32.mrb[0].mxu0
        %v990 = vpop.f32.mrb[0].mxu0
        %v991 = vpop.f32.mrb[0].mxu0
        %992 = vdwg.mxu0
        %v993 = vld [vmem:[%s5] sm:$0x1]
        %v995 = vlaneseq
        %v996 = vshrl.u32 %v995, 7
        %v997 = vsub.s32 0, %v996
        %v998 = vrot.slane %v993, %v997
        %v1000 = vadd.f32 %v988, %v998
        %v1001 = vadd.f32 %v1000, %v478
        %v1002 = vld [vmem:[%s6] sm:$0x1]
        %v1003 = vld [vmem:[%s7] sm:$0x1]
        %v1004 = vsel %vm503, %v1001, 0.0
        %1005 = vadd.xlane.f32.xlu0 %v1004
        %v1006 = vpop.xlane.xlu0 %1005
        %v1007 = vrcp.pop 32.0
        %v1008 = vmul.f32 %v1006, %v1007
        %v1009 = vsub.f32 %v1001, %v1008
        %v1010 = vmul.f32 %v1009, %v1009
        %v1011 = vsel %vm503, %v1010, 0.0
        %1012 = vadd.xlane.f32.xlu0 %v1011
        %v1013 = vpop.xlane.xlu0 %1012
        %v1014 = vmul.f32 %v1013, %v1007
        %v1015 = vadd.f32 %v1014, 1e-05
        %v1016 = vrsqrt.pop %v1015
        %v1017 = vmul.f32 %v1009, %v1016
        %v1019 = vlaneseq
        %v1020 = vshrl.u32 %v1019, 7
        %v1021 = vsub.s32 0, %v1020
        %v1022 = vrot.slane %v1002, %v1021
        %v1024 = vmul.f32 %v1017, %v1022
        %v1026 = vlaneseq
        %v1027 = vshrl.u32 %v1026, 7
        %v1028 = vsub.s32 0, %v1027
        %v1029 = vrot.slane %v1003, %v1028
        %v1031 = vadd.f32 %v1024, %v1029
        %v1032 = vpack.c.bf16 %v1031, %v1031
        %v1033 = vld [vmem:[%s8] sm:$0xf]
        %v1034 = vld [vmem:[%s8 + $0x4] sm:$0xf]
        %v1035 = vld [vmem:[%s8 + $0x8] sm:$0xf]
        %v1036 = vld [vmem:[%s8 + $0xc] sm:$0xf]
        %v1037 = vld [vmem:[%s9] sm:$0x1]
        %v1039 = vlaneseq
        %v1040 = vshrl.u32 %v1039, 7
        %v1041 = vsub.s32 0, %v1040
        %v1042 = vrot.slane %v1037, %v1041
        %v1048 = vunpack.c.l.b16 %v1033
        %v1049 = vunpack.c.l.b16 %v1034
        %v1050 = vunpack.c.l.b16 %v1035
        %v1051 = vunpack.c.l.b16 %v1036
        %v1052 = vpack.c.b16 %v1049, %v1048
        %v1053 = vpack.c.b16 %v1051, %v1050
        %v1057 = vsel %vm503, %v1032, 0
        %1059 = vmatprep.subr.bf16.mxu0 0
        %1060 = vmatpush1.bf16.msra.mxu0 %v1052
        %1061 = vmatprep.subr.bf16.mxu0 0
        %1062 = vmatpush1.bf16.msra.mxu0 %v1053
        %1063 = vmatprep.subr.bf16.mxu0 0
        %1064 = vmatpush1.bf16.msra.mxu0 0
        %1065 = vmatprep.subr.bf16.mxu0 0
        %1066 = vmatpush1.bf16.msra.mxu0 0
        %1067 = vmatprep.subr.bf16.mxu0 0
        %1068 = vmatpush1.bf16.msra.mxu0 0
        %1069 = vmatprep.subr.bf16.mxu0 0
        %1070 = vmatpush1.bf16.msra.mxu0 0
        %1071 = vmatprep.subr.bf16.mxu0 0
        %1072 = vmatpush1.bf16.msra.mxu0 0
        %1073 = vmatprep.subr.bf16.mxu0 0
        %1074 = vmatpush1.bf16.msra.mxu0 0
        %1075 = vmatprep.subr.bf16.mxu0 0
        %1076 = vmatpush1.bf16.msra.mxu0 0
        %1077 = vmatprep.subr.bf16.mxu0 0
        %1078 = vmatpush1.bf16.msra.mxu0 0
        %1079 = vmatprep.subr.bf16.mxu0 0
        %1080 = vmatpush1.bf16.msra.mxu0 0
        %1081 = vmatprep.subr.bf16.mxu0 0
        %1082 = vmatpush1.bf16.msra.mxu0 0
        %1083 = vmatprep.subr.bf16.mxu0 0
        %1084 = vmatpush1.bf16.msra.mxu0 0
        %1085 = vmatprep.subr.bf16.mxu0 0
        %1086 = vmatpush1.bf16.msra.mxu0 0
        %1087 = vmatprep.subr.bf16.mxu0 0
        %1088 = vmatpush1.bf16.msra.mxu0 0
        %1089 = vmatprep.subr.bf16.mxu0 0
        %1090 = vmatpush1.bf16.msra.mxu0 0
        %1091 = vmatprep.mubr.bf16.mxu0 0
        %1092 = vmatmul.mubr.bf16.gmra.mrb[0].mxu0 %v1057
        %v1093 = vpop.f32.mrb[0].mxu0
        %v1094 = vadd.f32 %v1042, %v1093
        %v1095 = vpop.f32.mrb[0].mxu0
        %v1096 = vpop.f32.mrb[0].mxu0
        %v1097 = vpop.f32.mrb[0].mxu0
        %1098 = vdwg.mxu0
        %v1099 = vmul.f32 %v1094, 0.5
        %v1100 = vmul.f32 %v1094, 0.044715
        %v1101 = vmul.f32 %v1100, %v1094
        %v1102 = vmul.f32 %v1101, %v1094
        %v1103 = vadd.f32 %v1094, %v1102
        %v1104 = vmul.f32 %v1103, 0.7978846
        %v1105 = vtanh.pop %v1104
        %v1106 = vadd.f32 %v1105, 1.0
        %v1107 = vmul.f32 %v1099, %v1106
        %v1108 = vpack.c.bf16 %v1107, %v1107
        %v1109 = vld [vmem:[%s10] sm:$0xf]
        %v1110 = vld [vmem:[%s10 + $0x4] sm:$0xf]
        %v1111 = vld [vmem:[%s10 + $0x8] sm:$0xf]
        %v1112 = vld [vmem:[%s10 + $0xc] sm:$0xf]
        %v1113 = vld [vmem:[%s10 + $0x10] sm:$0xf]
        %v1114 = vld [vmem:[%s10 + $0x14] sm:$0xf]
        %v1115 = vld [vmem:[%s10 + $0x18] sm:$0xf]
        %v1116 = vld [vmem:[%s10 + $0x1c] sm:$0xf]
        %v1117 = vld [vmem:[%s11] sm:$0x1]
        %v1119 = vlaneseq
        %v1120 = vshrl.u32 %v1119, 7
        %v1121 = vsub.s32 0, %v1120
        %v1122 = vrot.slane %v1117, %v1121
        %v1132 = vunpack.c.l.b16 %v1109
        %v1133 = vunpack.c.l.b16 %v1110
        %v1134 = vunpack.c.l.b16 %v1111
        %v1135 = vunpack.c.l.b16 %v1112
        %v1136 = vunpack.c.l.b16 %v1113
        %v1137 = vunpack.c.l.b16 %v1114
        %v1138 = vunpack.c.l.b16 %v1115
        %v1139 = vunpack.c.l.b16 %v1116
        %v1140 = vpack.c.b16 %v1133, %v1132
        %v1141 = vpack.c.b16 %v1135, %v1134
        %v1142 = vpack.c.b16 %v1137, %v1136
        %v1143 = vpack.c.b16 %v1139, %v1138
        %vm1148 = vcmask 523264
        %v1150 = vsel %vm1148, %v1108, 0
        %1152 = vmatprep.subr.bf16.mxu0 0
        %1153 = vmatpush1.bf16.msra.mxu0 %v1140
        %1154 = vmatprep.subr.bf16.mxu0 0
        %1155 = vmatpush1.bf16.msra.mxu0 %v1141
        %1156 = vmatprep.subr.bf16.mxu0 0
        %1157 = vmatpush1.bf16.msra.mxu0 %v1142
        %1158 = vmatprep.subr.bf16.mxu0 0
        %1159 = vmatpush1.bf16.msra.mxu0 %v1143
        %1160 = vmatprep.subr.bf16.mxu0 0
        %1161 = vmatpush1.bf16.msra.mxu0 0
        %1162 = vmatprep.subr.bf16.mxu0 0
        %1163 = vmatpush1.bf16.msra.mxu0 0
        %1164 = vmatprep.subr.bf16.mxu0 0
        %1165 = vmatpush1.bf16.msra.mxu0 0
        %1166 = vmatprep.subr.bf16.mxu0 0
        %1167 = vmatpush1.bf16.msra.mxu0 0
        %1168 = vmatprep.subr.bf16.mxu0 0
        %1169 = vmatpush1.bf16.msra.mxu0 0
        %1170 = vmatprep.subr.bf16.mxu0 0
        %1171 = vmatpush1.bf16.msra.mxu0 0
        %1172 = vmatprep.subr.bf16.mxu0 0
        %1173 = vmatpush1.bf16.msra.mxu0 0
        %1174 = vmatprep.subr.bf16.mxu0 0
        %1175 = vmatpush1.bf16.msra.mxu0 0
        %1176 = vmatprep.subr.bf16.mxu0 0
        %1177 = vmatpush1.bf16.msra.mxu0 0
        %1178 = vmatprep.subr.bf16.mxu0 0
        %1179 = vmatpush1.bf16.msra.mxu0 0
        %1180 = vmatprep.subr.bf16.mxu0 0
        %1181 = vmatpush1.bf16.msra.mxu0 0
        %1182 = vmatprep.subr.bf16.mxu0 0
        %1183 = vmatpush1.bf16.msra.mxu0 0
        %1184 = vmatprep.mubr.bf16.mxu0 0
        %1185 = vmatmul.mubr.bf16.gmra.mrb[0].mxu0 %v1150
        %v1186 = vpop.f32.mrb[0].mxu0
        %v1187 = vadd.f32 %v1122, %v1186
        %v1188 = vpop.f32.mrb[0].mxu0
        %v1189 = vpop.f32.mrb[0].mxu0
        %v1190 = vpop.f32.mrb[0].mxu0
        %1191 = vdwg.mxu0
        %v1192 = vadd.f32 %v1187, %v1031
        %v1193 = vld [vmem:[%s12] sm:$0x1]
        %v1194 = vld [vmem:[%s13] sm:$0x1]
        %v1195 = vsel %vm503, %v1192, 0.0
        %1196 = vadd.xlane.f32.xlu0 %v1195
        %v1197 = vpop.xlane.xlu0 %1196
        %v1198 = vmul.f32 %v1197, %v1007
        %v1199 = vsub.f32 %v1192, %v1198
        %v1200 = vmul.f32 %v1199, %v1199
        %v1201 = vsel %vm503, %v1200, 0.0
        %1202 = vadd.xlane.f32.xlu0 %v1201
        %v1203 = vpop.xlane.xlu0 %1202
        %v1204 = vmul.f32 %v1203, %v1007
        %v1205 = vadd.f32 %v1204, 1e-05
        %v1206 = vrsqrt.pop %v1205
        %v1207 = vmul.f32 %v1199, %v1206
        %v1209 = vlaneseq
        %v1210 = vshrl.u32 %v1209, 7
        %v1211 = vsub.s32 0, %v1210
        %v1212 = vrot.slane %v1193, %v1211
        %v1214 = vmul.f32 %v1207, %v1212
        %v1216 = vlaneseq
        %v1217 = vshrl.u32 %v1216, 7
        %v1218 = vsub.s32 0, %v1217
        %v1219 = vrot.slane %v1194, %v1218
        %v1221 = vadd.f32 %v1214, %v1219
        %1222 = vst.msk [vmem:[%s469] sm:$0xff] %vm503, %v1221
        %s1223 = sand.u32 %s340, 1
        %s1224 = scalar_lea.sflag [#allocation3], %s1223
        %s1225 = sand.u32 %s340, 1
        %s1226 = smul.addr %s1225, 8
        %s1227 = scalar_lea.vmem [#allocation2], %s1226
        // Predicated region
        $region77: #{roberta_forward.5} parent=75 // pred_check
          %p1228 = pneg %p350
        $region78: #{roberta_forward.5} parent=75 // pred_check_branch
          %1230 = sbr.rel (%p1228) target = $region80
        $region79: #{roberta_forward.5} parent=75 // pred_region
          %s1232 = ssub.s32 128, 128
          %1233 = vsyncadd %s1224, %s1232
          %s1234 = smul.addr %s28, 128
          %s1235 = scalar_lea.hbm %s14, %s1234
          %s1237 = sshll.u32 %s1227, 4
          %s1238 = int_to_ptr.vmem [resolvable:$true] %s1237
          %1240 = dma.vmem_to_hbm [thread:$0]  %s1238, 128, %s1235, %s1224
        $region80: #{roberta_forward.5} parent=75 // pred_fallthru
          _
      $region76: #{roberta_forward.5} parent=5 // pred_fallthru
        _
      %p1241 = scmp.le.s32.totalorder 2, %s23
      // Predicated region
      $region81: #{roberta_forward.5} parent=5 // pred_check
        %p1242 = pneg %p1241
      $region82: #{roberta_forward.5} parent=5 // pred_check_branch
        %1244 = sbr.rel (%p1242) target = $region84
      $region83: #{roberta_forward.5} parent=5 // pred_region
        %s1245 = ssub.s32 %s23, 2
        // Predicated region
        $region85: #{roberta_forward.5} parent=83 // pred_check
          %p1246 = pneg %p356
        $region86: #{roberta_forward.5} parent=83 // pred_check_branch
          %1248 = sbr.rel (%p1246) target = $region88
        $region87: #{roberta_forward.5} parent=83 // pred_region
          %s1249 = sand.u32 %s341, 1
          %s1250 = scalar_lea.sflag [#allocation3], %s1249
          %s1251 = sand.u32 %s341, 1
          %s1252 = smul.addr %s1251, 8
          %s1253 = scalar_lea.vmem [#allocation2], %s1252
          %1254 = dma.done %s1250, 128
        $region88: #{roberta_forward.5} parent=83 // pred_fallthru
          _
      $region84: #{roberta_forward.5} parent=5 // pred_fallthru
        _
    $region6: #{roberta_forward.5} parent=1 // loop_footer
      %s27 = sadd.s32 1, %s23
    $region7: #{roberta_forward.5} parent=1 // loop_footer_branch
      %22 = sbr.rel target = $region3
    $region8: #{roberta_forward.5} parent=1 // loop_exit
      _
    %1255 = vsyncpa [#allocation3], 1
    %s1256 = scalar_lea.sflag [#allocation3], 1
    %1257 = vsyncpa %s1256, 1

</llo_original>
